<compile_context>
chip_gen: v5e
topology: v5e:2x2
jax: 0.10.0
libtpu: 0.0.40
codegen_flags: <defaults>
</compile_context>

<pallas_src>
import functools

import jax
import jax.numpy as jnp
from jax.experimental import pallas as pl
from jax.experimental.pallas import tpu as pltpu


# ----------------------------------------------------------------------------
# shared in-kernel helpers
# ----------------------------------------------------------------------------
def _build_im2col(src, col_ref):
    """col[h, w, (3*dy+dx)*C:(3*dy+dx+1)*C] = zero-padded src[h+dy-1, w+dx-1, :].

    Built once per image (column shifts then row shifts, concats in f32, one
    cast at the final store so col_ref may be bf16).  The shifts could also be
    pltpu.roll on the idle XLU; concat is kept for robustness.
    """
    H, W, C = src.shape
    x = src.astype(jnp.float32)
    zc = jnp.zeros((H, 1, C), jnp.float32)
    xl = jnp.concatenate([zc, x[:, :W - 1, :]], axis=1)      # input col w-1 (kx=0)
    xr = jnp.concatenate([x[:, 1:, :], zc], axis=1)          # input col w+1 (kx=2)
    x3 = jnp.concatenate([xl, x, xr], axis=-1)               # (H, W, 3C), kx-major
    zr = jnp.zeros((1, W, 3 * C), jnp.float32)
    xu = jnp.concatenate([zr, x3[:H - 1, :, :]], axis=0)     # input row h-1 (ky=0)
    xd = jnp.concatenate([x3[1:, :, :], zr], axis=0)         # input row h+1 (ky=2)
    col_ref[...] = jnp.concatenate([xu, x3, xd], axis=-1).astype(col_ref.dtype)


def _conv_chunks_with_stats(col_ref, w_ref, y_ref, stats_ref, *, TH):
    """y = im2col @ w in TM-row chunks, with loop-carried sum / sum-of-squares."""
    H, W, K = col_ref.shape
    Cout = w_ref.shape[-1]
    TM = TH * W
    n_chunks = H // TH
    w = w_ref[...]                                           # hoisted (K, Cout)

    def body(i, carry):
        s, ss = carry
        h0 = pl.multiple_of(i * TH, TH)
        r0 = pl.multiple_of(i * TM, TM)
        patch = col_ref[pl.ds(h0, TH), :, :].reshape(TM, K)  # free leading-dim merge
        acc = jnp.dot(patch, w, preferred_element_type=jnp.float32)   # (TM, Cout)
        y_ref[pl.ds(r0, TM), :] = acc
        return (s + jnp.sum(acc, axis=0, keepdims=True),
                ss + jnp.sum(acc * acc, axis=0, keepdims=True))

    zero = jnp.zeros((1, Cout), jnp.float32)
    s, ss = jax.lax.fori_loop(0, n_chunks, body, (zero, zero), unroll=True)
    stats_ref[...] = jnp.concatenate([s, ss], axis=0)        # single (2, Cout) store


# ----------------------------------------------------------------------------
# kernel A: conv1 (3x3, pad 1, bias cancelled by BN) + per-image BN1 partials
# ----------------------------------------------------------------------------
def _conv1_stats_kernel(x_ref, w_ref, y_ref, stats_ref, col_ref, *, TH):
    _build_im2col(x_ref[...], col_ref)
    _conv_chunks_with_stats(col_ref, w_ref, y_ref, stats_ref, TH=TH)


# ----------------------------------------------------------------------------
# kernel B: bn1 + relu + conv2 (3x3, pad 1) + per-image BN2 partials
# ----------------------------------------------------------------------------
def _bn_relu_conv2_stats_kernel(y1_ref, sc1_ref, sh1_ref, w_ref, y2_ref,
                                stats_ref, a_ref, col_ref, *, TH):
    H, W, C = a_ref.shape
    TM = TH * W
    sc = sc1_ref[...]                                        # hoisted (1, C)
    sh = sh1_ref[...]

    def bn_body(i, carry):
        h0 = pl.multiple_of(i * TH, TH)
        r0 = pl.multiple_of(i * TM, TM)
        a = jnp.maximum(y1_ref[pl.ds(r0, TM), :] * sc + sh, 0.0)
        a_ref[pl.ds(h0, TH), :, :] = a.reshape(TH, W, C).astype(a_ref.dtype)
        return carry

    jax.lax.fori_loop(0, H // TH, bn_body, 0, unroll=True)
    _build_im2col(a_ref[...], col_ref)
    _conv_chunks_with_stats(col_ref, w_ref, y2_ref, stats_ref, TH=TH)


# ----------------------------------------------------------------------------
# kernel C: bn2 + skip (identity or 1x1 conv) + relu
# ----------------------------------------------------------------------------
def _bn_skip_relu_kernel(y2_ref, x_ref, sc2_ref, sh2_ref, *rest, TM,
                         use_1x1conv, mxu_dtype):
    if use_1x1conv:
        w3_ref, b3_ref, out_ref = rest
    else:
        (out_ref,) = rest
    HW, Cout = y2_ref.shape
    Cin = x_ref.shape[-1]
    n_chunks = HW // TM

    sc = sc2_ref[...]                                        # hoisted (1, Cout)
    sh = sh2_ref[...]
    if use_1x1conv:
        b3 = b3_ref[...]                                     # hoisted (1, Cout)
        vpu_skip = Cin <= 8
        if vpu_skip:
            w3_rows = [w3_ref[ci:ci + 1, :] for ci in range(Cin)]   # hoisted rows
        else:
            w3 = w3_ref[...].astype(mxu_dtype)

    def body(i, carry):
        r0 = pl.multiple_of(i * TM, TM)
        acc = y2_ref[pl.ds(r0, TM), :] * sc + sh
        xc = x_ref[pl.ds(r0, TM), :]
        if use_1x1conv:
            acc = acc + b3
            if vpu_skip:
                # tiny-Cin projection on the VPU: Cin broadcast mul-adds
                for ci in range(Cin):
                    acc = acc + xc[:, ci:ci + 1] * w3_rows[ci]
            else:
                acc = acc + jnp.dot(xc.astype(mxu_dtype), w3,
                                    preferred_element_type=jnp.float32)
        else:
            acc = acc + xc                                   # identity skip (Cin == Cout)
        out_ref[pl.ds(r0, TM), :] = jnp.maximum(acc, 0.0)
        return carry

    jax.lax.fori_loop(0, n_chunks, body, 0, unroll=True)


# ----------------------------------------------------------------------------
# wrapper
# ----------------------------------------------------------------------------
def _vmem_limit_bytes():
    """Generation-aware VMEM budget: ~85% of capacity, capped at 112 MiB."""
    cap = 64 * 1024 * 1024        # conservative fallback (v7x per-core VMEM)
    try:
        info = pltpu.get_tpu_info()
        cap = int(getattr(info, "vmem_capacity_bytes", cap)) or cap
    except Exception:
        pass
    return int(min(0.85 * cap, 112 * 1024 * 1024))


@functools.partial(jax.jit, static_argnames=("use_1x1conv", "strides", "mxu_dtype"))
def residual_forward(x_nchw, params, use_1x1conv=False, strides=1,
                     mxu_dtype=jnp.bfloat16):
    """NCHW in / NCHW out wrapper around the fused Pallas residual-block kernels."""
    if strides != 1:
        raise NotImplementedError("strides > 1 not implemented")  # TODO(synk)
    x = jnp.transpose(x_nchw, (0, 2, 3, 1)).astype(jnp.float32)   # NCHW -> NHWC
    N, H, W, Cin = x.shape
    Cout = params["w1"].shape[-1]
    if not use_1x1conv:
        assert Cin == Cout, "identity skip requires input_channels == num_channels"
    assert W % 8 == 0, "W must be a multiple of 8 (sublane tiling)"

    # chunk height: largest divisor of H with TH*W <= 128 rows per MXU chunk
    # (keeps patch + f32 accumulator register-resident on v5e/v6e; v7x's MRB
    #  would allow larger tiles -- left for the large-channel path).
    TH = 1
    for h in range(1, H + 1):
        if H % h == 0 and h * W <= 128:
            TH = h
    TM = TH * W
    HW = H * W
    M = float(N * HW)
    eps = 1e-5

    cparams = pltpu.CompilerParams(
        dimension_semantics=("parallel",),     # images independent; shards v7x's 2 TCs
        vmem_limit_bytes=_vmem_limit_bytes())

    w1c = params["w1"].reshape(9 * Cin, Cout).astype(mxu_dtype)
    w2c = params["w2"].reshape(9 * Cout, Cout).astype(mxu_dtype)
    # NOTE: conv biases b1/b2 are NOT used -- training-mode BN cancels them exactly.

    # ---- kernel A: conv1 + per-image BN1 partial sums ------------------------
    y1, st1 = pl.pallas_call(
        functools.partial(_conv1_stats_kernel, TH=TH),
        grid=(N,),
        in_specs=[
            pl.BlockSpec((None, H, W, Cin), lambda n: (n, 0, 0, 0)),
            pl.BlockSpec((9 * Cin, Cout), lambda n: (0, 0)),
        ],
        out_specs=(
            pl.BlockSpec((None, HW, Cout), lambda n: (n, 0, 0)),
            pl.BlockSpec((None, 2, Cout), lambda n: (n, 0, 0)),
        ),
        out_shape=(
            jax.ShapeDtypeStruct((N, HW, Cout), jnp.float32),
            jax.ShapeDtypeStruct((N, 2, Cout), jnp.float32),
        ),
        scratch_shapes=[pltpu.VMEM((H, W, 9 * Cin), mxu_dtype)],
        compiler_params=cparams,
        cost_estimate=pl.CostEstimate(
            flops=2 * N * HW * 9 * Cin * Cout, transcendentals=0,
            bytes_accessed=4 * N * HW * (Cin + Cout) + 4 * 9 * Cin * Cout),
    )(x, w1c)

    # ---- finalize BN (two-phase: tiny cross-image reduction in JAX) ----------
    def bn_coeffs(st, gamma, beta):
        s = jnp.sum(st[:, 0, :], axis=0)
        ss = jnp.sum(st[:, 1, :], axis=0)
        mean = s / M
        var = jnp.maximum(ss / M - mean * mean, 0.0)   # clamp: f32 cancellation
        scale = gamma.reshape(-1) * jax.lax.rsqrt(var + eps)
        shift = beta.reshape(-1) - mean * scale
        return scale.reshape(1, -1), shift.reshape(1, -1)

    sc1, sh1 = bn_coeffs(st1, params["g1"], params["be1"])

    # ---- kernel B: bn1 + relu + conv2 + per-image BN2 partial sums ------------
    y2, st2 = pl.pallas_call(
        functools.partial(_bn_relu_conv2_stats_kernel, TH=TH),
        grid=(N,),
        in_specs=[
            pl.BlockSpec((None, HW, Cout), lambda n: (n, 0, 0)),
            pl.BlockSpec((1, Cout), lambda n: (0, 0)),
            pl.BlockSpec((1, Cout), lambda n: (0, 0)),
            pl.BlockSpec((9 * Cout, Cout), lambda n: (0, 0)),
        ],
        out_specs=(
            pl.BlockSpec((None, HW, Cout), lambda n: (n, 0, 0)),
            pl.BlockSpec((None, 2, Cout), lambda n: (n, 0, 0)),
        ),
        out_shape=(
            jax.ShapeDtypeStruct((N, HW, Cout), jnp.float32),
            jax.ShapeDtypeStruct((N, 2, Cout), jnp.float32),
        ),
        scratch_shapes=[pltpu.VMEM((H, W, Cout), mxu_dtype),       # relu(bn1(y1))
                        pltpu.VMEM((H, W, 9 * Cout), mxu_dtype)],  # im2col of it
        compiler_params=cparams,
        cost_estimate=pl.CostEstimate(
            flops=2 * N * HW * 9 * Cout * Cout + 3 * N * HW * Cout,
            transcendentals=0,
            bytes_accessed=8 * N * HW * Cout + 4 * 9 * Cout * Cout),
    )(y1, sc1, sh1, w2c)

    sc2, sh2 = bn_coeffs(st2, params["g2"], params["be2"])

    # ---- kernel C: bn2 + skip (identity / 1x1 conv) + relu --------------------
    x_flat = x.reshape(N, HW, Cin)
    args = [y2, x_flat, sc2, sh2]
    in_specs = [
        pl.BlockSpec((None, HW, Cout), lambda n: (n, 0, 0)),
        pl.BlockSpec((None, HW, Cin), lambda n: (n, 0, 0)),
        pl.BlockSpec((1, Cout), lambda n: (0, 0)),
        pl.BlockSpec((1, Cout), lambda n: (0, 0)),
    ]
    if use_1x1conv:
        args += [params["w3"].astype(jnp.float32), params["b3"].astype(jnp.float32)]
        in_specs += [pl.BlockSpec((Cin, Cout), lambda n: (0, 0)),
                     pl.BlockSpec((1, Cout), lambda n: (0, 0))]

    out_flat = pl.pallas_call(
        functools.partial(_bn_skip_relu_kernel, TM=TM, use_1x1conv=use_1x1conv,
                          mxu_dtype=mxu_dtype),
        grid=(N,),
        in_specs=in_specs,
        out_specs=pl.BlockSpec((None, HW, Cout), lambda n: (n, 0, 0)),
        out_shape=jax.ShapeDtypeStruct((N, HW, Cout), jnp.float32),
        compiler_params=cparams,
        cost_estimate=pl.CostEstimate(
            flops=(N * HW * Cout * (2 * Cin + 4)) if use_1x1conv
            else 4 * N * HW * Cout,
            transcendentals=0,
            bytes_accessed=4 * N * HW * (Cin + 2 * Cout)),
    )(*args)

    out_nhwc = out_flat.reshape(N, H, W, Cout)
    return jnp.transpose(out_nhwc, (0, 3, 1, 2))              # NHWC -> NCHW


# ----------------------------------------------------------------------------
# pure-JAX reference (mirrors torch training-mode semantics) and param init
# ----------------------------------------------------------------------------
def residual_reference(x_nchw, params, use_1x1conv=False):
    def conv(x, w_hwio, b, pad):
        y = jax.lax.conv_general_dilated(
            x, w_hwio, window_strides=(1, 1),
            padding=((pad, pad), (pad, pad)),
            dimension_numbers=("NCHW", "HWIO", "NCHW"))
        return y + b.reshape(1, -1, 1, 1)

    def bn(y, g, be):
        mean = jnp.mean(y, axis=(0, 2, 3), keepdims=True)
        var = jnp.mean(jnp.square(y - mean), axis=(0, 2, 3), keepdims=True)
        return ((y - mean) / jnp.sqrt(var + 1e-5) * g.reshape(1, -1, 1, 1)
                + be.reshape(1, -1, 1, 1))

    y = jax.nn.relu(bn(conv(x_nchw, params["w1"], params["b1"], 1),
                       params["g1"], params["be1"]))
    y = bn(conv(y, params["w2"], params["b2"], 1), params["g2"], params["be2"])
    if use_1x1conv:
        w3 = params["w3"].reshape(1, 1, *params["w3"].shape)
        x_nchw = conv(x_nchw, w3, params["b3"], 0)
    return jax.nn.relu(y + x_nchw)


def init_params(key, cin, cout, use_1x1conv=False):
    ks = jax.random.split(key, 10)
    p = {
        "w1": 0.1 * jax.random.normal(ks[0], (3, 3, cin, cout), jnp.float32),
        "b1": 0.1 * jax.random.normal(ks[1], (1, cout), jnp.float32),
        "g1": 1.0 + 0.1 * jax.random.normal(ks[2], (1, cout), jnp.float32),
        "be1": 0.1 * jax.random.normal(ks[3], (1, cout), jnp.float32),
        "w2": 0.1 * jax.random.normal(ks[4], (3, 3, cout, cout), jnp.float32),
        "b2": 0.1 * jax.random.normal(ks[5], (1, cout), jnp.float32),
        "g2": 1.0 + 0.1 * jax.random.normal(ks[6], (1, cout), jnp.float32),
        "be2": 0.1 * jax.random.normal(ks[7], (1, cout), jnp.float32),
    }
    if use_1x1conv:
        p["w3"] = 0.1 * jax.random.normal(ks[8], (cin, cout), jnp.float32)
        p["b3"] = 0.1 * jax.random.normal(ks[9], (1, cout), jnp.float32)
    return p


if __name__ == "__main__":
    key = jax.random.PRNGKey(0)
    kx, kp1, kp2 = jax.random.split(key, 3)

    # Input in PyTorch NCHW convention: batch=2, channels=4, spatial=16x16.
    x = jax.random.normal(kx, (2, 4, 16, 16), jnp.float32)

    # Config A: module defaults (use_1x1conv=False, strides=1), Cin == Cout.
    pA = init_params(kp1, 4, 4, use_1x1conv=False)
    outA = jax.block_until_ready(
        residual_forward(x, pA, use_1x1conv=False, mxu_dtype=jnp.float32))
    refA = residual_reference(x, pA, use_1x1conv=False)
    errA = float(jnp.max(jnp.abs(outA - refA)))
    assert outA.shape == (2, 4, 16, 16)
    assert errA < 1e-3, f"config A mismatch: {errA}"

    # Config B: projection shortcut (use_1x1conv=True), Cin=4 -> Cout=8.
    pB = init_params(kp2, 4, 8, use_1x1conv=True)
    outB = jax.block_until_ready(
        residual_forward(x, pB, use_1x1conv=True, mxu_dtype=jnp.float32))
    refB = residual_reference(x, pB, use_1x1conv=True)
    errB = float(jnp.max(jnp.abs(outB - refB)))
    assert outB.shape == (2, 8, 16, 16)
    assert errB < 1e-3, f"config B mismatch: {errB}"

    # Default path: bf16 MXU operands on all generations (bf16-native MXUs);
    # BN / ReLU / residual math stays f32.
    outB16 = jax.block_until_ready(residual_forward(x, pB, use_1x1conv=True))
    errB16 = float(jnp.max(jnp.abs(outB16 - refB)))
    assert errB16 < 1e-1, f"bf16 config B mismatch: {errB16}"

    print("KERNEL_OK")
</pallas_src>

<mosaic_0001>
module attributes {stable_mosaic.version = 11 : i64} {
  func.func @_conv1_stats_kernel(%arg0: i32, %arg1: memref<1x16x16x4xf32, #tpu.memory_space<vmem>>, %arg2: memref<36x4xf32, #tpu.memory_space<vmem>>, %arg3: memref<1x256x4xf32, #tpu.memory_space<vmem>>, %arg4: memref<1x2x4xf32, #tpu.memory_space<vmem>>, %arg5: memref<16x16x36xf32, #tpu.memory_space<vmem>>) attributes {dimension_semantics = [#tpu.dimension_semantics<parallel>], iteration_bounds = array<i64: 2>, scalar_prefetch = 0 : i64, scratch_operands = 1 : i64, tpu.core_type = #tpu.core_type<tc>, window_params = [{transform_indices = @transform_0, window_bounds = array<i64: 1, 16, 16, 4>}, {pipeline_mode = #tpu.pipeline_mode<synchronous>, transform_indices = @transform_1, window_bounds = array<i64: 36, 4>}, {transform_indices = @transform_2, window_bounds = array<i64: 1, 256, 4>}, {transform_indices = @transform_3, window_bounds = array<i64: 1, 2, 4>}]} {
    %c0 = arith.constant 0 : index
    %c0_0 = arith.constant 0 : index
    %c0_1 = arith.constant 0 : index
    %c0_2 = arith.constant 0 : index
    %0 = vector.load %arg1[%c0, %c0_0, %c0_1, %c0_2] : memref<1x16x16x4xf32, #tpu.memory_space<vmem>>, vector<1x16x16x4xf32>
    %1 = vector.shape_cast %0 : vector<1x16x16x4xf32> to vector<16x16x4xf32>
    %cst = arith.constant 0.000000e+00 : f32
    %2 = vector.broadcast %cst : f32 to vector<16x1x4xf32>
    %3 = vector.extract_strided_slice %1 {offsets = [0, 0, 0], sizes = [16, 15, 4], strides = [1, 1, 1]} : vector<16x16x4xf32> to vector<16x15x4xf32>
    %4 = tpu.concatenate %2, %3 in 1 : vector<16x1x4xf32>, vector<16x15x4xf32> -> vector<16x16x4xf32>
    %5 = vector.extract_strided_slice %1 {offsets = [0, 1, 0], sizes = [16, 15, 4], strides = [1, 1, 1]} : vector<16x16x4xf32> to vector<16x15x4xf32>
    %6 = tpu.concatenate %5, %2 in 1 : vector<16x15x4xf32>, vector<16x1x4xf32> -> vector<16x16x4xf32>
    %7 = tpu.concatenate %4, %1, %6 in 2 : vector<16x16x4xf32>, vector<16x16x4xf32>, vector<16x16x4xf32> -> vector<16x16x12xf32>
    %cst_3 = arith.constant 0.000000e+00 : f32
    %8 = vector.broadcast %cst_3 : f32 to vector<1x16x12xf32>
    %9 = vector.extract_strided_slice %7 {offsets = [0, 0, 0], sizes = [15, 16, 12], strides = [1, 1, 1]} : vector<16x16x12xf32> to vector<15x16x12xf32>
    %10 = tpu.concatenate %8, %9 in 0 : vector<1x16x12xf32>, vector<15x16x12xf32> -> vector<16x16x12xf32>
    %11 = vector.extract_strided_slice %7 {offsets = [1, 0, 0], sizes = [15, 16, 12], strides = [1, 1, 1]} : vector<16x16x12xf32> to vector<15x16x12xf32>
    %12 = tpu.concatenate %11, %8 in 0 : vector<15x16x12xf32>, vector<1x16x12xf32> -> vector<16x16x12xf32>
    %13 = tpu.concatenate %10, %7, %12 in 2 : vector<16x16x12xf32>, vector<16x16x12xf32>, vector<16x16x12xf32> -> vector<16x16x36xf32>
    %c0_4 = arith.constant 0 : index
    %c0_5 = arith.constant 0 : index
    %c0_6 = arith.constant 0 : index
    %14 = vector.load %arg5[%c0_4, %c0_5, %c0_6] : memref<16x16x36xf32, #tpu.memory_space<vmem>>, vector<16x16x36xf32>
    tpu.vector_store %arg5[%c0_4, %c0_5, %c0_6], %13 {strides = array<i32>} : memref<16x16x36xf32, #tpu.memory_space<vmem>>, vector<16x16x36xf32>,
    %c0_7 = arith.constant 0 : index
    %c0_8 = arith.constant 0 : index
    %15 = vector.load %arg2[%c0_7, %c0_8] : memref<36x4xf32, #tpu.memory_space<vmem>>, vector<36x4xf32>
    %cst_9 = arith.constant 0.000000e+00 : f32
    %16 = vector.broadcast %cst_9 : f32 to vector<1x4xf32>
    %c0_i32 = arith.constant 0 : i32
    %c8_i32 = arith.constant 8 : i32
    %17 = arith.muli %c0_i32, %c8_i32 : i32
    %18 = tpu.assume_multiple %17, 8 : i32
    %c128_i32 = arith.constant 128 : i32
    %19 = arith.muli %c0_i32, %c128_i32 : i32
    %20 = tpu.assume_multiple %19, 128 : i32
    %21 = arith.index_cast %18 : i32 to index
    %c0_10 = arith.constant 0 : index
    %c0_11 = arith.constant 0 : index
    %22 = vector.load %arg5[%21, %c0_10, %c0_11] : memref<16x16x36xf32, #tpu.memory_space<vmem>>, vector<8x16x36xf32>
    %23 = vector.shape_cast %22 : vector<8x16x36xf32> to vector<128x36xf32>
    %cst_12 = arith.constant dense<0.000000e+00> : vector<128x4xf32>
    %24 = tpu.matmul %23, %15, %cst_12 {dimension_numbers = #tpu.dot_dimension_numbers<[1], [0], [0], [1], [0, 0, 1, 1], [], []>} : vector<128x36xf32>, vector<36x4xf32>, vector<128x4xf32> -> vector<128x4xf32>
    %c0_13 = arith.constant 0 : index
    %25 = arith.index_cast %20 : i32 to index
    %c0_14 = arith.constant 0 : index
    %26 = vector.load %arg3[%c0_13, %25, %c0_14] : memref<1x256x4xf32, #tpu.memory_space<vmem>>, vector<1x128x4xf32>
    %27 = vector.shape_cast %26 : vector<1x128x4xf32> to vector<128x4xf32>
    %28 = vector.shape_cast %24 : vector<128x4xf32> to vector<1x128x4xf32>
    tpu.vector_store %arg3[%c0_13, %25, %c0_14], %28 {strides = array<i32>} : memref<1x256x4xf32, #tpu.memory_space<vmem>>, vector<1x128x4xf32>,
    %cst_15 = arith.constant dense<0.000000e+00> : vector<4xf32>
    %29 = vector.multi_reduction <add>, %24, %cst_15 [0] : vector<128x4xf32> to vector<4xf32>
    %30 = vector.shape_cast %29 : vector<4xf32> to vector<1x4xf32>
    %31 = arith.addf %16, %30 : vector<1x4xf32>
    %32 = arith.mulf %24, %24 : vector<128x4xf32>
    %cst_16 = arith.constant dense<0.000000e+00> : vector<4xf32>
    %33 = vector.multi_reduction <add>, %32, %cst_16 [0] : vector<128x4xf32> to vector<4xf32>
    %34 = vector.shape_cast %33 : vector<4xf32> to vector<1x4xf32>
    %35 = arith.addf %16, %34 : vector<1x4xf32>
    %c1_i32 = arith.constant 1 : i32
    %c8_i32_17 = arith.constant 8 : i32
    %36 = arith.muli %c1_i32, %c8_i32_17 : i32
    %37 = tpu.assume_multiple %36, 8 : i32
    %c128_i32_18 = arith.constant 128 : i32
    %38 = arith.muli %c1_i32, %c128_i32_18 : i32
    %39 = tpu.assume_multiple %38, 128 : i32
    %40 = arith.index_cast %37 : i32 to index
    %c0_19 = arith.constant 0 : index
    %c0_20 = arith.constant 0 : index
    %41 = vector.load %arg5[%40, %c0_19, %c0_20] : memref<16x16x36xf32, #tpu.memory_space<vmem>>, vector<8x16x36xf32>
    %42 = vector.shape_cast %41 : vector<8x16x36xf32> to vector<128x36xf32>
    %cst_21 = arith.constant dense<0.000000e+00> : vector<128x4xf32>
    %43 = tpu.matmul %42, %15, %cst_21 {dimension_numbers = #tpu.dot_dimension_numbers<[1], [0], [0], [1], [0, 0, 1, 1], [], []>} : vector<128x36xf32>, vector<36x4xf32>, vector<128x4xf32> -> vector<128x4xf32>
    %c0_22 = arith.constant 0 : index
    %44 = arith.index_cast %39 : i32 to index
    %c0_23 = arith.constant 0 : index
    %45 = vector.load %arg3[%c0_22, %44, %c0_23] : memref<1x256x4xf32, #tpu.memory_space<vmem>>, vector<1x128x4xf32>
    %46 = vector.shape_cast %45 : vector<1x128x4xf32> to vector<128x4xf32>
    %47 = vector.shape_cast %43 : vector<128x4xf32> to vector<1x128x4xf32>
    tpu.vector_store %arg3[%c0_22, %44, %c0_23], %47 {strides = array<i32>} : memref<1x256x4xf32, #tpu.memory_space<vmem>>, vector<1x128x4xf32>,
    %cst_24 = arith.constant dense<0.000000e+00> : vector<4xf32>
    %48 = vector.multi_reduction <add>, %43, %cst_24 [0] : vector<128x4xf32> to vector<4xf32>
    %49 = vector.shape_cast %48 : vector<4xf32> to vector<1x4xf32>
    %50 = arith.addf %31, %49 : vector<1x4xf32>
    %51 = arith.mulf %43, %43 : vector<128x4xf32>
    %cst_25 = arith.constant dense<0.000000e+00> : vector<4xf32>
    %52 = vector.multi_reduction <add>, %51, %cst_25 [0] : vector<128x4xf32> to vector<4xf32>
    %53 = vector.shape_cast %52 : vector<4xf32> to vector<1x4xf32>
    %54 = arith.addf %35, %53 : vector<1x4xf32>
    %c2_i32 = arith.constant 2 : i32
    %55 = tpu.concatenate %50, %54 in 0 : vector<1x4xf32>, vector<1x4xf32> -> vector<2x4xf32>
    %c0_26 = arith.constant 0 : index
    %c0_27 = arith.constant 0 : index
    %c0_28 = arith.constant 0 : index
    %56 = vector.load %arg4[%c0_26, %c0_27, %c0_28] : memref<1x2x4xf32, #tpu.memory_space<vmem>>, vector<1x2x4xf32>
    %57 = vector.shape_cast %56 : vector<1x2x4xf32> to vector<2x4xf32>
    %58 = vector.shape_cast %55 : vector<2x4xf32> to vector<1x2x4xf32>
    tpu.vector_store %arg4[%c0_26, %c0_27, %c0_28], %58 {strides = array<i32>} : memref<1x2x4xf32, #tpu.memory_space<vmem>>, vector<1x2x4xf32>,
    return
  }
  func.func @transform_0(%arg0: i32) -> (i32, i32, i32, i32) {
    %c0_i32 = arith.constant 0 : i32
    %c0_i32_0 = arith.constant 0 : i32
    %c0_i32_1 = arith.constant 0 : i32
    %c0_i32_2 = arith.constant 0 : i32
    return %arg0, %c0_i32, %c0_i32_0, %c0_i32_1 : i32, i32, i32, i32
  }
  func.func @transform_1(%arg0: i32) -> (i32, i32) {
    %c0_i32 = arith.constant 0 : i32
    %c0_i32_0 = arith.constant 0 : i32
    %c0_i32_1 = arith.constant 0 : i32
    return %c0_i32, %c0_i32_0 : i32, i32
  }
  func.func @transform_2(%arg0: i32) -> (i32, i32, i32) {
    %c0_i32 = arith.constant 0 : i32
    %c0_i32_0 = arith.constant 0 : i32
    %c0_i32_1 = arith.constant 0 : i32
    return %arg0, %c0_i32, %c0_i32_0 : i32, i32, i32
  }
  func.func @transform_3(%arg0: i32) -> (i32, i32, i32) {
    %c0_i32 = arith.constant 0 : i32
    %c0_i32_0 = arith.constant 0 : i32
    %c0_i32_1 = arith.constant 0 : i32
    return %arg0, %c0_i32, %c0_i32_0 : i32, i32, i32
  }
}

module attributes {stable_mosaic.version = 11 : i64} {
  func.func @_bn_relu_conv2_stats_kernel(%arg0: i32, %arg1: memref<1x256x4xf32, #tpu.memory_space<vmem>>, %arg2: memref<1x4xf32, #tpu.memory_space<vmem>>, %arg3: memref<1x4xf32, #tpu.memory_space<vmem>>, %arg4: memref<36x4xf32, #tpu.memory_space<vmem>>, %arg5: memref<1x256x4xf32, #tpu.memory_space<vmem>>, %arg6: memref<1x2x4xf32, #tpu.memory_space<vmem>>, %arg7: memref<16x16x4xf32, #tpu.memory_space<vmem>>, %arg8: memref<16x16x36xf32, #tpu.memory_space<vmem>>) attributes {dimension_semantics = [#tpu.dimension_semantics<parallel>], iteration_bounds = array<i64: 2>, scalar_prefetch = 0 : i64, scratch_operands = 2 : i64, tpu.core_type = #tpu.core_type<tc>, window_params = [{transform_indices = @transform_0, window_bounds = array<i64: 1, 256, 4>}, {pipeline_mode = #tpu.pipeline_mode<synchronous>, transform_indices = @transform_1, window_bounds = array<i64: 1, 4>}, {pipeline_mode = #tpu.pipeline_mode<synchronous>, transform_indices = @transform_2, window_bounds = array<i64: 1, 4>}, {pipeline_mode = #tpu.pipeline_mode<synchronous>, transform_indices = @transform_3, window_bounds = array<i64: 36, 4>}, {transform_indices = @transform_4, window_bounds = array<i64: 1, 256, 4>}, {transform_indices = @transform_5, window_bounds = array<i64: 1, 2, 4>}]} {
    %c0 = arith.constant 0 : index
    %c0_0 = arith.constant 0 : index
    %0 = vector.load %arg2[%c0, %c0_0] : memref<1x4xf32, #tpu.memory_space<vmem>>, vector<1x4xf32>
    %c0_1 = arith.constant 0 : index
    %c0_2 = arith.constant 0 : index
    %1 = vector.load %arg3[%c0_1, %c0_2] : memref<1x4xf32, #tpu.memory_space<vmem>>, vector<1x4xf32>
    %c0_i32 = arith.constant 0 : i32
    %c8_i32 = arith.constant 8 : i32
    %2 = arith.muli %c0_i32, %c8_i32 : i32
    %3 = tpu.assume_multiple %2, 8 : i32
    %c128_i32 = arith.constant 128 : i32
    %4 = arith.muli %c0_i32, %c128_i32 : i32
    %5 = tpu.assume_multiple %4, 128 : i32
    %c0_3 = arith.constant 0 : index
    %6 = arith.index_cast %5 : i32 to index
    %c0_4 = arith.constant 0 : index
    %7 = vector.load %arg1[%c0_3, %6, %c0_4] : memref<1x256x4xf32, #tpu.memory_space<vmem>>, vector<1x128x4xf32>
    %8 = vector.shape_cast %7 : vector<1x128x4xf32> to vector<128x4xf32>
    %9 = vector.broadcast %0 : vector<1x4xf32> to vector<128x4xf32>
    %10 = arith.mulf %8, %9 : vector<128x4xf32>
    %11 = vector.broadcast %1 : vector<1x4xf32> to vector<128x4xf32>
    %12 = arith.addf %10, %11 : vector<128x4xf32>
    %cst = arith.constant 0.000000e+00 : f32
    %13 = vector.broadcast %cst : f32 to vector<128x4xf32>
    %14 = arith.maximumf %12, %13 : vector<128x4xf32>
    %15 = vector.shape_cast %14 : vector<128x4xf32> to vector<8x16x4xf32>
    %16 = arith.index_cast %3 : i32 to index
    %c0_5 = arith.constant 0 : index
    %c0_6 = arith.constant 0 : index
    %17 = vector.load %arg7[%16, %c0_5, %c0_6] : memref<16x16x4xf32, #tpu.memory_space<vmem>>, vector<8x16x4xf32>
    tpu.vector_store %arg7[%16, %c0_5, %c0_6], %15 {strides = array<i32>} : memref<16x16x4xf32, #tpu.memory_space<vmem>>, vector<8x16x4xf32>,
    %c1_i32 = arith.constant 1 : i32
    %c8_i32_7 = arith.constant 8 : i32
    %18 = arith.muli %c1_i32, %c8_i32_7 : i32
    %19 = tpu.assume_multiple %18, 8 : i32
    %c128_i32_8 = arith.constant 128 : i32
    %20 = arith.muli %c1_i32, %c128_i32_8 : i32
    %21 = tpu.assume_multiple %20, 128 : i32
    %c0_9 = arith.constant 0 : index
    %22 = arith.index_cast %21 : i32 to index
    %c0_10 = arith.constant 0 : index
    %23 = vector.load %arg1[%c0_9, %22, %c0_10] : memref<1x256x4xf32, #tpu.memory_space<vmem>>, vector<1x128x4xf32>
    %24 = vector.shape_cast %23 : vector<1x128x4xf32> to vector<128x4xf32>
    %25 = vector.broadcast %0 : vector<1x4xf32> to vector<128x4xf32>
    %26 = arith.mulf %24, %25 : vector<128x4xf32>
    %27 = vector.broadcast %1 : vector<1x4xf32> to vector<128x4xf32>
    %28 = arith.addf %26, %27 : vector<128x4xf32>
    %cst_11 = arith.constant 0.000000e+00 : f32
    %29 = vector.broadcast %cst_11 : f32 to vector<128x4xf32>
    %30 = arith.maximumf %28, %29 : vector<128x4xf32>
    %31 = vector.shape_cast %30 : vector<128x4xf32> to vector<8x16x4xf32>
    %32 = arith.index_cast %19 : i32 to index
    %c0_12 = arith.constant 0 : index
    %c0_13 = arith.constant 0 : index
    %33 = vector.load %arg7[%32, %c0_12, %c0_13] : memref<16x16x4xf32, #tpu.memory_space<vmem>>, vector<8x16x4xf32>
    tpu.vector_store %arg7[%32, %c0_12, %c0_13], %31 {strides = array<i32>} : memref<16x16x4xf32, #tpu.memory_space<vmem>>, vector<8x16x4xf32>,
    %c2_i32 = arith.constant 2 : i32
    %c0_14 = arith.constant 0 : index
    %c0_15 = arith.constant 0 : index
    %c0_16 = arith.constant 0 : index
    %34 = vector.load %arg7[%c0_14, %c0_15, %c0_16] : memref<16x16x4xf32, #tpu.memory_space<vmem>>, vector<16x16x4xf32>
    %cst_17 = arith.constant 0.000000e+00 : f32
    %35 = vector.broadcast %cst_17 : f32 to vector<16x1x4xf32>
    %36 = vector.extract_strided_slice %34 {offsets = [0, 0, 0], sizes = [16, 15, 4], strides = [1, 1, 1]} : vector<16x16x4xf32> to vector<16x15x4xf32>
    %37 = tpu.concatenate %35, %36 in 1 : vector<16x1x4xf32>, vector<16x15x4xf32> -> vector<16x16x4xf32>
    %38 = vector.extract_strided_slice %34 {offsets = [0, 1, 0], sizes = [16, 15, 4], strides = [1, 1, 1]} : vector<16x16x4xf32> to vector<16x15x4xf32>
    %39 = tpu.concatenate %38, %35 in 1 : vector<16x15x4xf32>, vector<16x1x4xf32> -> vector<16x16x4xf32>
    %40 = tpu.concatenate %37, %34, %39 in 2 : vector<16x16x4xf32>, vector<16x16x4xf32>, vector<16x16x4xf32> -> vector<16x16x12xf32>
    %cst_18 = arith.constant 0.000000e+00 : f32
    %41 = vector.broadcast %cst_18 : f32 to vector<1x16x12xf32>
    %42 = vector.extract_strided_slice %40 {offsets = [0, 0, 0], sizes = [15, 16, 12], strides = [1, 1, 1]} : vector<16x16x12xf32> to vector<15x16x12xf32>
    %43 = tpu.concatenate %41, %42 in 0 : vector<1x16x12xf32>, vector<15x16x12xf32> -> vector<16x16x12xf32>
    %44 = vector.extract_strided_slice %40 {offsets = [1, 0, 0], sizes = [15, 16, 12], strides = [1, 1, 1]} : vector<16x16x12xf32> to vector<15x16x12xf32>
    %45 = tpu.concatenate %44, %41 in 0 : vector<15x16x12xf32>, vector<1x16x12xf32> -> vector<16x16x12xf32>
    %46 = tpu.concatenate %43, %40, %45 in 2 : vector<16x16x12xf32>, vector<16x16x12xf32>, vector<16x16x12xf32> -> vector<16x16x36xf32>
    %c0_19 = arith.constant 0 : index
    %c0_20 = arith.constant 0 : index
    %c0_21 = arith.constant 0 : index
    %47 = vector.load %arg8[%c0_19, %c0_20, %c0_21] : memref<16x16x36xf32, #tpu.memory_space<vmem>>, vector<16x16x36xf32>
    tpu.vector_store %arg8[%c0_19, %c0_20, %c0_21], %46 {strides = array<i32>} : memref<16x16x36xf32, #tpu.memory_space<vmem>>, vector<16x16x36xf32>,
    %c0_22 = arith.constant 0 : index
    %c0_23 = arith.constant 0 : index
    %48 = vector.load %arg4[%c0_22, %c0_23] : memref<36x4xf32, #tpu.memory_space<vmem>>, vector<36x4xf32>
    %cst_24 = arith.constant 0.000000e+00 : f32
    %49 = vector.broadcast %cst_24 : f32 to vector<1x4xf32>
    %c0_i32_25 = arith.constant 0 : i32
    %c8_i32_26 = arith.constant 8 : i32
    %50 = arith.muli %c0_i32_25, %c8_i32_26 : i32
    %51 = tpu.assume_multiple %50, 8 : i32
    %c128_i32_27 = arith.constant 128 : i32
    %52 = arith.muli %c0_i32_25, %c128_i32_27 : i32
    %53 = tpu.assume_multiple %52, 128 : i32
    %54 = arith.index_cast %51 : i32 to index
    %c0_28 = arith.constant 0 : index
    %c0_29 = arith.constant 0 : index
    %55 = vector.load %arg8[%54, %c0_28, %c0_29] : memref<16x16x36xf32, #tpu.memory_space<vmem>>, vector<8x16x36xf32>
    %56 = vector.shape_cast %55 : vector<8x16x36xf32> to vector<128x36xf32>
    %cst_30 = arith.constant dense<0.000000e+00> : vector<128x4xf32>
    %57 = tpu.matmul %56, %48, %cst_30 {dimension_numbers = #tpu.dot_dimension_numbers<[1], [0], [0], [1], [0, 0, 1, 1], [], []>} : vector<128x36xf32>, vector<36x4xf32>, vector<128x4xf32> -> vector<128x4xf32>
    %c0_31 = arith.constant 0 : index
    %58 = arith.index_cast %53 : i32 to index
    %c0_32 = arith.constant 0 : index
    %59 = vector.load %arg5[%c0_31, %58, %c0_32] : memref<1x256x4xf32, #tpu.memory_space<vmem>>, vector<1x128x4xf32>
    %60 = vector.shape_cast %59 : vector<1x128x4xf32> to vector<128x4xf32>
    %61 = vector.shape_cast %57 : vector<128x4xf32> to vector<1x128x4xf32>
    tpu.vector_store %arg5[%c0_31, %58, %c0_32], %61 {strides = array<i32>} : memref<1x256x4xf32, #tpu.memory_space<vmem>>, vector<1x128x4xf32>,
    %cst_33 = arith.constant dense<0.000000e+00> : vector<4xf32>
    %62 = vector.multi_reduction <add>, %57, %cst_33 [0] : vector<128x4xf32> to vector<4xf32>
    %63 = vector.shape_cast %62 : vector<4xf32> to vector<1x4xf32>
    %64 = arith.addf %49, %63 : vector<1x4xf32>
    %65 = arith.mulf %57, %57 : vector<128x4xf32>
    %cst_34 = arith.constant dense<0.000000e+00> : vector<4xf32>
    %66 = vector.multi_reduction <add>, %65, %cst_34 [0] : vector<128x4xf32> to vector<4xf32>
    %67 = vector.shape_cast %66 : vector<4xf32> to vector<1x4xf32>
    %68 = arith.addf %49, %67 : vector<1x4xf32>
    %c1_i32_35 = arith.constant 1 : i32
    %c8_i32_36 = arith.constant 8 : i32
    %69 = arith.muli %c1_i32_35, %c8_i32_36 : i32
    %70 = tpu.assume_multiple %69, 8 : i32
    %c128_i32_37 = arith.constant 128 : i32
    %71 = arith.muli %c1_i32_35, %c128_i32_37 : i32
    %72 = tpu.assume_multiple %71, 128 : i32
    %73 = arith.index_cast %70 : i32 to index
    %c0_38 = arith.constant 0 : index
    %c0_39 = arith.constant 0 : index
    %74 = vector.load %arg8[%73, %c0_38, %c0_39] : memref<16x16x36xf32, #tpu.memory_space<vmem>>, vector<8x16x36xf32>
    %75 = vector.shape_cast %74 : vector<8x16x36xf32> to vector<128x36xf32>
    %cst_40 = arith.constant dense<0.000000e+00> : vector<128x4xf32>
    %76 = tpu.matmul %75, %48, %cst_40 {dimension_numbers = #tpu.dot_dimension_numbers<[1], [0], [0], [1], [0, 0, 1, 1], [], []>} : vector<128x36xf32>, vector<36x4xf32>, vector<128x4xf32> -> vector<128x4xf32>
    %c0_41 = arith.constant 0 : index
    %77 = arith.index_cast %72 : i32 to index
    %c0_42 = arith.constant 0 : index
    %78 = vector.load %arg5[%c0_41, %77, %c0_42] : memref<1x256x4xf32, #tpu.memory_space<vmem>>, vector<1x128x4xf32>
    %79 = vector.shape_cast %78 : vector<1x128x4xf32> to vector<128x4xf32>
    %80 = vector.shape_cast %76 : vector<128x4xf32> to vector<1x128x4xf32>
    tpu.vector_store %arg5[%c0_41, %77, %c0_42], %80 {strides = array<i32>} : memref<1x256x4xf32, #tpu.memory_space<vmem>>, vector<1x128x4xf32>,
    %cst_43 = arith.constant dense<0.000000e+00> : vector<4xf32>
    %81 = vector.multi_reduction <add>, %76, %cst_43 [0] : vector<128x4xf32> to vector<4xf32>
    %82 = vector.shape_cast %81 : vector<4xf32> to vector<1x4xf32>
    %83 = arith.addf %64, %82 : vector<1x4xf32>
    %84 = arith.mulf %76, %76 : vector<128x4xf32>
    %cst_44 = arith.constant dense<0.000000e+00> : vector<4xf32>
    %85 = vector.multi_reduction <add>, %84, %cst_44 [0] : vector<128x4xf32> to vector<4xf32>
    %86 = vector.shape_cast %85 : vector<4xf32> to vector<1x4xf32>
    %87 = arith.addf %68, %86 : vector<1x4xf32>
    %c2_i32_45 = arith.constant 2 : i32
    %88 = tpu.concatenate %83, %87 in 0 : vector<1x4xf32>, vector<1x4xf32> -> vector<2x4xf32>
    %c0_46 = arith.constant 0 : index
    %c0_47 = arith.constant 0 : index
    %c0_48 = arith.constant 0 : index
    %89 = vector.load %arg6[%c0_46, %c0_47, %c0_48] : memref<1x2x4xf32, #tpu.memory_space<vmem>>, vector<1x2x4xf32>
    %90 = vector.shape_cast %89 : vector<1x2x4xf32> to vector<2x4xf32>
    %91 = vector.shape_cast %88 : vector<2x4xf32> to vector<1x2x4xf32>
    tpu.vector_store %arg6[%c0_46, %c0_47, %c0_48], %91 {strides = array<i32>} : memref<1x2x4xf32, #tpu.memory_space<vmem>>, vector<1x2x4xf32>,
    return
  }
  func.func @transform_0(%arg0: i32) -> (i32, i32, i32) {
    %c0_i32 = arith.constant 0 : i32
    %c0_i32_0 = arith.constant 0 : i32
    %c0_i32_1 = arith.constant 0 : i32
    return %arg0, %c0_i32, %c0_i32_0 : i32, i32, i32
  }
  func.func @transform_1(%arg0: i32) -> (i32, i32) {
    %c0_i32 = arith.constant 0 : i32
    %c0_i32_0 = arith.constant 0 : i32
    %c0_i32_1 = arith.constant 0 : i32
    return %c0_i32, %c0_i32_0 : i32, i32
  }
  func.func @transform_2(%arg0: i32) -> (i32, i32) {
    %c0_i32 = arith.constant 0 : i32
    %c0_i32_0 = arith.constant 0 : i32
    %c0_i32_1 = arith.constant 0 : i32
    return %c0_i32, %c0_i32_0 : i32, i32
  }
  func.func @transform_3(%arg0: i32) -> (i32, i32) {
    %c0_i32 = arith.constant 0 : i32
    %c0_i32_0 = arith.constant 0 : i32
    %c0_i32_1 = arith.constant 0 : i32
    return %c0_i32, %c0_i32_0 : i32, i32
  }
  func.func @transform_4(%arg0: i32) -> (i32, i32, i32) {
    %c0_i32 = arith.constant 0 : i32
    %c0_i32_0 = arith.constant 0 : i32
    %c0_i32_1 = arith.constant 0 : i32
    return %arg0, %c0_i32, %c0_i32_0 : i32, i32, i32
  }
  func.func @transform_5(%arg0: i32) -> (i32, i32, i32) {
    %c0_i32 = arith.constant 0 : i32
    %c0_i32_0 = arith.constant 0 : i32
    %c0_i32_1 = arith.constant 0 : i32
    return %arg0, %c0_i32, %c0_i32_0 : i32, i32, i32
  }
}

module attributes {stable_mosaic.version = 11 : i64} {
  func.func @_bn_skip_relu_kernel(%arg0: i32, %arg1: memref<1x256x4xf32, #tpu.memory_space<vmem>>, %arg2: memref<1x256x4xf32, #tpu.memory_space<vmem>>, %arg3: memref<1x4xf32, #tpu.memory_space<vmem>>, %arg4: memref<1x4xf32, #tpu.memory_space<vmem>>, %arg5: memref<1x256x4xf32, #tpu.memory_space<vmem>>) attributes {dimension_semantics = [#tpu.dimension_semantics<parallel>], iteration_bounds = array<i64: 2>, scalar_prefetch = 0 : i64, scratch_operands = 0 : i64, tpu.core_type = #tpu.core_type<tc>, window_params = [{transform_indices = @transform_0, window_bounds = array<i64: 1, 256, 4>}, {transform_indices = @transform_1, window_bounds = array<i64: 1, 256, 4>}, {pipeline_mode = #tpu.pipeline_mode<synchronous>, transform_indices = @transform_2, window_bounds = array<i64: 1, 4>}, {pipeline_mode = #tpu.pipeline_mode<synchronous>, transform_indices = @transform_3, window_bounds = array<i64: 1, 4>}, {transform_indices = @transform_4, window_bounds = array<i64: 1, 256, 4>}]} {
    %c0 = arith.constant 0 : index
    %c0_0 = arith.constant 0 : index
    %0 = vector.load %arg3[%c0, %c0_0] : memref<1x4xf32, #tpu.memory_space<vmem>>, vector<1x4xf32>
    %c0_1 = arith.constant 0 : index
    %c0_2 = arith.constant 0 : index
    %1 = vector.load %arg4[%c0_1, %c0_2] : memref<1x4xf32, #tpu.memory_space<vmem>>, vector<1x4xf32>
    %c0_i32 = arith.constant 0 : i32
    %c128_i32 = arith.constant 128 : i32
    %2 = arith.muli %c0_i32, %c128_i32 : i32
    %3 = tpu.assume_multiple %2, 128 : i32
    %c0_3 = arith.constant 0 : index
    %4 = arith.index_cast %3 : i32 to index
    %c0_4 = arith.constant 0 : index
    %5 = vector.load %arg1[%c0_3, %4, %c0_4] : memref<1x256x4xf32, #tpu.memory_space<vmem>>, vector<1x128x4xf32>
    %6 = vector.shape_cast %5 : vector<1x128x4xf32> to vector<128x4xf32>
    %7 = vector.broadcast %0 : vector<1x4xf32> to vector<128x4xf32>
    %8 = arith.mulf %6, %7 : vector<128x4xf32>
    %9 = vector.broadcast %1 : vector<1x4xf32> to vector<128x4xf32>
    %10 = arith.addf %8, %9 : vector<128x4xf32>
    %c0_5 = arith.constant 0 : index
    %11 = arith.index_cast %3 : i32 to index
    %c0_6 = arith.constant 0 : index
    %12 = vector.load %arg2[%c0_5, %11, %c0_6] : memref<1x256x4xf32, #tpu.memory_space<vmem>>, vector<1x128x4xf32>
    %13 = vector.shape_cast %12 : vector<1x128x4xf32> to vector<128x4xf32>
    %14 = arith.addf %10, %13 : vector<128x4xf32>
    %cst = arith.constant 0.000000e+00 : f32
    %15 = vector.broadcast %cst : f32 to vector<128x4xf32>
    %16 = arith.maximumf %14, %15 : vector<128x4xf32>
    %c0_7 = arith.constant 0 : index
    %17 = arith.index_cast %3 : i32 to index
    %c0_8 = arith.constant 0 : index
    %18 = vector.load %arg5[%c0_7, %17, %c0_8] : memref<1x256x4xf32, #tpu.memory_space<vmem>>, vector<1x128x4xf32>
    %19 = vector.shape_cast %18 : vector<1x128x4xf32> to vector<128x4xf32>
    %20 = vector.shape_cast %16 : vector<128x4xf32> to vector<1x128x4xf32>
    tpu.vector_store %arg5[%c0_7, %17, %c0_8], %20 {strides = array<i32>} : memref<1x256x4xf32, #tpu.memory_space<vmem>>, vector<1x128x4xf32>,
    %c1_i32 = arith.constant 1 : i32
    %c128_i32_9 = arith.constant 128 : i32
    %21 = arith.muli %c1_i32, %c128_i32_9 : i32
    %22 = tpu.assume_multiple %21, 128 : i32
    %c0_10 = arith.constant 0 : index
    %23 = arith.index_cast %22 : i32 to index
    %c0_11 = arith.constant 0 : index
    %24 = vector.load %arg1[%c0_10, %23, %c0_11] : memref<1x256x4xf32, #tpu.memory_space<vmem>>, vector<1x128x4xf32>
    %25 = vector.shape_cast %24 : vector<1x128x4xf32> to vector<128x4xf32>
    %26 = vector.broadcast %0 : vector<1x4xf32> to vector<128x4xf32>
    %27 = arith.mulf %25, %26 : vector<128x4xf32>
    %28 = vector.broadcast %1 : vector<1x4xf32> to vector<128x4xf32>
    %29 = arith.addf %27, %28 : vector<128x4xf32>
    %c0_12 = arith.constant 0 : index
    %30 = arith.index_cast %22 : i32 to index
    %c0_13 = arith.constant 0 : index
    %31 = vector.load %arg2[%c0_12, %30, %c0_13] : memref<1x256x4xf32, #tpu.memory_space<vmem>>, vector<1x128x4xf32>
    %32 = vector.shape_cast %31 : vector<1x128x4xf32> to vector<128x4xf32>
    %33 = arith.addf %29, %32 : vector<128x4xf32>
    %cst_14 = arith.constant 0.000000e+00 : f32
    %34 = vector.broadcast %cst_14 : f32 to vector<128x4xf32>
    %35 = arith.maximumf %33, %34 : vector<128x4xf32>
    %c0_15 = arith.constant 0 : index
    %36 = arith.index_cast %22 : i32 to index
    %c0_16 = arith.constant 0 : index
    %37 = vector.load %arg5[%c0_15, %36, %c0_16] : memref<1x256x4xf32, #tpu.memory_space<vmem>>, vector<1x128x4xf32>
    %38 = vector.shape_cast %37 : vector<1x128x4xf32> to vector<128x4xf32>
    %39 = vector.shape_cast %35 : vector<128x4xf32> to vector<1x128x4xf32>
    tpu.vector_store %arg5[%c0_15, %36, %c0_16], %39 {strides = array<i32>} : memref<1x256x4xf32, #tpu.memory_space<vmem>>, vector<1x128x4xf32>,
    %c2_i32 = arith.constant 2 : i32
    return
  }
  func.func @transform_0(%arg0: i32) -> (i32, i32, i32) {
    %c0_i32 = arith.constant 0 : i32
    %c0_i32_0 = arith.constant 0 : i32
    %c0_i32_1 = arith.constant 0 : i32
    return %arg0, %c0_i32, %c0_i32_0 : i32, i32, i32
  }
  func.func @transform_1(%arg0: i32) -> (i32, i32, i32) {
    %c0_i32 = arith.constant 0 : i32
    %c0_i32_0 = arith.constant 0 : i32
    %c0_i32_1 = arith.constant 0 : i32
    return %arg0, %c0_i32, %c0_i32_0 : i32, i32, i32
  }
  func.func @transform_2(%arg0: i32) -> (i32, i32) {
    %c0_i32 = arith.constant 0 : i32
    %c0_i32_0 = arith.constant 0 : i32
    %c0_i32_1 = arith.constant 0 : i32
    return %c0_i32, %c0_i32_0 : i32, i32
  }
  func.func @transform_3(%arg0: i32) -> (i32, i32) {
    %c0_i32 = arith.constant 0 : i32
    %c0_i32_0 = arith.constant 0 : i32
    %c0_i32_1 = arith.constant 0 : i32
    return %c0_i32, %c0_i32_0 : i32, i32
  }
  func.func @transform_4(%arg0: i32) -> (i32, i32, i32) {
    %c0_i32 = arith.constant 0 : i32
    %c0_i32_0 = arith.constant 0 : i32
    %c0_i32_1 = arith.constant 0 : i32
    return %arg0, %c0_i32, %c0_i32_0 : i32, i32, i32
  }
}

</mosaic_0001>

<llo_original>
// kernel: residual_forward.5
$region0: #{residual_forward.5}
  #allocation0 [shape = 'u32[]', space=smem, size = 0x4, offset = 0x4, fixed_abs, tag = 'smem constant byte address 0x4 - core index']
  #allocation1 [shape = 'u32[72,128]{1,0:T(1,128)}', space=vmem, size = 0x9000, scoped, tag = 'internal scratch']
  %s0 = inlined_call_operand.vmem [shape: f32[2,256,4], index: 0, kind: input, shape index: {}]
  %s1 = inlined_call_operand.vmem [shape: f32[2,256,4], index: 1, kind: input, shape index: {}]
  %s2 = inlined_call_operand.vmem [shape: f32[1,4], index: 2, kind: input, shape index: {}]
  %s3 = inlined_call_operand.vmem [shape: f32[1,4], index: 3, kind: input, shape index: {}]
  %s4 = inlined_call_operand.vmem [shape: f32[2,256,4], index: 4, kind: output, shape index: {}]
  %s5 = sld [smem:[#allocation0]]
  $region49: #{residual_forward.5} parent=0
    _
  %s7 = ssub.s32 1, %s5
  %s8 = scalar_select 0, %s7, %s5
  loop: start=0, step=1, limit=4
  $region2: #{residual_forward.5} parent=0 // loop_pre_header
    _
  $region3: #{residual_forward.5} parent=0 // loop_header
    %s10 = sphi 0, %s14
    %p11 = scmp.ge.s32.totalorder %s10, 4
    %s20 = sphi 0, %s22
    %s23 = sphi 0, %s20
    %s24 = sphi 0, %s23
    %s40 = sphi 0, %s24
    %s46 = sphi 0, %s48
    %s49 = sphi 0, %s46
    %s50 = sphi 0, %s49
    %s66 = sphi 0, %s50
    %s70 = sphi 0, %s70
    %s72 = sphi 0, %s70
    %s73 = sphi 0, %s72
    %s87 = sphi 0, %s73
    %s91 = sphi 0, %s91
    %s93 = sphi 0, %s91
    %s94 = sphi 0, %s93
    %s108 = sphi 0, %s94
    %s114 = sphi 0, %s116
    %s117 = sphi 0, %s114
    %s118 = sphi 0, %s117
    %s134 = sphi 0, %s118
  $region4: #{residual_forward.5} parent=0 // loop_header_branch
    %13 = sbr.rel (%p11) target = $region8
  $region5: #{residual_forward.5} parent=0 // loop_body
    %s15 = ssub.s32 %s10, 1
    %s16 = ssub.s32 %s10, 2
    %s17 = sadd.s32 %s10, 1
    %s18 = ssub.s32 %s10, %s17
    %p19 = scmp.eq.s32.totalorder %s18, 0
    %s21 = sadd.s32 %s20, 1
    %s22 = scalar_select %p19, %s20, %s21
    %p25 = pneg %p19
    %p26 = scmp.eq.s32.totalorder %s10, 1
    %p27 = por %p25, %p26
    %p28 = scmp.ne.s32.totalorder %s20, %s23
    %p29 = scmp.eq.s32.totalorder %s10, 0
    %p30 = por %p28, %p29
    %p31 = scmp.ne.s32.totalorder %s20, %s23
    %p32 = scmp.eq.s32.totalorder %s15, 1
    %p33 = por %p31, %p32
    %p34 = scmp.ne.s32.totalorder %s23, %s24
    %p35 = scmp.eq.s32.totalorder %s15, 0
    %p36 = por %p34, %p35
    %p37 = scmp.ne.s32.totalorder %s23, %s24
    %p38 = scmp.eq.s32.totalorder %s16, 1
    %p39 = por %p37, %p38
    %p41 = scmp.ne.s32.totalorder %s24, %s40
    %p42 = scmp.eq.s32.totalorder %s16, 0
    %p43 = por %p41, %p42
    %s44 = ssub.s32 %s10, %s17
    %p45 = scmp.eq.s32.totalorder %s44, 0
    %s47 = sadd.s32 %s46, 1
    %s48 = scalar_select %p45, %s46, %s47
    %p51 = pneg %p45
    %p52 = scmp.eq.s32.totalorder %s10, 1
    %p53 = por %p51, %p52
    %p54 = scmp.ne.s32.totalorder %s46, %s49
    %p55 = scmp.eq.s32.totalorder %s10, 0
    %p56 = por %p54, %p55
    %p57 = scmp.ne.s32.totalorder %s46, %s49
    %p58 = scmp.eq.s32.totalorder %s15, 1
    %p59 = por %p57, %p58
    %p60 = scmp.ne.s32.totalorder %s49, %s50
    %p61 = scmp.eq.s32.totalorder %s15, 0
    %p62 = por %p60, %p61
    %p63 = scmp.ne.s32.totalorder %s49, %s50
    %p64 = scmp.eq.s32.totalorder %s16, 1
    %p65 = por %p63, %p64
    %p67 = scmp.ne.s32.totalorder %s50, %s66
    %p68 = scmp.eq.s32.totalorder %s16, 0
    %p69 = por %p67, %p68
    %s71 = sadd.s32 %s70, 1
    %p74 = scmp.eq.s32.totalorder %s10, 1
    %p75 = scmp.ne.s32.totalorder %s70, %s72
    %p76 = scmp.eq.s32.totalorder %s10, 0
    %p77 = por %p75, %p76
    %p78 = scmp.ne.s32.totalorder %s70, %s72
    %p79 = scmp.eq.s32.totalorder %s15, 1
    %p80 = por %p78, %p79
    %p81 = scmp.ne.s32.totalorder %s72, %s73
    %p82 = scmp.eq.s32.totalorder %s15, 0
    %p83 = por %p81, %p82
    %p84 = scmp.ne.s32.totalorder %s72, %s73
    %p85 = scmp.eq.s32.totalorder %s16, 1
    %p86 = por %p84, %p85
    %p88 = scmp.ne.s32.totalorder %s73, %s87
    %p89 = scmp.eq.s32.totalorder %s16, 0
    %p90 = por %p88, %p89
    %s92 = sadd.s32 %s91, 1
    %p95 = scmp.eq.s32.totalorder %s10, 1
    %p96 = scmp.ne.s32.totalorder %s91, %s93
    %p97 = scmp.eq.s32.totalorder %s10, 0
    %p98 = por %p96, %p97
    %p99 = scmp.ne.s32.totalorder %s91, %s93
    %p100 = scmp.eq.s32.totalorder %s15, 1
    %p101 = por %p99, %p100
    %p102 = scmp.ne.s32.totalorder %s93, %s94
    %p103 = scmp.eq.s32.totalorder %s15, 0
    %p104 = por %p102, %p103
    %p105 = scmp.ne.s32.totalorder %s93, %s94
    %p106 = scmp.eq.s32.totalorder %s16, 1
    %p107 = por %p105, %p106
    %p109 = scmp.ne.s32.totalorder %s94, %s108
    %p110 = scmp.eq.s32.totalorder %s16, 0
    %p111 = por %p109, %p110
    %s112 = ssub.s32 %s10, %s17
    %p113 = scmp.eq.s32.totalorder %s112, 0
    %s115 = sadd.s32 %s114, 1
    %s116 = scalar_select %p113, %s114, %s115
    %p119 = pneg %p113
    %p120 = scmp.eq.s32.totalorder %s10, 1
    %p121 = por %p119, %p120
    %p122 = scmp.ne.s32.totalorder %s114, %s117
    %p123 = scmp.eq.s32.totalorder %s10, 0
    %p124 = por %p122, %p123
    %p125 = scmp.ne.s32.totalorder %s114, %s117
    %p126 = scmp.eq.s32.totalorder %s15, 1
    %p127 = por %p125, %p126
    %p128 = scmp.ne.s32.totalorder %s117, %s118
    %p129 = scmp.eq.s32.totalorder %s15, 0
    %p130 = por %p128, %p129
    %p131 = scmp.ne.s32.totalorder %s117, %s118
    %p132 = scmp.eq.s32.totalorder %s16, 1
    %p133 = por %p131, %p132
    %p135 = scmp.ne.s32.totalorder %s118, %s134
    %p136 = scmp.eq.s32.totalorder %s16, 0
    %p137 = por %p135, %p136
    %p138 = scmp.le.s32.totalorder 1, %s10
    %p139 = scmp.lt.s32.totalorder %s10, 3
    %p140 = pnand %p138, %p139
    %p141 = pneg %p140
    // Predicated region
    $region9: #{residual_forward.5} parent=5 // pred_check
      _
    $region10: #{residual_forward.5} parent=5 // pred_check_branch
      %143 = sbr.rel (%p140) target = $region12
    $region11: #{residual_forward.5} parent=5 // pred_region
      %s144 = ssub.s32 %s10, 1
      // Predicated region
      $region13: #{residual_forward.5} parent=11 // pred_check
        %p145 = pneg %p83
      $region14: #{residual_forward.5} parent=11 // pred_check_branch
        %147 = sbr.rel (%p145) target = $region16
      $region15: #{residual_forward.5} parent=11 // pred_region
        _
      $region16: #{residual_forward.5} parent=11 // pred_fallthru
        _
      // Predicated region
      $region17: #{residual_forward.5} parent=11 // pred_check
        %p148 = pneg %p104
      $region18: #{residual_forward.5} parent=11 // pred_check_branch
        %150 = sbr.rel (%p148) target = $region20
      $region19: #{residual_forward.5} parent=11 // pred_region
        _
      $region20: #{residual_forward.5} parent=11 // pred_fallthru
        _
    $region12: #{residual_forward.5} parent=5 // pred_fallthru
      _
    %p151 = scmp.lt.s32.totalorder %s10, 2
    // Predicated region
    $region21: #{residual_forward.5} parent=5 // pred_check
      %p152 = pneg %p151
    $region22: #{residual_forward.5} parent=5 // pred_check_branch
      %154 = sbr.rel (%p152) target = $region24
    $region23: #{residual_forward.5} parent=5 // pred_region
      // Predicated region
      $region25: #{residual_forward.5} parent=23 // pred_check
        %p155 = pneg %p30
      $region26: #{residual_forward.5} parent=23 // pred_check_branch
        %157 = sbr.rel (%p155) target = $region28
      $region27: #{residual_forward.5} parent=23 // pred_region
        %p158 = scmp.lt.s32.totalorder %s10, 1
        %s159 = scalar_select %p158, %s10, 1
        %s160 = smul.addr %s159, 32
        %s161 = smul.addr %s160, 8
        %s162 = scalar_lea.vmem %s0, %s161
      $region28: #{residual_forward.5} parent=23 // pred_fallthru
        _
      // Predicated region
      $region29: #{residual_forward.5} parent=23 // pred_check
        %p163 = pneg %p56
      $region30: #{residual_forward.5} parent=23 // pred_check_branch
        %165 = sbr.rel (%p163) target = $region32
      $region31: #{residual_forward.5} parent=23 // pred_region
        %p166 = scmp.lt.s32.totalorder %s10, 1
        %s167 = scalar_select %p166, %s10, 1
        %s168 = smul.addr %s167, 32
        %s169 = smul.addr %s168, 8
        %s170 = scalar_lea.vmem %s1, %s169
      $region32: #{residual_forward.5} parent=23 // pred_fallthru
        _
    $region24: #{residual_forward.5} parent=5 // pred_fallthru
      _
    %p171 = scmp.le.s32.totalorder 1, %s10
    %p172 = scmp.lt.s32.totalorder %s10, 3
    %p173 = pnand %p171, %p172
    %p174 = pneg %p173
    // Predicated region
    $region33: #{residual_forward.5} parent=5 // pred_check
      _
    $region34: #{residual_forward.5} parent=5 // pred_check_branch
      %176 = sbr.rel (%p173) target = $region36
    $region35: #{residual_forward.5} parent=5 // pred_region
      %s177 = ssub.s32 %s10, 1
      %p178 = scmp.lt.s32.totalorder %s15, 1
      %s179 = scalar_select %p178, %s15, 1
      %s180 = smul.addr %s179, 32
      %s181 = smul.addr %s180, 8
      %s182 = scalar_lea.vmem %s0, %s181
      %p183 = pneg %p36
      %p184 = pneg %p33
      %p185 = scmp.lt.s32.totalorder %s15, 1
      %s186 = scalar_select %p185, %s15, 1
      %s187 = smul.addr %s186, 32
      %s188 = smul.addr %s187, 8
      %s189 = scalar_lea.vmem %s1, %s188
      %p190 = pneg %p62
      %p191 = pneg %p59
      %p192 = pneg %p83
      %p193 = pneg %p80
      %p194 = pneg %p104
      %p195 = pneg %p101
      %p196 = pneg %p130
      %p197 = pneg %p127
      %p198 = scmp.lt.s32.totalorder %s15, 1
      %s199 = scalar_select %p198, %s15, 1
      %s200 = smul.addr %s199, 32
      %s201 = smul.addr %s200, 8
      %s202 = scalar_lea.vmem %s4, %s201
      %p203 = scmp.lt.s32.totalorder %s15, 1
      %s204 = scalar_select %p203, %s15, 1
      %s205 = smul.addr %s204, 32
      %s206 = smul.addr %s205, 8
      %s207 = scalar_lea.vmem %s0, %s206
      %p208 = scmp.lt.s32.totalorder %s15, 1
      %s209 = scalar_select %p208, %s15, 1
      %s210 = smul.addr %s209, 32
      %s211 = smul.addr %s210, 8
      %s212 = scalar_lea.vmem %s1, %s211
      %p213 = scmp.lt.s32.totalorder %s15, 1
      %s214 = scalar_select %p213, %s15, 1
      %s215 = smul.addr %s214, 32
      %s216 = smul.addr %s215, 8
      %s217 = scalar_lea.vmem %s4, %s216
      %v218 = vld [vmem:[%s2] sm:$0x1]
      %v219 = vld [vmem:[%s3] sm:$0x1]
      %v220 = vld [vmem:[%s207] sm:$0xff]
      %v221 = vld [vmem:[%s207 + $0x8] sm:$0xff]
      %v222 = vld [vmem:[%s207 + $0x10] sm:$0xff]
      %v223 = vld [vmem:[%s207 + $0x18] sm:$0xff]
      %v224 = vld [vmem:[%s207 + $0x20] sm:$0xff]
      %v225 = vld [vmem:[%s207 + $0x28] sm:$0xff]
      %v226 = vld [vmem:[%s207 + $0x30] sm:$0xff]
      %v227 = vld [vmem:[%s207 + $0x38] sm:$0xff]
      %v228 = vld [vmem:[%s207 + $0x40] sm:$0xff]
      %v229 = vld [vmem:[%s207 + $0x48] sm:$0xff]
      %v230 = vld [vmem:[%s207 + $0x50] sm:$0xff]
      %v231 = vld [vmem:[%s207 + $0x58] sm:$0xff]
      %v232 = vld [vmem:[%s207 + $0x60] sm:$0xff]
      %v233 = vld [vmem:[%s207 + $0x68] sm:$0xff]
      %v234 = vld [vmem:[%s207 + $0x70] sm:$0xff]
      %v235 = vld [vmem:[%s207 + $0x78] sm:$0xff]
      %v237 = vperm.slane %v218, 0
      %v239 = vmul.f32 %v220, %v237
      %v240 = vmul.f32 %v221, %v237
      %v241 = vmul.f32 %v222, %v237
      %v242 = vmul.f32 %v223, %v237
      %v243 = vmul.f32 %v224, %v237
      %v244 = vmul.f32 %v225, %v237
      %v245 = vmul.f32 %v226, %v237
      %v246 = vmul.f32 %v227, %v237
      %v247 = vmul.f32 %v228, %v237
      %v248 = vmul.f32 %v229, %v237
      %v249 = vmul.f32 %v230, %v237
      %v250 = vmul.f32 %v231, %v237
      %v251 = vmul.f32 %v232, %v237
      %v252 = vmul.f32 %v233, %v237
      %v253 = vmul.f32 %v234, %v237
      %v254 = vmul.f32 %v235, %v237
      %v256 = vperm.slane %v219, 0
      %v258 = vadd.f32 %v239, %v256
      %v259 = vadd.f32 %v240, %v256
      %v260 = vadd.f32 %v241, %v256
      %v261 = vadd.f32 %v242, %v256
      %v262 = vadd.f32 %v243, %v256
      %v263 = vadd.f32 %v244, %v256
      %v264 = vadd.f32 %v245, %v256
      %v265 = vadd.f32 %v246, %v256
      %v266 = vadd.f32 %v247, %v256
      %v267 = vadd.f32 %v248, %v256
      %v268 = vadd.f32 %v249, %v256
      %v269 = vadd.f32 %v250, %v256
      %v270 = vadd.f32 %v251, %v256
      %v271 = vadd.f32 %v252, %v256
      %v272 = vadd.f32 %v253, %v256
      %v273 = vadd.f32 %v254, %v256
      %v274 = vld [vmem:[%s212] sm:$0xff]
      %v275 = vld [vmem:[%s212 + $0x8] sm:$0xff]
      %v276 = vld [vmem:[%s212 + $0x10] sm:$0xff]
      %v277 = vld [vmem:[%s212 + $0x18] sm:$0xff]
      %v278 = vld [vmem:[%s212 + $0x20] sm:$0xff]
      %v279 = vld [vmem:[%s212 + $0x28] sm:$0xff]
      %v280 = vld [vmem:[%s212 + $0x30] sm:$0xff]
      %v281 = vld [vmem:[%s212 + $0x38] sm:$0xff]
      %v282 = vld [vmem:[%s212 + $0x40] sm:$0xff]
      %v283 = vld [vmem:[%s212 + $0x48] sm:$0xff]
      %v284 = vld [vmem:[%s212 + $0x50] sm:$0xff]
      %v285 = vld [vmem:[%s212 + $0x58] sm:$0xff]
      %v286 = vld [vmem:[%s212 + $0x60] sm:$0xff]
      %v287 = vld [vmem:[%s212 + $0x68] sm:$0xff]
      %v288 = vld [vmem:[%s212 + $0x70] sm:$0xff]
      %v289 = vld [vmem:[%s212 + $0x78] sm:$0xff]
      %v290 = vadd.f32 %v258, %v274
      %v291 = vadd.f32 %v259, %v275
      %v292 = vadd.f32 %v260, %v276
      %v293 = vadd.f32 %v261, %v277
      %v294 = vadd.f32 %v262, %v278
      %v295 = vadd.f32 %v263, %v279
      %v296 = vadd.f32 %v264, %v280
      %v297 = vadd.f32 %v265, %v281
      %v298 = vadd.f32 %v266, %v282
      %v299 = vadd.f32 %v267, %v283
      %v300 = vadd.f32 %v268, %v284
      %v301 = vadd.f32 %v269, %v285
      %v302 = vadd.f32 %v270, %v286
      %v303 = vadd.f32 %v271, %v287
      %v304 = vadd.f32 %v272, %v288
      %v305 = vadd.f32 %v273, %v289
      %v306 = vmax.f32 %v290, 0.0
      %v307 = vmax.f32 %v291, 0.0
      %v308 = vmax.f32 %v292, 0.0
      %v309 = vmax.f32 %v293, 0.0
      %v310 = vmax.f32 %v294, 0.0
      %v311 = vmax.f32 %v295, 0.0
      %v312 = vmax.f32 %v296, 0.0
      %v313 = vmax.f32 %v297, 0.0
      %v314 = vmax.f32 %v298, 0.0
      %v315 = vmax.f32 %v299, 0.0
      %v316 = vmax.f32 %v300, 0.0
      %v317 = vmax.f32 %v301, 0.0
      %v318 = vmax.f32 %v302, 0.0
      %v319 = vmax.f32 %v303, 0.0
      %v320 = vmax.f32 %v304, 0.0
      %v321 = vmax.f32 %v305, 0.0
      %vm322 = vcmask 31744
      %323 = vst.msk [vmem:[%s217] sm:$0xff] %vm322, %v306
      %324 = vst.msk [vmem:[%s217 + $0x8] sm:$0xff] %vm322, %v307
      %325 = vst.msk [vmem:[%s217 + $0x10] sm:$0xff] %vm322, %v308
      %326 = vst.msk [vmem:[%s217 + $0x18] sm:$0xff] %vm322, %v309
      %327 = vst.msk [vmem:[%s217 + $0x20] sm:$0xff] %vm322, %v310
      %328 = vst.msk [vmem:[%s217 + $0x28] sm:$0xff] %vm322, %v311
      %329 = vst.msk [vmem:[%s217 + $0x30] sm:$0xff] %vm322, %v312
      %330 = vst.msk [vmem:[%s217 + $0x38] sm:$0xff] %vm322, %v313
      %331 = vst.msk [vmem:[%s217 + $0x40] sm:$0xff] %vm322, %v314
      %332 = vst.msk [vmem:[%s217 + $0x48] sm:$0xff] %vm322, %v315
      %333 = vst.msk [vmem:[%s217 + $0x50] sm:$0xff] %vm322, %v316
      %334 = vst.msk [vmem:[%s217 + $0x58] sm:$0xff] %vm322, %v317
      %335 = vst.msk [vmem:[%s217 + $0x60] sm:$0xff] %vm322, %v318
      %336 = vst.msk [vmem:[%s217 + $0x68] sm:$0xff] %vm322, %v319
      %337 = vst.msk [vmem:[%s217 + $0x70] sm:$0xff] %vm322, %v320
      %338 = vst.msk [vmem:[%s217 + $0x78] sm:$0xff] %vm322, %v321
      %s339 = scalar_lea.vmem %s207, 128
      %v340 = vld [vmem:[%s339] sm:$0xff]
      %v341 = vld [vmem:[%s339 + $0x8] sm:$0xff]
      %v342 = vld [vmem:[%s339 + $0x10] sm:$0xff]
      %v343 = vld [vmem:[%s339 + $0x18] sm:$0xff]
      %v344 = vld [vmem:[%s339 + $0x20] sm:$0xff]
      %v345 = vld [vmem:[%s339 + $0x28] sm:$0xff]
      %v346 = vld [vmem:[%s339 + $0x30] sm:$0xff]
      %v347 = vld [vmem:[%s339 + $0x38] sm:$0xff]
      %v348 = vld [vmem:[%s339 + $0x40] sm:$0xff]
      %v349 = vld [vmem:[%s339 + $0x48] sm:$0xff]
      %v350 = vld [vmem:[%s339 + $0x50] sm:$0xff]
      %v351 = vld [vmem:[%s339 + $0x58] sm:$0xff]
      %v352 = vld [vmem:[%s339 + $0x60] sm:$0xff]
      %v353 = vld [vmem:[%s339 + $0x68] sm:$0xff]
      %v354 = vld [vmem:[%s339 + $0x70] sm:$0xff]
      %v355 = vld [vmem:[%s339 + $0x78] sm:$0xff]
      %v356 = vmul.f32 %v340, %v237
      %v357 = vmul.f32 %v341, %v237
      %v358 = vmul.f32 %v342, %v237
      %v359 = vmul.f32 %v343, %v237
      %v360 = vmul.f32 %v344, %v237
      %v361 = vmul.f32 %v345, %v237
      %v362 = vmul.f32 %v346, %v237
      %v363 = vmul.f32 %v347, %v237
      %v364 = vmul.f32 %v348, %v237
      %v365 = vmul.f32 %v349, %v237
      %v366 = vmul.f32 %v350, %v237
      %v367 = vmul.f32 %v351, %v237
      %v368 = vmul.f32 %v352, %v237
      %v369 = vmul.f32 %v353, %v237
      %v370 = vmul.f32 %v354, %v237
      %v371 = vmul.f32 %v355, %v237
      %v372 = vadd.f32 %v356, %v256
      %v373 = vadd.f32 %v357, %v256
      %v374 = vadd.f32 %v358, %v256
      %v375 = vadd.f32 %v359, %v256
      %v376 = vadd.f32 %v360, %v256
      %v377 = vadd.f32 %v361, %v256
      %v378 = vadd.f32 %v362, %v256
      %v379 = vadd.f32 %v363, %v256
      %v380 = vadd.f32 %v364, %v256
      %v381 = vadd.f32 %v365, %v256
      %v382 = vadd.f32 %v366, %v256
      %v383 = vadd.f32 %v367, %v256
      %v384 = vadd.f32 %v368, %v256
      %v385 = vadd.f32 %v369, %v256
      %v386 = vadd.f32 %v370, %v256
      %v387 = vadd.f32 %v371, %v256
      %s388 = scalar_lea.vmem %s212, 128
      %v389 = vld [vmem:[%s388] sm:$0xff]
      %v390 = vld [vmem:[%s388 + $0x8] sm:$0xff]
      %v391 = vld [vmem:[%s388 + $0x10] sm:$0xff]
      %v392 = vld [vmem:[%s388 + $0x18] sm:$0xff]
      %v393 = vld [vmem:[%s388 + $0x20] sm:$0xff]
      %v394 = vld [vmem:[%s388 + $0x28] sm:$0xff]
      %v395 = vld [vmem:[%s388 + $0x30] sm:$0xff]
      %v396 = vld [vmem:[%s388 + $0x38] sm:$0xff]
      %v397 = vld [vmem:[%s388 + $0x40] sm:$0xff]
      %v398 = vld [vmem:[%s388 + $0x48] sm:$0xff]
      %v399 = vld [vmem:[%s388 + $0x50] sm:$0xff]
      %v400 = vld [vmem:[%s388 + $0x58] sm:$0xff]
      %v401 = vld [vmem:[%s388 + $0x60] sm:$0xff]
      %v402 = vld [vmem:[%s388 + $0x68] sm:$0xff]
      %v403 = vld [vmem:[%s388 + $0x70] sm:$0xff]
      %v404 = vld [vmem:[%s388 + $0x78] sm:$0xff]
      %v405 = vadd.f32 %v372, %v389
      %v406 = vadd.f32 %v373, %v390
      %v407 = vadd.f32 %v374, %v391
      %v408 = vadd.f32 %v375, %v392
      %v409 = vadd.f32 %v376, %v393
      %v410 = vadd.f32 %v377, %v394
      %v411 = vadd.f32 %v378, %v395
      %v412 = vadd.f32 %v379, %v396
      %v413 = vadd.f32 %v380, %v397
      %v414 = vadd.f32 %v381, %v398
      %v415 = vadd.f32 %v382, %v399
      %v416 = vadd.f32 %v383, %v400
      %v417 = vadd.f32 %v384, %v401
      %v418 = vadd.f32 %v385, %v402
      %v419 = vadd.f32 %v386, %v403
      %v420 = vadd.f32 %v387, %v404
      %v421 = vmax.f32 %v405, 0.0
      %v422 = vmax.f32 %v406, 0.0
      %v423 = vmax.f32 %v407, 0.0
      %v424 = vmax.f32 %v408, 0.0
      %v425 = vmax.f32 %v409, 0.0
      %v426 = vmax.f32 %v410, 0.0
      %v427 = vmax.f32 %v411, 0.0
      %v428 = vmax.f32 %v412, 0.0
      %v429 = vmax.f32 %v413, 0.0
      %v430 = vmax.f32 %v414, 0.0
      %v431 = vmax.f32 %v415, 0.0
      %v432 = vmax.f32 %v416, 0.0
      %v433 = vmax.f32 %v417, 0.0
      %v434 = vmax.f32 %v418, 0.0
      %v435 = vmax.f32 %v419, 0.0
      %v436 = vmax.f32 %v420, 0.0
      %s437 = scalar_lea.vmem %s217, 128
      %438 = vst.msk [vmem:[%s437] sm:$0xff] %vm322, %v421
      %439 = vst.msk [vmem:[%s437 + $0x8] sm:$0xff] %vm322, %v422
      %440 = vst.msk [vmem:[%s437 + $0x10] sm:$0xff] %vm322, %v423
      %441 = vst.msk [vmem:[%s437 + $0x18] sm:$0xff] %vm322, %v424
      %442 = vst.msk [vmem:[%s437 + $0x20] sm:$0xff] %vm322, %v425
      %443 = vst.msk [vmem:[%s437 + $0x28] sm:$0xff] %vm322, %v426
      %444 = vst.msk [vmem:[%s437 + $0x30] sm:$0xff] %vm322, %v427
      %445 = vst.msk [vmem:[%s437 + $0x38] sm:$0xff] %vm322, %v428
      %446 = vst.msk [vmem:[%s437 + $0x40] sm:$0xff] %vm322, %v429
      %447 = vst.msk [vmem:[%s437 + $0x48] sm:$0xff] %vm322, %v430
      %448 = vst.msk [vmem:[%s437 + $0x50] sm:$0xff] %vm322, %v431
      %449 = vst.msk [vmem:[%s437 + $0x58] sm:$0xff] %vm322, %v432
      %450 = vst.msk [vmem:[%s437 + $0x60] sm:$0xff] %vm322, %v433
      %451 = vst.msk [vmem:[%s437 + $0x68] sm:$0xff] %vm322, %v434
      %452 = vst.msk [vmem:[%s437 + $0x70] sm:$0xff] %vm322, %v435
      %453 = vst.msk [vmem:[%s437 + $0x78] sm:$0xff] %vm322, %v436
      %p454 = scmp.lt.s32.totalorder %s15, 1
      %s455 = scalar_select %p454, %s15, 1
      %s456 = smul.addr %s455, 32
      %s457 = smul.addr %s456, 8
      %s458 = scalar_lea.vmem %s4, %s457
      // Predicated region
      $region37: #{residual_forward.5} parent=35 // pred_check
        %p459 = pneg %p127
      $region38: #{residual_forward.5} parent=35 // pred_check_branch
        %461 = sbr.rel (%p459) target = $region40
      $region39: #{residual_forward.5} parent=35 // pred_region
        _
      $region40: #{residual_forward.5} parent=35 // pred_fallthru
        _
    $region36: #{residual_forward.5} parent=5 // pred_fallthru
      _
    %p462 = scmp.le.s32.totalorder 2, %s10
    // Predicated region
    $region41: #{residual_forward.5} parent=5 // pred_check
      %p463 = pneg %p462
    $region42: #{residual_forward.5} parent=5 // pred_check_branch
      %465 = sbr.rel (%p463) target = $region44
    $region43: #{residual_forward.5} parent=5 // pred_region
      %s466 = ssub.s32 %s10, 2
      // Predicated region
      $region45: #{residual_forward.5} parent=43 // pred_check
        %p467 = pneg %p133
      $region46: #{residual_forward.5} parent=43 // pred_check_branch
        %469 = sbr.rel (%p467) target = $region48
      $region47: #{residual_forward.5} parent=43 // pred_region
        %p470 = scmp.lt.s32.totalorder %s16, 1
        %s471 = scalar_select %p470, %s16, 1
        %s472 = smul.addr %s471, 32
        %s473 = smul.addr %s472, 8
        %s474 = scalar_lea.vmem %s4, %s473
      $region48: #{residual_forward.5} parent=43 // pred_fallthru
        _
    $region44: #{residual_forward.5} parent=5 // pred_fallthru
      _
  $region6: #{residual_forward.5} parent=0 // loop_footer
    %s14 = sadd.s32 1, %s10
  $region7: #{residual_forward.5} parent=0 // loop_footer_branch
    %9 = sbr.rel target = $region3
  $region8: #{residual_forward.5} parent=0 // loop_exit
    _

// kernel: residual_forward.3
$region0: #{residual_forward.3}
  #allocation0 [shape = 'u32[]', space=smem, size = 0x4, offset = 0x4, fixed_abs, tag = 'smem constant byte address 0x4 - core index']
  #allocation1 [shape = 'u32[72,128]{1,0:T(1,128)}', space=vmem, size = 0x9000, scoped, tag = 'internal scratch']
  #allocation2 [shape = 'f32[16,16,36]{2,1,0:T(8,128)}', space=vmem, size = 0x20000, scoped, tag = 'scratch operand']
  %s0 = inlined_call_operand.vmem [shape: f32[2,16,16,4], index: 0, kind: input, shape index: {}]
  %s1 = inlined_call_operand.vmem [shape: f32[36,4], index: 1, kind: input, shape index: {}]
  %s2 = inlined_call_operand.vmem [shape: f32[2,256,4], index: 2, kind: output, shape index: {0}]
  %s3 = inlined_call_operand.vmem [shape: f32[2,2,4], index: 3, kind: output, shape index: {1}]
  %4 = xla_tuple %s2, %s3
  %s5 = sld [smem:[#allocation0]]
  $region49: #{residual_forward.3} parent=0
    _
  %s7 = ssub.s32 1, %s5
  %s8 = scalar_select 0, %s7, %s5
  loop: start=0, step=1, limit=4
  $region2: #{residual_forward.3} parent=0 // loop_pre_header
    _
  $region3: #{residual_forward.3} parent=0 // loop_header
    %s10 = sphi 0, %s14
    %p11 = scmp.ge.s32.totalorder %s10, 4
    %s20 = sphi 0, %s22
    %s23 = sphi 0, %s20
    %s24 = sphi 0, %s23
    %s40 = sphi 0, %s24
    %s44 = sphi 0, %s44
    %s46 = sphi 0, %s44
    %s47 = sphi 0, %s46
    %s61 = sphi 0, %s47
    %s67 = sphi 0, %s69
    %s70 = sphi 0, %s67
    %s71 = sphi 0, %s70
    %s87 = sphi 0, %s71
    %s93 = sphi 0, %s95
    %s96 = sphi 0, %s93
    %s97 = sphi 0, %s96
    %s113 = sphi 0, %s97
  $region4: #{residual_forward.3} parent=0 // loop_header_branch
    %13 = sbr.rel (%p11) target = $region8
  $region5: #{residual_forward.3} parent=0 // loop_body
    %s15 = ssub.s32 %s10, 1
    %s16 = ssub.s32 %s10, 2
    %s17 = sadd.s32 %s10, 1
    %s18 = ssub.s32 %s10, %s17
    %p19 = scmp.eq.s32.totalorder %s18, 0
    %s21 = sadd.s32 %s20, 1
    %s22 = scalar_select %p19, %s20, %s21
    %p25 = pneg %p19
    %p26 = scmp.eq.s32.totalorder %s10, 1
    %p27 = por %p25, %p26
    %p28 = scmp.ne.s32.totalorder %s20, %s23
    %p29 = scmp.eq.s32.totalorder %s10, 0
    %p30 = por %p28, %p29
    %p31 = scmp.ne.s32.totalorder %s20, %s23
    %p32 = scmp.eq.s32.totalorder %s15, 1
    %p33 = por %p31, %p32
    %p34 = scmp.ne.s32.totalorder %s23, %s24
    %p35 = scmp.eq.s32.totalorder %s15, 0
    %p36 = por %p34, %p35
    %p37 = scmp.ne.s32.totalorder %s23, %s24
    %p38 = scmp.eq.s32.totalorder %s16, 1
    %p39 = por %p37, %p38
    %p41 = scmp.ne.s32.totalorder %s24, %s40
    %p42 = scmp.eq.s32.totalorder %s16, 0
    %p43 = por %p41, %p42
    %s45 = sadd.s32 %s44, 1
    %p48 = scmp.eq.s32.totalorder %s10, 1
    %p49 = scmp.ne.s32.totalorder %s44, %s46
    %p50 = scmp.eq.s32.totalorder %s10, 0
    %p51 = por %p49, %p50
    %p52 = scmp.ne.s32.totalorder %s44, %s46
    %p53 = scmp.eq.s32.totalorder %s15, 1
    %p54 = por %p52, %p53
    %p55 = scmp.ne.s32.totalorder %s46, %s47
    %p56 = scmp.eq.s32.totalorder %s15, 0
    %p57 = por %p55, %p56
    %p58 = scmp.ne.s32.totalorder %s46, %s47
    %p59 = scmp.eq.s32.totalorder %s16, 1
    %p60 = por %p58, %p59
    %p62 = scmp.ne.s32.totalorder %s47, %s61
    %p63 = scmp.eq.s32.totalorder %s16, 0
    %p64 = por %p62, %p63
    %s65 = ssub.s32 %s10, %s17
    %p66 = scmp.eq.s32.totalorder %s65, 0
    %s68 = sadd.s32 %s67, 1
    %s69 = scalar_select %p66, %s67, %s68
    %p72 = pneg %p66
    %p73 = scmp.eq.s32.totalorder %s10, 1
    %p74 = por %p72, %p73
    %p75 = scmp.ne.s32.totalorder %s67, %s70
    %p76 = scmp.eq.s32.totalorder %s10, 0
    %p77 = por %p75, %p76
    %p78 = scmp.ne.s32.totalorder %s67, %s70
    %p79 = scmp.eq.s32.totalorder %s15, 1
    %p80 = por %p78, %p79
    %p81 = scmp.ne.s32.totalorder %s70, %s71
    %p82 = scmp.eq.s32.totalorder %s15, 0
    %p83 = por %p81, %p82
    %p84 = scmp.ne.s32.totalorder %s70, %s71
    %p85 = scmp.eq.s32.totalorder %s16, 1
    %p86 = por %p84, %p85
    %p88 = scmp.ne.s32.totalorder %s71, %s87
    %p89 = scmp.eq.s32.totalorder %s16, 0
    %p90 = por %p88, %p89
    %s91 = ssub.s32 %s10, %s17
    %p92 = scmp.eq.s32.totalorder %s91, 0
    %s94 = sadd.s32 %s93, 1
    %s95 = scalar_select %p92, %s93, %s94
    %p98 = pneg %p92
    %p99 = scmp.eq.s32.totalorder %s10, 1
    %p100 = por %p98, %p99
    %p101 = scmp.ne.s32.totalorder %s93, %s96
    %p102 = scmp.eq.s32.totalorder %s10, 0
    %p103 = por %p101, %p102
    %p104 = scmp.ne.s32.totalorder %s93, %s96
    %p105 = scmp.eq.s32.totalorder %s15, 1
    %p106 = por %p104, %p105
    %p107 = scmp.ne.s32.totalorder %s96, %s97
    %p108 = scmp.eq.s32.totalorder %s15, 0
    %p109 = por %p107, %p108
    %p110 = scmp.ne.s32.totalorder %s96, %s97
    %p111 = scmp.eq.s32.totalorder %s16, 1
    %p112 = por %p110, %p111
    %p114 = scmp.ne.s32.totalorder %s97, %s113
    %p115 = scmp.eq.s32.totalorder %s16, 0
    %p116 = por %p114, %p115
    %p117 = scmp.le.s32.totalorder 1, %s10
    %p118 = scmp.lt.s32.totalorder %s10, 3
    %p119 = pnand %p117, %p118
    %p120 = pneg %p119
    // Predicated region
    $region9: #{residual_forward.3} parent=5 // pred_check
      _
    $region10: #{residual_forward.3} parent=5 // pred_check_branch
      %122 = sbr.rel (%p119) target = $region12
    $region11: #{residual_forward.3} parent=5 // pred_region
      %s123 = ssub.s32 %s10, 1
      // Predicated region
      $region13: #{residual_forward.3} parent=11 // pred_check
        %p124 = pneg %p57
      $region14: #{residual_forward.3} parent=11 // pred_check_branch
        %126 = sbr.rel (%p124) target = $region16
      $region15: #{residual_forward.3} parent=11 // pred_region
        _
      $region16: #{residual_forward.3} parent=11 // pred_fallthru
        _
    $region12: #{residual_forward.3} parent=5 // pred_fallthru
      _
    %p127 = scmp.lt.s32.totalorder %s10, 2
    // Predicated region
    $region17: #{residual_forward.3} parent=5 // pred_check
      %p128 = pneg %p127
    $region18: #{residual_forward.3} parent=5 // pred_check_branch
      %130 = sbr.rel (%p128) target = $region20
    $region19: #{residual_forward.3} parent=5 // pred_region
      // Predicated region
      $region21: #{residual_forward.3} parent=19 // pred_check
        %p131 = pneg %p30
      $region22: #{residual_forward.3} parent=19 // pred_check_branch
        %133 = sbr.rel (%p131) target = $region24
      $region23: #{residual_forward.3} parent=19 // pred_region
        %p134 = scmp.lt.s32.totalorder %s10, 1
        %s135 = scalar_select %p134, %s10, 1
        %s136 = smul.addr %s135, 32
        %s137 = smul.addr %s136, 8
        %s138 = scalar_lea.vmem %s0, %s137
      $region24: #{residual_forward.3} parent=19 // pred_fallthru
        _
    $region20: #{residual_forward.3} parent=5 // pred_fallthru
      _
    %p139 = scmp.le.s32.totalorder 1, %s10
    %p140 = scmp.lt.s32.totalorder %s10, 3
    %p141 = pnand %p139, %p140
    %p142 = pneg %p141
    // Predicated region
    $region25: #{residual_forward.3} parent=5 // pred_check
      _
    $region26: #{residual_forward.3} parent=5 // pred_check_branch
      %144 = sbr.rel (%p141) target = $region28
    $region27: #{residual_forward.3} parent=5 // pred_region
      %s145 = ssub.s32 %s10, 1
      %p146 = scmp.lt.s32.totalorder %s15, 1
      %s147 = scalar_select %p146, %s15, 1
      %s148 = smul.addr %s147, 32
      %s149 = smul.addr %s148, 8
      %s150 = scalar_lea.vmem %s0, %s149
      %p151 = pneg %p36
      %p152 = pneg %p33
      %p153 = pneg %p57
      %p154 = pneg %p54
      %p155 = pneg %p83
      %p156 = pneg %p80
      %p157 = scmp.lt.s32.totalorder %s15, 1
      %s158 = scalar_select %p157, %s15, 1
      %s159 = smul.addr %s158, 32
      %s160 = smul.addr %s159, 8
      %s161 = scalar_lea.vmem %s2, %s160
      %p162 = pneg %p109
      %p163 = pneg %p106
      %p164 = scmp.lt.s32.totalorder %s15, 1
      %s165 = scalar_select %p164, %s15, 1
      %s166 = smul.addr %s165, 2
      %s167 = scalar_lea.vmem %s3, %s166
      %p168 = scmp.lt.s32.totalorder %s15, 1
      %s169 = scalar_select %p168, %s15, 1
      %s170 = smul.addr %s169, 32
      %s171 = smul.addr %s170, 8
      %s172 = scalar_lea.vmem %s0, %s171
      %p173 = scmp.lt.s32.totalorder %s15, 1
      %s174 = scalar_select %p173, %s15, 1
      %s175 = smul.addr %s174, 32
      %s176 = smul.addr %s175, 8
      %s177 = scalar_lea.vmem %s2, %s176
      %p178 = scmp.lt.s32.totalorder %s15, 1
      %s179 = scalar_select %p178, %s15, 1
      %s180 = smul.addr %s179, 2
      %s181 = scalar_lea.vmem %s3, %s180
      %v182 = vld [vmem:[%s172] sm:$0xff]
      %v183 = vld [vmem:[%s172 + $0x8] sm:$0xff]
      %v184 = vld [vmem:[%s172 + $0x10] sm:$0xff]
      %v185 = vld [vmem:[%s172 + $0x18] sm:$0xff]
      %v186 = vld [vmem:[%s172 + $0x20] sm:$0xff]
      %v187 = vld [vmem:[%s172 + $0x28] sm:$0xff]
      %v188 = vld [vmem:[%s172 + $0x30] sm:$0xff]
      %v189 = vld [vmem:[%s172 + $0x38] sm:$0xff]
      %v190 = vld [vmem:[%s172 + $0x40] sm:$0xff]
      %v191 = vld [vmem:[%s172 + $0x48] sm:$0xff]
      %v192 = vld [vmem:[%s172 + $0x50] sm:$0xff]
      %v193 = vld [vmem:[%s172 + $0x58] sm:$0xff]
      %v194 = vld [vmem:[%s172 + $0x60] sm:$0xff]
      %v195 = vld [vmem:[%s172 + $0x68] sm:$0xff]
      %v196 = vld [vmem:[%s172 + $0x70] sm:$0xff]
      %v197 = vld [vmem:[%s172 + $0x78] sm:$0xff]
      %v198 = vld [vmem:[%s172 + $0x80] sm:$0xff]
      %v199 = vld [vmem:[%s172 + $0x88] sm:$0xff]
      %v200 = vld [vmem:[%s172 + $0x90] sm:$0xff]
      %v201 = vld [vmem:[%s172 + $0x98] sm:$0xff]
      %v202 = vld [vmem:[%s172 + $0xa0] sm:$0xff]
      %v203 = vld [vmem:[%s172 + $0xa8] sm:$0xff]
      %v204 = vld [vmem:[%s172 + $0xb0] sm:$0xff]
      %v205 = vld [vmem:[%s172 + $0xb8] sm:$0xff]
      %v206 = vld [vmem:[%s172 + $0xc0] sm:$0xff]
      %v207 = vld [vmem:[%s172 + $0xc8] sm:$0xff]
      %v208 = vld [vmem:[%s172 + $0xd0] sm:$0xff]
      %v209 = vld [vmem:[%s172 + $0xd8] sm:$0xff]
      %v210 = vld [vmem:[%s172 + $0xe0] sm:$0xff]
      %v211 = vld [vmem:[%s172 + $0xe8] sm:$0xff]
      %v212 = vld [vmem:[%s172 + $0xf0] sm:$0xff]
      %v213 = vld [vmem:[%s172 + $0xf8] sm:$0xff]
      %vm246 = vcmask 1040384
      %v247 = vrot.slane %v182, 7
      %v248 = vrot.slane %v183, 7
      %v249 = vsel %vm246, %v247, %v248
      %v250 = vrot.slane %v184, 7
      %v251 = vrot.slane %v185, 7
      %v252 = vsel %vm246, %v250, %v251
      %v253 = vrot.slane %v186, 7
      %v254 = vrot.slane %v187, 7
      %v255 = vsel %vm246, %v253, %v254
      %v256 = vrot.slane %v188, 7
      %v257 = vrot.slane %v189, 7
      %v258 = vsel %vm246, %v256, %v257
      %v259 = vrot.slane %v190, 7
      %v260 = vrot.slane %v191, 7
      %v261 = vsel %vm246, %v259, %v260
      %v262 = vrot.slane %v192, 7
      %v263 = vrot.slane %v193, 7
      %v264 = vsel %vm246, %v262, %v263
      %v265 = vrot.slane %v194, 7
      %v266 = vrot.slane %v195, 7
      %v267 = vsel %vm246, %v265, %v266
      %v268 = vrot.slane %v196, 7
      %v269 = vrot.slane %v197, 7
      %v270 = vsel %vm246, %v268, %v269
      %v271 = vrot.slane %v198, 7
      %v272 = vrot.slane %v199, 7
      %v273 = vsel %vm246, %v271, %v272
      %v274 = vrot.slane %v200, 7
      %v275 = vrot.slane %v201, 7
      %v276 = vsel %vm246, %v274, %v275
      %v277 = vrot.slane %v202, 7
      %v278 = vrot.slane %v203, 7
      %v279 = vsel %vm246, %v277, %v278
      %v280 = vrot.slane %v204, 7
      %v281 = vrot.slane %v205, 7
      %v282 = vsel %vm246, %v280, %v281
      %v283 = vrot.slane %v206, 7
      %v284 = vrot.slane %v207, 7
      %v285 = vsel %vm246, %v283, %v284
      %v286 = vrot.slane %v208, 7
      %v287 = vrot.slane %v209, 7
      %v288 = vsel %vm246, %v286, %v287
      %v289 = vrot.slane %v210, 7
      %v290 = vrot.slane %v211, 7
      %v291 = vsel %vm246, %v289, %v290
      %v292 = vrot.slane %v212, 7
      %v293 = vrot.slane %v213, 7
      %v294 = vsel %vm246, %v292, %v293
      %v327 = vsel %vm246, 0.0, %v247
      %v328 = vsel %vm246, 0.0, %v250
      %v329 = vsel %vm246, 0.0, %v253
      %v330 = vsel %vm246, 0.0, %v256
      %v331 = vsel %vm246, 0.0, %v259
      %v332 = vsel %vm246, 0.0, %v262
      %v333 = vsel %vm246, 0.0, %v265
      %v334 = vsel %vm246, 0.0, %v268
      %v335 = vsel %vm246, 0.0, %v271
      %v336 = vsel %vm246, 0.0, %v274
      %v337 = vsel %vm246, 0.0, %v277
      %v338 = vsel %vm246, 0.0, %v280
      %v339 = vsel %vm246, 0.0, %v283
      %v340 = vsel %vm246, 0.0, %v286
      %v341 = vsel %vm246, 0.0, %v289
      %v342 = vsel %vm246, 0.0, %v292
      %vm343 = vcmask 1046528
      %v344 = vrot.slane %v182, 1
      %v345 = vrot.slane %v183, 1
      %v346 = vsel %vm343, %v344, %v345
      %v347 = vrot.slane %v184, 1
      %v348 = vrot.slane %v185, 1
      %v349 = vsel %vm343, %v347, %v348
      %v350 = vrot.slane %v186, 1
      %v351 = vrot.slane %v187, 1
      %v352 = vsel %vm343, %v350, %v351
      %v353 = vrot.slane %v188, 1
      %v354 = vrot.slane %v189, 1
      %v355 = vsel %vm343, %v353, %v354
      %v356 = vrot.slane %v190, 1
      %v357 = vrot.slane %v191, 1
      %v358 = vsel %vm343, %v356, %v357
      %v359 = vrot.slane %v192, 1
      %v360 = vrot.slane %v193, 1
      %v361 = vsel %vm343, %v359, %v360
      %v362 = vrot.slane %v194, 1
      %v363 = vrot.slane %v195, 1
      %v364 = vsel %vm343, %v362, %v363
      %v365 = vrot.slane %v196, 1
      %v366 = vrot.slane %v197, 1
      %v367 = vsel %vm343, %v365, %v366
      %v368 = vrot.slane %v198, 1
      %v369 = vrot.slane %v199, 1
      %v370 = vsel %vm343, %v368, %v369
      %v371 = vrot.slane %v200, 1
      %v372 = vrot.slane %v201, 1
      %v373 = vsel %vm343, %v371, %v372
      %v374 = vrot.slane %v202, 1
      %v375 = vrot.slane %v203, 1
      %v376 = vsel %vm343, %v374, %v375
      %v377 = vrot.slane %v204, 1
      %v378 = vrot.slane %v205, 1
      %v379 = vsel %vm343, %v377, %v378
      %v380 = vrot.slane %v206, 1
      %v381 = vrot.slane %v207, 1
      %v382 = vsel %vm343, %v380, %v381
      %v383 = vrot.slane %v208, 1
      %v384 = vrot.slane %v209, 1
      %v385 = vsel %vm343, %v383, %v384
      %v386 = vrot.slane %v210, 1
      %v387 = vrot.slane %v211, 1
      %v388 = vsel %vm343, %v386, %v387
      %v389 = vrot.slane %v212, 1
      %v390 = vrot.slane %v213, 1
      %v391 = vsel %vm343, %v389, %v390
      %v408 = vsel %vm343, %v345, 0.0
      %v409 = vsel %vm343, %v348, 0.0
      %v410 = vsel %vm343, %v351, 0.0
      %v411 = vsel %vm343, %v354, 0.0
      %v412 = vsel %vm343, %v357, 0.0
      %v413 = vsel %vm343, %v360, 0.0
      %v414 = vsel %vm343, %v363, 0.0
      %v415 = vsel %vm343, %v366, 0.0
      %v416 = vsel %vm343, %v369, 0.0
      %v417 = vsel %vm343, %v372, 0.0
      %v418 = vsel %vm343, %v375, 0.0
      %v419 = vsel %vm343, %v378, 0.0
      %v420 = vsel %vm343, %v381, 0.0
      %v421 = vsel %vm343, %v384, 0.0
      %v422 = vsel %vm343, %v387, 0.0
      %v423 = vsel %vm343, %v390, 0.0
      %424 = vrot.lane.b32.xlu0 %v182, 4
      %v425 = vpop.permute.xlu0 %424
      %426 = vrot.lane.b32.xlu0 %v183, 4
      %v427 = vpop.permute.xlu0 %426
      %428 = vrot.lane.b32.xlu0 %v184, 4
      %v429 = vpop.permute.xlu0 %428
      %430 = vrot.lane.b32.xlu0 %v185, 4
      %v431 = vpop.permute.xlu0 %430
      %432 = vrot.lane.b32.xlu0 %v186, 4
      %v433 = vpop.permute.xlu0 %432
      %434 = vrot.lane.b32.xlu0 %v187, 4
      %v435 = vpop.permute.xlu0 %434
      %436 = vrot.lane.b32.xlu0 %v188, 4
      %v437 = vpop.permute.xlu0 %436
      %438 = vrot.lane.b32.xlu0 %v189, 4
      %v439 = vpop.permute.xlu0 %438
      %440 = vrot.lane.b32.xlu0 %v190, 4
      %v441 = vpop.permute.xlu0 %440
      %442 = vrot.lane.b32.xlu0 %v191, 4
      %v443 = vpop.permute.xlu0 %442
      %444 = vrot.lane.b32.xlu0 %v192, 4
      %v445 = vpop.permute.xlu0 %444
      %446 = vrot.lane.b32.xlu0 %v193, 4
      %v447 = vpop.permute.xlu0 %446
      %448 = vrot.lane.b32.xlu0 %v194, 4
      %v449 = vpop.permute.xlu0 %448
      %450 = vrot.lane.b32.xlu0 %v195, 4
      %v451 = vpop.permute.xlu0 %450
      %452 = vrot.lane.b32.xlu0 %v196, 4
      %v453 = vpop.permute.xlu0 %452
      %454 = vrot.lane.b32.xlu0 %v197, 4
      %v455 = vpop.permute.xlu0 %454
      %456 = vrot.lane.b32.xlu0 %v198, 4
      %v457 = vpop.permute.xlu0 %456
      %458 = vrot.lane.b32.xlu0 %v199, 4
      %v459 = vpop.permute.xlu0 %458
      %460 = vrot.lane.b32.xlu0 %v200, 4
      %v461 = vpop.permute.xlu0 %460
      %462 = vrot.lane.b32.xlu0 %v201, 4
      %v463 = vpop.permute.xlu0 %462
      %464 = vrot.lane.b32.xlu0 %v202, 4
      %v465 = vpop.permute.xlu0 %464
      %466 = vrot.lane.b32.xlu0 %v203, 4
      %v467 = vpop.permute.xlu0 %466
      %468 = vrot.lane.b32.xlu0 %v204, 4
      %v469 = vpop.permute.xlu0 %468
      %470 = vrot.lane.b32.xlu0 %v205, 4
      %v471 = vpop.permute.xlu0 %470
      %472 = vrot.lane.b32.xlu0 %v206, 4
      %v473 = vpop.permute.xlu0 %472
      %474 = vrot.lane.b32.xlu0 %v207, 4
      %v475 = vpop.permute.xlu0 %474
      %476 = vrot.lane.b32.xlu0 %v208, 4
      %v477 = vpop.permute.xlu0 %476
      %478 = vrot.lane.b32.xlu0 %v209, 4
      %v479 = vpop.permute.xlu0 %478
      %480 = vrot.lane.b32.xlu0 %v210, 4
      %v481 = vpop.permute.xlu0 %480
      %482 = vrot.lane.b32.xlu0 %v211, 4
      %v483 = vpop.permute.xlu0 %482
      %484 = vrot.lane.b32.xlu0 %v212, 4
      %v485 = vpop.permute.xlu0 %484
      %486 = vrot.lane.b32.xlu0 %v213, 4
      %v487 = vpop.permute.xlu0 %486
      %536 = vrot.lane.b32.xlu0 %v346, 8
      %v537 = vpop.permute.xlu0 %536
      %538 = vrot.lane.b32.xlu0 %v408, 8
      %v539 = vpop.permute.xlu0 %538
      %540 = vrot.lane.b32.xlu0 %v349, 8
      %v541 = vpop.permute.xlu0 %540
      %542 = vrot.lane.b32.xlu0 %v409, 8
      %v543 = vpop.permute.xlu0 %542
      %544 = vrot.lane.b32.xlu0 %v352, 8
      %v545 = vpop.permute.xlu0 %544
      %546 = vrot.lane.b32.xlu0 %v410, 8
      %v547 = vpop.permute.xlu0 %546
      %548 = vrot.lane.b32.xlu0 %v355, 8
      %v549 = vpop.permute.xlu0 %548
      %550 = vrot.lane.b32.xlu0 %v411, 8
      %v551 = vpop.permute.xlu0 %550
      %552 = vrot.lane.b32.xlu0 %v358, 8
      %v553 = vpop.permute.xlu0 %552
      %554 = vrot.lane.b32.xlu0 %v412, 8
      %v555 = vpop.permute.xlu0 %554
      %556 = vrot.lane.b32.xlu0 %v361, 8
      %v557 = vpop.permute.xlu0 %556
      %558 = vrot.lane.b32.xlu0 %v413, 8
      %v559 = vpop.permute.xlu0 %558
      %560 = vrot.lane.b32.xlu0 %v364, 8
      %v561 = vpop.permute.xlu0 %560
      %562 = vrot.lane.b32.xlu0 %v414, 8
      %v563 = vpop.permute.xlu0 %562
      %564 = vrot.lane.b32.xlu0 %v367, 8
      %v565 = vpop.permute.xlu0 %564
      %566 = vrot.lane.b32.xlu0 %v415, 8
      %v567 = vpop.permute.xlu0 %566
      %568 = vrot.lane.b32.xlu0 %v370, 8
      %v569 = vpop.permute.xlu0 %568
      %570 = vrot.lane.b32.xlu0 %v416, 8
      %v571 = vpop.permute.xlu0 %570
      %572 = vrot.lane.b32.xlu0 %v373, 8
      %v573 = vpop.permute.xlu0 %572
      %574 = vrot.lane.b32.xlu0 %v417, 8
      %v575 = vpop.permute.xlu0 %574
      %576 = vrot.lane.b32.xlu0 %v376, 8
      %v577 = vpop.permute.xlu0 %576
      %578 = vrot.lane.b32.xlu0 %v418, 8
      %v579 = vpop.permute.xlu0 %578
      %580 = vrot.lane.b32.xlu0 %v379, 8
      %v581 = vpop.permute.xlu0 %580
      %582 = vrot.lane.b32.xlu0 %v419, 8
      %v583 = vpop.permute.xlu0 %582
      %584 = vrot.lane.b32.xlu0 %v382, 8
      %v585 = vpop.permute.xlu0 %584
      %586 = vrot.lane.b32.xlu0 %v420, 8
      %v587 = vpop.permute.xlu0 %586
      %588 = vrot.lane.b32.xlu0 %v385, 8
      %v589 = vpop.permute.xlu0 %588
      %590 = vrot.lane.b32.xlu0 %v421, 8
      %v591 = vpop.permute.xlu0 %590
      %592 = vrot.lane.b32.xlu0 %v388, 8
      %v593 = vpop.permute.xlu0 %592
      %594 = vrot.lane.b32.xlu0 %v422, 8
      %v595 = vpop.permute.xlu0 %594
      %596 = vrot.lane.b32.xlu0 %v391, 8
      %v597 = vpop.permute.xlu0 %596
      %598 = vrot.lane.b32.xlu0 %v423, 8
      %v599 = vpop.permute.xlu0 %598
      %vm632 = vcmask 31744
      %v633 = vsel %vm632, %v327, %v425
      %v634 = vsel %vm632, %v249, %v427
      %v635 = vsel %vm632, %v328, %v429
      %v636 = vsel %vm632, %v252, %v431
      %v637 = vsel %vm632, %v329, %v433
      %v638 = vsel %vm632, %v255, %v435
      %v639 = vsel %vm632, %v330, %v437
      %v640 = vsel %vm632, %v258, %v439
      %v641 = vsel %vm632, %v331, %v441
      %v642 = vsel %vm632, %v261, %v443
      %v643 = vsel %vm632, %v332, %v445
      %v644 = vsel %vm632, %v264, %v447
      %v645 = vsel %vm632, %v333, %v449
      %v646 = vsel %vm632, %v267, %v451
      %v647 = vsel %vm632, %v334, %v453
      %v648 = vsel %vm632, %v270, %v455
      %v649 = vsel %vm632, %v335, %v457
      %v650 = vsel %vm632, %v273, %v459
      %v651 = vsel %vm632, %v336, %v461
      %v652 = vsel %vm632, %v276, %v463
      %v653 = vsel %vm632, %v337, %v465
      %v654 = vsel %vm632, %v279, %v467
      %v655 = vsel %vm632, %v338, %v469
      %v656 = vsel %vm632, %v282, %v471
      %v657 = vsel %vm632, %v339, %v473
      %v658 = vsel %vm632, %v285, %v475
      %v659 = vsel %vm632, %v340, %v477
      %v660 = vsel %vm632, %v288, %v479
      %v661 = vsel %vm632, %v341, %v481
      %v662 = vsel %vm632, %v291, %v483
      %v663 = vsel %vm632, %v342, %v485
      %v664 = vsel %vm632, %v294, %v487
      %vm665 = vcmask 64512
      %v666 = vsel %vm665, %v633, %v537
      %v667 = vsel %vm665, %v634, %v539
      %v668 = vsel %vm665, %v635, %v541
      %v669 = vsel %vm665, %v636, %v543
      %v670 = vsel %vm665, %v637, %v545
      %v671 = vsel %vm665, %v638, %v547
      %v672 = vsel %vm665, %v639, %v549
      %v673 = vsel %vm665, %v640, %v551
      %v674 = vsel %vm665, %v641, %v553
      %v675 = vsel %vm665, %v642, %v555
      %v676 = vsel %vm665, %v643, %v557
      %v677 = vsel %vm665, %v644, %v559
      %v678 = vsel %vm665, %v645, %v561
      %v679 = vsel %vm665, %v646, %v563
      %v680 = vsel %vm665, %v647, %v565
      %v681 = vsel %vm665, %v648, %v567
      %v682 = vsel %vm665, %v649, %v569
      %v683 = vsel %vm665, %v650, %v571
      %v684 = vsel %vm665, %v651, %v573
      %v685 = vsel %vm665, %v652, %v575
      %v686 = vsel %vm665, %v653, %v577
      %v687 = vsel %vm665, %v654, %v579
      %v688 = vsel %vm665, %v655, %v581
      %v689 = vsel %vm665, %v656, %v583
      %v690 = vsel %vm665, %v657, %v585
      %v691 = vsel %vm665, %v658, %v587
      %v692 = vsel %vm665, %v659, %v589
      %v693 = vsel %vm665, %v660, %v591
      %v694 = vsel %vm665, %v661, %v593
      %v695 = vsel %vm665, %v662, %v595
      %v696 = vsel %vm665, %v663, %v597
      %v697 = vsel %vm665, %v664, %v599
      %730 = vrot.lane.b32.xlu0 %v666, 12
      %v731 = vpop.permute.xlu0 %730
      %732 = vrot.lane.b32.xlu0 %v667, 12
      %v733 = vpop.permute.xlu0 %732
      %734 = vrot.lane.b32.xlu0 %v668, 12
      %v735 = vpop.permute.xlu0 %734
      %736 = vrot.lane.b32.xlu0 %v669, 12
      %v737 = vpop.permute.xlu0 %736
      %738 = vrot.lane.b32.xlu0 %v670, 12
      %v739 = vpop.permute.xlu0 %738
      %740 = vrot.lane.b32.xlu0 %v671, 12
      %v741 = vpop.permute.xlu0 %740
      %742 = vrot.lane.b32.xlu0 %v672, 12
      %v743 = vpop.permute.xlu0 %742
      %744 = vrot.lane.b32.xlu0 %v673, 12
      %v745 = vpop.permute.xlu0 %744
      %746 = vrot.lane.b32.xlu0 %v674, 12
      %v747 = vpop.permute.xlu0 %746
      %748 = vrot.lane.b32.xlu0 %v675, 12
      %v749 = vpop.permute.xlu0 %748
      %750 = vrot.lane.b32.xlu0 %v676, 12
      %v751 = vpop.permute.xlu0 %750
      %752 = vrot.lane.b32.xlu0 %v677, 12
      %v753 = vpop.permute.xlu0 %752
      %754 = vrot.lane.b32.xlu0 %v678, 12
      %v755 = vpop.permute.xlu0 %754
      %756 = vrot.lane.b32.xlu0 %v679, 12
      %v757 = vpop.permute.xlu0 %756
      %758 = vrot.lane.b32.xlu0 %v680, 12
      %v759 = vpop.permute.xlu0 %758
      %760 = vrot.lane.b32.xlu0 %v681, 12
      %v761 = vpop.permute.xlu0 %760
      %762 = vrot.lane.b32.xlu0 %v682, 12
      %v763 = vpop.permute.xlu0 %762
      %764 = vrot.lane.b32.xlu0 %v683, 12
      %v765 = vpop.permute.xlu0 %764
      %766 = vrot.lane.b32.xlu0 %v684, 12
      %v767 = vpop.permute.xlu0 %766
      %768 = vrot.lane.b32.xlu0 %v685, 12
      %v769 = vpop.permute.xlu0 %768
      %770 = vrot.lane.b32.xlu0 %v686, 12
      %v771 = vpop.permute.xlu0 %770
      %772 = vrot.lane.b32.xlu0 %v687, 12
      %v773 = vpop.permute.xlu0 %772
      %774 = vrot.lane.b32.xlu0 %v688, 12
      %v775 = vpop.permute.xlu0 %774
      %776 = vrot.lane.b32.xlu0 %v689, 12
      %v777 = vpop.permute.xlu0 %776
      %778 = vrot.lane.b32.xlu0 %v690, 12
      %v779 = vpop.permute.xlu0 %778
      %780 = vrot.lane.b32.xlu0 %v691, 12
      %v781 = vpop.permute.xlu0 %780
      %782 = vrot.lane.b32.xlu0 %v692, 12
      %v783 = vpop.permute.xlu0 %782
      %784 = vrot.lane.b32.xlu0 %v693, 12
      %v785 = vpop.permute.xlu0 %784
      %786 = vrot.lane.b32.xlu0 %v694, 12
      %v787 = vpop.permute.xlu0 %786
      %788 = vrot.lane.b32.xlu0 %v695, 12
      %v789 = vpop.permute.xlu0 %788
      %790 = vrot.lane.b32.xlu0 %v696, 12
      %v791 = vpop.permute.xlu0 %790
      %792 = vrot.lane.b32.xlu0 %v697, 12
      %v793 = vpop.permute.xlu0 %792
      %827 = vrot.lane.b32.xlu0 %v668, 24
      %v828 = vpop.permute.xlu0 %827
      %829 = vrot.lane.b32.xlu0 %v669, 24
      %v830 = vpop.permute.xlu0 %829
      %831 = vrot.lane.b32.xlu0 %v670, 24
      %v832 = vpop.permute.xlu0 %831
      %833 = vrot.lane.b32.xlu0 %v671, 24
      %v834 = vpop.permute.xlu0 %833
      %835 = vrot.lane.b32.xlu0 %v672, 24
      %v836 = vpop.permute.xlu0 %835
      %837 = vrot.lane.b32.xlu0 %v673, 24
      %v838 = vpop.permute.xlu0 %837
      %839 = vrot.lane.b32.xlu0 %v674, 24
      %v840 = vpop.permute.xlu0 %839
      %841 = vrot.lane.b32.xlu0 %v675, 24
      %v842 = vpop.permute.xlu0 %841
      %843 = vrot.lane.b32.xlu0 %v676, 24
      %v844 = vpop.permute.xlu0 %843
      %845 = vrot.lane.b32.xlu0 %v677, 24
      %v846 = vpop.permute.xlu0 %845
      %847 = vrot.lane.b32.xlu0 %v678, 24
      %v848 = vpop.permute.xlu0 %847
      %849 = vrot.lane.b32.xlu0 %v679, 24
      %v850 = vpop.permute.xlu0 %849
      %851 = vrot.lane.b32.xlu0 %v680, 24
      %v852 = vpop.permute.xlu0 %851
      %853 = vrot.lane.b32.xlu0 %v681, 24
      %v854 = vpop.permute.xlu0 %853
      %855 = vrot.lane.b32.xlu0 %v682, 24
      %v856 = vpop.permute.xlu0 %855
      %857 = vrot.lane.b32.xlu0 %v683, 24
      %v858 = vpop.permute.xlu0 %857
      %859 = vrot.lane.b32.xlu0 %v684, 24
      %v860 = vpop.permute.xlu0 %859
      %861 = vrot.lane.b32.xlu0 %v685, 24
      %v862 = vpop.permute.xlu0 %861
      %863 = vrot.lane.b32.xlu0 %v686, 24
      %v864 = vpop.permute.xlu0 %863
      %865 = vrot.lane.b32.xlu0 %v687, 24
      %v866 = vpop.permute.xlu0 %865
      %867 = vrot.lane.b32.xlu0 %v688, 24
      %v868 = vpop.permute.xlu0 %867
      %869 = vrot.lane.b32.xlu0 %v689, 24
      %v870 = vpop.permute.xlu0 %869
      %871 = vrot.lane.b32.xlu0 %v690, 24
      %v872 = vpop.permute.xlu0 %871
      %873 = vrot.lane.b32.xlu0 %v691, 24
      %v874 = vpop.permute.xlu0 %873
      %875 = vrot.lane.b32.xlu0 %v692, 24
      %v876 = vpop.permute.xlu0 %875
      %877 = vrot.lane.b32.xlu0 %v693, 24
      %v878 = vpop.permute.xlu0 %877
      %879 = vrot.lane.b32.xlu0 %v694, 24
      %v880 = vpop.permute.xlu0 %879
      %881 = vrot.lane.b32.xlu0 %v695, 24
      %v882 = vpop.permute.xlu0 %881
      %883 = vrot.lane.b32.xlu0 %v696, 24
      %v884 = vpop.permute.xlu0 %883
      %885 = vrot.lane.b32.xlu0 %v697, 24
      %v886 = vpop.permute.xlu0 %885
      %887 = vrot.lane.b32.xlu0 0.0, 24
      %v888 = vpop.permute.xlu0 %887
      %vm920 = vcmask 97280
      %v921 = vsel %vm920, 0.0, %v731
      %v922 = vsel %vm920, 0.0, %v733
      %v923 = vsel %vm920, %v666, %v735
      %v924 = vsel %vm920, %v667, %v737
      %v925 = vsel %vm920, %v668, %v739
      %v926 = vsel %vm920, %v669, %v741
      %v927 = vsel %vm920, %v670, %v743
      %v928 = vsel %vm920, %v671, %v745
      %v929 = vsel %vm920, %v672, %v747
      %v930 = vsel %vm920, %v673, %v749
      %v931 = vsel %vm920, %v674, %v751
      %v932 = vsel %vm920, %v675, %v753
      %v933 = vsel %vm920, %v676, %v755
      %v934 = vsel %vm920, %v677, %v757
      %v935 = vsel %vm920, %v678, %v759
      %v936 = vsel %vm920, %v679, %v761
      %v937 = vsel %vm920, %v680, %v763
      %v938 = vsel %vm920, %v681, %v765
      %v939 = vsel %vm920, %v682, %v767
      %v940 = vsel %vm920, %v683, %v769
      %v941 = vsel %vm920, %v684, %v771
      %v942 = vsel %vm920, %v685, %v773
      %v943 = vsel %vm920, %v686, %v775
      %v944 = vsel %vm920, %v687, %v777
      %v945 = vsel %vm920, %v688, %v779
      %v946 = vsel %vm920, %v689, %v781
      %v947 = vsel %vm920, %v690, %v783
      %v948 = vsel %vm920, %v691, %v785
      %v949 = vsel %vm920, %v692, %v787
      %v950 = vsel %vm920, %v693, %v789
      %v951 = vsel %vm920, %v694, %v791
      %v952 = vsel %vm920, %v695, %v793
      %vm953 = vcmask 195584
      %v954 = vsel %vm953, %v921, %v828
      %v955 = vsel %vm953, %v922, %v830
      %v956 = vsel %vm953, %v923, %v832
      %v957 = vsel %vm953, %v924, %v834
      %v958 = vsel %vm953, %v925, %v836
      %v959 = vsel %vm953, %v926, %v838
      %v960 = vsel %vm953, %v927, %v840
      %v961 = vsel %vm953, %v928, %v842
      %v962 = vsel %vm953, %v929, %v844
      %v963 = vsel %vm953, %v930, %v846
      %v964 = vsel %vm953, %v931, %v848
      %v965 = vsel %vm953, %v932, %v850
      %v966 = vsel %vm953, %v933, %v852
      %v967 = vsel %vm953, %v934, %v854
      %v968 = vsel %vm953, %v935, %v856
      %v969 = vsel %vm953, %v936, %v858
      %v970 = vsel %vm953, %v937, %v860
      %v971 = vsel %vm953, %v938, %v862
      %v972 = vsel %vm953, %v939, %v864
      %v973 = vsel %vm953, %v940, %v866
      %v974 = vsel %vm953, %v941, %v868
      %v975 = vsel %vm953, %v942, %v870
      %v976 = vsel %vm953, %v943, %v872
      %v977 = vsel %vm953, %v944, %v874
      %v978 = vsel %vm953, %v945, %v876
      %v979 = vsel %vm953, %v946, %v878
      %v980 = vsel %vm953, %v947, %v880
      %v981 = vsel %vm953, %v948, %v882
      %v982 = vsel %vm953, %v949, %v884
      %v983 = vsel %vm953, %v950, %v886
      %v984 = vsel %vm953, %v951, %v888
      %v985 = vsel %vm953, %v952, %v888
      %vm986 = vcmask 293888
      %987 = vst.msk [vmem:[#allocation2] sm:$0xff] %vm986, %v954
      %988 = vst.msk [vmem:[#allocation2 + $0x8] sm:$0xff] %vm986, %v955
      %989 = vst.msk [vmem:[#allocation2 + $0x10] sm:$0xff] %vm986, %v956
      %990 = vst.msk [vmem:[#allocation2 + $0x18] sm:$0xff] %vm986, %v957
      %991 = vst.msk [vmem:[#allocation2 + $0x20] sm:$0xff] %vm986, %v958
      %992 = vst.msk [vmem:[#allocation2 + $0x28] sm:$0xff] %vm986, %v959
      %993 = vst.msk [vmem:[#allocation2 + $0x30] sm:$0xff] %vm986, %v960
      %994 = vst.msk [vmem:[#allocation2 + $0x38] sm:$0xff] %vm986, %v961
      %995 = vst.msk [vmem:[#allocation2 + $0x40] sm:$0xff] %vm986, %v962
      %996 = vst.msk [vmem:[#allocation2 + $0x48] sm:$0xff] %vm986, %v963
      %997 = vst.msk [vmem:[#allocation2 + $0x50] sm:$0xff] %vm986, %v964
      %998 = vst.msk [vmem:[#allocation2 + $0x58] sm:$0xff] %vm986, %v965
      %999 = vst.msk [vmem:[#allocation2 + $0x60] sm:$0xff] %vm986, %v966
      %1000 = vst.msk [vmem:[#allocation2 + $0x68] sm:$0xff] %vm986, %v967
      %1001 = vst.msk [vmem:[#allocation2 + $0x70] sm:$0xff] %vm986, %v968
      %1002 = vst.msk [vmem:[#allocation2 + $0x78] sm:$0xff] %vm986, %v969
      %1003 = vst.msk [vmem:[#allocation2 + $0x80] sm:$0xff] %vm986, %v970
      %1004 = vst.msk [vmem:[#allocation2 + $0x88] sm:$0xff] %vm986, %v971
      %1005 = vst.msk [vmem:[#allocation2 + $0x90] sm:$0xff] %vm986, %v972
      %1006 = vst.msk [vmem:[#allocation2 + $0x98] sm:$0xff] %vm986, %v973
      %1007 = vst.msk [vmem:[#allocation2 + $0xa0] sm:$0xff] %vm986, %v974
      %1008 = vst.msk [vmem:[#allocation2 + $0xa8] sm:$0xff] %vm986, %v975
      %1009 = vst.msk [vmem:[#allocation2 + $0xb0] sm:$0xff] %vm986, %v976
      %1010 = vst.msk [vmem:[#allocation2 + $0xb8] sm:$0xff] %vm986, %v977
      %1011 = vst.msk [vmem:[#allocation2 + $0xc0] sm:$0xff] %vm986, %v978
      %1012 = vst.msk [vmem:[#allocation2 + $0xc8] sm:$0xff] %vm986, %v979
      %1013 = vst.msk [vmem:[#allocation2 + $0xd0] sm:$0xff] %vm986, %v980
      %1014 = vst.msk [vmem:[#allocation2 + $0xd8] sm:$0xff] %vm986, %v981
      %1015 = vst.msk [vmem:[#allocation2 + $0xe0] sm:$0xff] %vm986, %v982
      %1016 = vst.msk [vmem:[#allocation2 + $0xe8] sm:$0xff] %vm986, %v983
      %1017 = vst.msk [vmem:[#allocation2 + $0xf0] sm:$0xff] %vm986, %v984
      %1018 = vst.msk [vmem:[#allocation2 + $0xf8] sm:$0xff] %vm986, %v985
      %v1019 = vld [vmem:[%s1] sm:$0xff]
      %v1020 = vld [vmem:[%s1 + $0x8] sm:$0xff]
      %v1021 = vld [vmem:[%s1 + $0x10] sm:$0xff]
      %v1022 = vld [vmem:[%s1 + $0x18] sm:$0xff]
      %v1023 = vld [vmem:[%s1 + $0x20] sm:$0xf]
      %s1024 = smul.u32 0, 16
      %s1025 = scalar_lea.vmem [#allocation2], %s1024
      %v1026 = vld [vmem:[%s1025] sm:$0xff]
      %v1027 = vld [vmem:[%s1025 + $0x8] sm:$0xff]
      %v1028 = vld [vmem:[%s1025 + $0x10] sm:$0xff]
      %v1029 = vld [vmem:[%s1025 + $0x18] sm:$0xff]
      %v1030 = vld [vmem:[%s1025 + $0x20] sm:$0xff]
      %v1031 = vld [vmem:[%s1025 + $0x28] sm:$0xff]
      %v1032 = vld [vmem:[%s1025 + $0x30] sm:$0xff]
      %v1033 = vld [vmem:[%s1025 + $0x38] sm:$0xff]
      %v1034 = vld [vmem:[%s1025 + $0x40] sm:$0xff]
      %v1035 = vld [vmem:[%s1025 + $0x48] sm:$0xff]
      %v1036 = vld [vmem:[%s1025 + $0x50] sm:$0xff]
      %v1037 = vld [vmem:[%s1025 + $0x58] sm:$0xff]
      %v1038 = vld [vmem:[%s1025 + $0x60] sm:$0xff]
      %v1039 = vld [vmem:[%s1025 + $0x68] sm:$0xff]
      %v1040 = vld [vmem:[%s1025 + $0x70] sm:$0xff]
      %v1041 = vld [vmem:[%s1025 + $0x78] sm:$0xff]
      %v1043 = vsel %vm986, %v1026, 0
      %v1046 = vsel %vm986, %v1027, 0
      %v1049 = vsel %vm986, %v1028, 0
      %v1052 = vsel %vm986, %v1029, 0
      %v1055 = vsel %vm986, %v1030, 0
      %v1058 = vsel %vm986, %v1031, 0
      %v1061 = vsel %vm986, %v1032, 0
      %v1064 = vsel %vm986, %v1033, 0
      %v1067 = vsel %vm986, %v1034, 0
      %v1070 = vsel %vm986, %v1035, 0
      %v1073 = vsel %vm986, %v1036, 0
      %v1076 = vsel %vm986, %v1037, 0
      %v1079 = vsel %vm986, %v1038, 0
      %v1082 = vsel %vm986, %v1039, 0
      %v1085 = vsel %vm986, %v1040, 0
      %v1088 = vsel %vm986, %v1041, 0
      %vm1090 = vcmask 1043456
      %v1092 = vsel %vm1090, %v1023, 0
      %1094 = vmatpush.msra.mxu0 0.0
      %1095 = vmatpush.msra.mxu0 0.0
      %1096 = vmatpush.msra.mxu0 0.0
      %1097 = vmatpush.msra.mxu0 0.0
      %1098 = vmatpush.msra.mxu0 0.0
      %1099 = vmatpush.msra.mxu0 0.0
      %1100 = vmatpush.msra.mxu0 0.0
      %1101 = vmatpush.msra.mxu0 0.0
      %1102 = vmatpush.msra.mxu0 0.0
      %1103 = vmatpush.msra.mxu0 0.0
      %1104 = vmatpush.msra.mxu0 0.0
      %1105 = vmatpush.msra.mxu0 %v1092
      %1106 = vmatpush.msra.mxu0 %v1022
      %1107 = vmatpush.msra.mxu0 %v1021
      %1108 = vmatpush.msra.mxu0 %v1020
      %1109 = vmatpush.msra.mxu0 %v1019
      %1110 = vmatmul.f32.gmra.mxu0 %v1043
      %v1111 = vpop.f32.mrf.mxu0
      %v1112 = vadd.f32 0.0, %v1111
      %1113 = vmatmul.f32.gmra.mxu0 %v1046
      %v1114 = vpop.f32.mrf.mxu0
      %v1115 = vadd.f32 0.0, %v1114
      %1116 = vmatmul.f32.gmra.mxu0 %v1049
      %v1117 = vpop.f32.mrf.mxu0
      %v1118 = vadd.f32 0.0, %v1117
      %1119 = vmatmul.f32.gmra.mxu0 %v1052
      %v1120 = vpop.f32.mrf.mxu0
      %v1121 = vadd.f32 0.0, %v1120
      %1122 = vmatmul.f32.gmra.mxu0 %v1055
      %v1123 = vpop.f32.mrf.mxu0
      %v1124 = vadd.f32 0.0, %v1123
      %1125 = vmatmul.f32.gmra.mxu0 %v1058
      %v1126 = vpop.f32.mrf.mxu0
      %v1127 = vadd.f32 0.0, %v1126
      %1128 = vmatmul.f32.gmra.mxu0 %v1061
      %v1129 = vpop.f32.mrf.mxu0
      %v1130 = vadd.f32 0.0, %v1129
      %1131 = vmatmul.f32.gmra.mxu0 %v1064
      %v1132 = vpop.f32.mrf.mxu0
      %v1133 = vadd.f32 0.0, %v1132
      %1134 = vmatmul.f32.gmra.mxu0 %v1067
      %v1135 = vpop.f32.mrf.mxu0
      %v1136 = vadd.f32 0.0, %v1135
      %1137 = vmatmul.f32.gmra.mxu0 %v1070
      %v1138 = vpop.f32.mrf.mxu0
      %v1139 = vadd.f32 0.0, %v1138
      %1140 = vmatmul.f32.gmra.mxu0 %v1073
      %v1141 = vpop.f32.mrf.mxu0
      %v1142 = vadd.f32 0.0, %v1141
      %1143 = vmatmul.f32.gmra.mxu0 %v1076
      %v1144 = vpop.f32.mrf.mxu0
      %v1145 = vadd.f32 0.0, %v1144
      %1146 = vmatmul.f32.gmra.mxu0 %v1079
      %v1147 = vpop.f32.mrf.mxu0
      %v1148 = vadd.f32 0.0, %v1147
      %1149 = vmatmul.f32.gmra.mxu0 %v1082
      %v1150 = vpop.f32.mrf.mxu0
      %v1151 = vadd.f32 0.0, %v1150
      %1152 = vmatmul.f32.gmra.mxu0 %v1085
      %v1153 = vpop.f32.mrf.mxu0
      %v1154 = vadd.f32 0.0, %v1153
      %1155 = vmatmul.f32.gmra.mxu0 %v1088
      %v1156 = vpop.f32.mrf.mxu0
      %v1157 = vadd.f32 0.0, %v1156
      %1158 = vdwg.mxu0
      %1159 = vst.msk [vmem:[%s177] sm:$0xff] %vm632, %v1112
      %1160 = vst.msk [vmem:[%s177 + $0x8] sm:$0xff] %vm632, %v1115
      %1161 = vst.msk [vmem:[%s177 + $0x10] sm:$0xff] %vm632, %v1118
      %1162 = vst.msk [vmem:[%s177 + $0x18] sm:$0xff] %vm632, %v1121
      %1163 = vst.msk [vmem:[%s177 + $0x20] sm:$0xff] %vm632, %v1124
      %1164 = vst.msk [vmem:[%s177 + $0x28] sm:$0xff] %vm632, %v1127
      %1165 = vst.msk [vmem:[%s177 + $0x30] sm:$0xff] %vm632, %v1130
      %1166 = vst.msk [vmem:[%s177 + $0x38] sm:$0xff] %vm632, %v1133
      %1167 = vst.msk [vmem:[%s177 + $0x40] sm:$0xff] %vm632, %v1136
      %1168 = vst.msk [vmem:[%s177 + $0x48] sm:$0xff] %vm632, %v1139
      %1169 = vst.msk [vmem:[%s177 + $0x50] sm:$0xff] %vm632, %v1142
      %1170 = vst.msk [vmem:[%s177 + $0x58] sm:$0xff] %vm632, %v1145
      %1171 = vst.msk [vmem:[%s177 + $0x60] sm:$0xff] %vm632, %v1148
      %1172 = vst.msk [vmem:[%s177 + $0x68] sm:$0xff] %vm632, %v1151
      %1173 = vst.msk [vmem:[%s177 + $0x70] sm:$0xff] %vm632, %v1154
      %1174 = vst.msk [vmem:[%s177 + $0x78] sm:$0xff] %vm632, %v1157
      %v1175 = vsel %vm632, %v1112, 0.0
      %v1176 = vsel %vm632, %v1115, 0.0
      %v1177 = vadd.f32 %v1175, %v1176
      %v1178 = vsel %vm632, %v1118, 0.0
      %v1179 = vadd.f32 %v1177, %v1178
      %v1180 = vsel %vm632, %v1121, 0.0
      %v1181 = vadd.f32 %v1179, %v1180
      %v1182 = vsel %vm632, %v1124, 0.0
      %v1183 = vadd.f32 %v1181, %v1182
      %v1184 = vsel %vm632, %v1127, 0.0
      %v1185 = vadd.f32 %v1183, %v1184
      %v1186 = vsel %vm632, %v1130, 0.0
      %v1187 = vadd.f32 %v1185, %v1186
      %v1188 = vsel %vm632, %v1133, 0.0
      %v1189 = vadd.f32 %v1187, %v1188
      %v1190 = vsel %vm632, %v1136, 0.0
      %v1191 = vadd.f32 %v1189, %v1190
      %v1192 = vsel %vm632, %v1139, 0.0
      %v1193 = vadd.f32 %v1191, %v1192
      %v1194 = vsel %vm632, %v1142, 0.0
      %v1195 = vadd.f32 %v1193, %v1194
      %v1196 = vsel %vm632, %v1145, 0.0
      %v1197 = vadd.f32 %v1195, %v1196
      %v1198 = vsel %vm632, %v1148, 0.0
      %v1199 = vadd.f32 %v1197, %v1198
      %v1200 = vsel %vm632, %v1151, 0.0
      %v1201 = vadd.f32 %v1199, %v1200
      %v1202 = vsel %vm632, %v1154, 0.0
      %v1203 = vadd.f32 %v1201, %v1202
      %v1204 = vsel %vm632, %v1157, 0.0
      %v1205 = vadd.f32 %v1203, %v1204
      %v1206 = vrot.slane %v1205, 4
      %v1207 = vadd.f32 %v1205, %v1206
      %v1208 = vrot.slane %v1207, 2
      %v1209 = vadd.f32 %v1207, %v1208
      %v1210 = vrot.slane %v1209, 1
      %v1211 = vadd.f32 %v1209, %v1210
      %v1212 = vadd.f32 %v1211, 0.0
      %v1213 = vmul.f32 %v1112, %v1112
      %v1214 = vmul.f32 %v1115, %v1115
      %v1215 = vmul.f32 %v1118, %v1118
      %v1216 = vmul.f32 %v1121, %v1121
      %v1217 = vmul.f32 %v1124, %v1124
      %v1218 = vmul.f32 %v1127, %v1127
      %v1219 = vmul.f32 %v1130, %v1130
      %v1220 = vmul.f32 %v1133, %v1133
      %v1221 = vmul.f32 %v1136, %v1136
      %v1222 = vmul.f32 %v1139, %v1139
      %v1223 = vmul.f32 %v1142, %v1142
      %v1224 = vmul.f32 %v1145, %v1145
      %v1225 = vmul.f32 %v1148, %v1148
      %v1226 = vmul.f32 %v1151, %v1151
      %v1227 = vmul.f32 %v1154, %v1154
      %v1228 = vmul.f32 %v1157, %v1157
      %v1229 = vsel %vm632, %v1213, 0.0
      %v1230 = vsel %vm632, %v1214, 0.0
      %v1231 = vadd.f32 %v1229, %v1230
      %v1232 = vsel %vm632, %v1215, 0.0
      %v1233 = vadd.f32 %v1231, %v1232
      %v1234 = vsel %vm632, %v1216, 0.0
      %v1235 = vadd.f32 %v1233, %v1234
      %v1236 = vsel %vm632, %v1217, 0.0
      %v1237 = vadd.f32 %v1235, %v1236
      %v1238 = vsel %vm632, %v1218, 0.0
      %v1239 = vadd.f32 %v1237, %v1238
      %v1240 = vsel %vm632, %v1219, 0.0
      %v1241 = vadd.f32 %v1239, %v1240
      %v1242 = vsel %vm632, %v1220, 0.0
      %v1243 = vadd.f32 %v1241, %v1242
      %v1244 = vsel %vm632, %v1221, 0.0
      %v1245 = vadd.f32 %v1243, %v1244
      %v1246 = vsel %vm632, %v1222, 0.0
      %v1247 = vadd.f32 %v1245, %v1246
      %v1248 = vsel %vm632, %v1223, 0.0
      %v1249 = vadd.f32 %v1247, %v1248
      %v1250 = vsel %vm632, %v1224, 0.0
      %v1251 = vadd.f32 %v1249, %v1250
      %v1252 = vsel %vm632, %v1225, 0.0
      %v1253 = vadd.f32 %v1251, %v1252
      %v1254 = vsel %vm632, %v1226, 0.0
      %v1255 = vadd.f32 %v1253, %v1254
      %v1256 = vsel %vm632, %v1227, 0.0
      %v1257 = vadd.f32 %v1255, %v1256
      %v1258 = vsel %vm632, %v1228, 0.0
      %v1259 = vadd.f32 %v1257, %v1258
      %v1260 = vrot.slane %v1259, 4
      %v1261 = vadd.f32 %v1259, %v1260
      %v1262 = vrot.slane %v1261, 2
      %v1263 = vadd.f32 %v1261, %v1262
      %v1264 = vrot.slane %v1263, 1
      %v1265 = vadd.f32 %v1263, %v1264
      %v1266 = vadd.f32 %v1265, 0.0
      %s1267 = smul.u32 8, 16
      %s1268 = scalar_lea.vmem [#allocation2], %s1267
      %v1269 = vld [vmem:[%s1268] sm:$0xff]
      %v1270 = vld [vmem:[%s1268 + $0x8] sm:$0xff]
      %v1271 = vld [vmem:[%s1268 + $0x10] sm:$0xff]
      %v1272 = vld [vmem:[%s1268 + $0x18] sm:$0xff]
      %v1273 = vld [vmem:[%s1268 + $0x20] sm:$0xff]
      %v1274 = vld [vmem:[%s1268 + $0x28] sm:$0xff]
      %v1275 = vld [vmem:[%s1268 + $0x30] sm:$0xff]
      %v1276 = vld [vmem:[%s1268 + $0x38] sm:$0xff]
      %v1277 = vld [vmem:[%s1268 + $0x40] sm:$0xff]
      %v1278 = vld [vmem:[%s1268 + $0x48] sm:$0xff]
      %v1279 = vld [vmem:[%s1268 + $0x50] sm:$0xff]
      %v1280 = vld [vmem:[%s1268 + $0x58] sm:$0xff]
      %v1281 = vld [vmem:[%s1268 + $0x60] sm:$0xff]
      %v1282 = vld [vmem:[%s1268 + $0x68] sm:$0xff]
      %v1283 = vld [vmem:[%s1268 + $0x70] sm:$0xff]
      %v1284 = vld [vmem:[%s1268 + $0x78] sm:$0xff]
      %v1286 = vsel %vm986, %v1269, 0
      %v1289 = vsel %vm986, %v1270, 0
      %v1292 = vsel %vm986, %v1271, 0
      %v1295 = vsel %vm986, %v1272, 0
      %v1298 = vsel %vm986, %v1273, 0
      %v1301 = vsel %vm986, %v1274, 0
      %v1304 = vsel %vm986, %v1275, 0
      %v1307 = vsel %vm986, %v1276, 0
      %v1310 = vsel %vm986, %v1277, 0
      %v1313 = vsel %vm986, %v1278, 0
      %v1316 = vsel %vm986, %v1279, 0
      %v1319 = vsel %vm986, %v1280, 0
      %v1322 = vsel %vm986, %v1281, 0
      %v1325 = vsel %vm986, %v1282, 0
      %v1328 = vsel %vm986, %v1283, 0
      %v1331 = vsel %vm986, %v1284, 0
      %1333 = vmatpush.msra.mxu0 0.0
      %1334 = vmatpush.msra.mxu0 0.0
      %1335 = vmatpush.msra.mxu0 0.0
      %1336 = vmatpush.msra.mxu0 0.0
      %1337 = vmatpush.msra.mxu0 0.0
      %1338 = vmatpush.msra.mxu0 0.0
      %1339 = vmatpush.msra.mxu0 0.0
      %1340 = vmatpush.msra.mxu0 0.0
      %1341 = vmatpush.msra.mxu0 0.0
      %1342 = vmatpush.msra.mxu0 0.0
      %1343 = vmatpush.msra.mxu0 0.0
      %1344 = vmatpush.msra.mxu0 %v1092
      %1345 = vmatpush.msra.mxu0 %v1022
      %1346 = vmatpush.msra.mxu0 %v1021
      %1347 = vmatpush.msra.mxu0 %v1020
      %1348 = vmatpush.msra.mxu0 %v1019
      %1349 = vmatmul.f32.gmra.mxu0 %v1286
      %v1350 = vpop.f32.mrf.mxu0
      %v1351 = vadd.f32 0.0, %v1350
      %1352 = vmatmul.f32.gmra.mxu0 %v1289
      %v1353 = vpop.f32.mrf.mxu0
      %v1354 = vadd.f32 0.0, %v1353
      %1355 = vmatmul.f32.gmra.mxu0 %v1292
      %v1356 = vpop.f32.mrf.mxu0
      %v1357 = vadd.f32 0.0, %v1356
      %1358 = vmatmul.f32.gmra.mxu0 %v1295
      %v1359 = vpop.f32.mrf.mxu0
      %v1360 = vadd.f32 0.0, %v1359
      %1361 = vmatmul.f32.gmra.mxu0 %v1298
      %v1362 = vpop.f32.mrf.mxu0
      %v1363 = vadd.f32 0.0, %v1362
      %1364 = vmatmul.f32.gmra.mxu0 %v1301
      %v1365 = vpop.f32.mrf.mxu0
      %v1366 = vadd.f32 0.0, %v1365
      %1367 = vmatmul.f32.gmra.mxu0 %v1304
      %v1368 = vpop.f32.mrf.mxu0
      %v1369 = vadd.f32 0.0, %v1368
      %1370 = vmatmul.f32.gmra.mxu0 %v1307
      %v1371 = vpop.f32.mrf.mxu0
      %v1372 = vadd.f32 0.0, %v1371
      %1373 = vmatmul.f32.gmra.mxu0 %v1310
      %v1374 = vpop.f32.mrf.mxu0
      %v1375 = vadd.f32 0.0, %v1374
      %1376 = vmatmul.f32.gmra.mxu0 %v1313
      %v1377 = vpop.f32.mrf.mxu0
      %v1378 = vadd.f32 0.0, %v1377
      %1379 = vmatmul.f32.gmra.mxu0 %v1316
      %v1380 = vpop.f32.mrf.mxu0
      %v1381 = vadd.f32 0.0, %v1380
      %1382 = vmatmul.f32.gmra.mxu0 %v1319
      %v1383 = vpop.f32.mrf.mxu0
      %v1384 = vadd.f32 0.0, %v1383
      %1385 = vmatmul.f32.gmra.mxu0 %v1322
      %v1386 = vpop.f32.mrf.mxu0
      %v1387 = vadd.f32 0.0, %v1386
      %1388 = vmatmul.f32.gmra.mxu0 %v1325
      %v1389 = vpop.f32.mrf.mxu0
      %v1390 = vadd.f32 0.0, %v1389
      %1391 = vmatmul.f32.gmra.mxu0 %v1328
      %v1392 = vpop.f32.mrf.mxu0
      %v1393 = vadd.f32 0.0, %v1392
      %1394 = vmatmul.f32.gmra.mxu0 %v1331
      %v1395 = vpop.f32.mrf.mxu0
      %v1396 = vadd.f32 0.0, %v1395
      %1397 = vdwg.mxu0
      %s1398 = scalar_lea.vmem %s177, 128
      %1399 = vst.msk [vmem:[%s1398] sm:$0xff] %vm632, %v1351
      %1400 = vst.msk [vmem:[%s1398 + $0x8] sm:$0xff] %vm632, %v1354
      %1401 = vst.msk [vmem:[%s1398 + $0x10] sm:$0xff] %vm632, %v1357
      %1402 = vst.msk [vmem:[%s1398 + $0x18] sm:$0xff] %vm632, %v1360
      %1403 = vst.msk [vmem:[%s1398 + $0x20] sm:$0xff] %vm632, %v1363
      %1404 = vst.msk [vmem:[%s1398 + $0x28] sm:$0xff] %vm632, %v1366
      %1405 = vst.msk [vmem:[%s1398 + $0x30] sm:$0xff] %vm632, %v1369
      %1406 = vst.msk [vmem:[%s1398 + $0x38] sm:$0xff] %vm632, %v1372
      %1407 = vst.msk [vmem:[%s1398 + $0x40] sm:$0xff] %vm632, %v1375
      %1408 = vst.msk [vmem:[%s1398 + $0x48] sm:$0xff] %vm632, %v1378
      %1409 = vst.msk [vmem:[%s1398 + $0x50] sm:$0xff] %vm632, %v1381
      %1410 = vst.msk [vmem:[%s1398 + $0x58] sm:$0xff] %vm632, %v1384
      %1411 = vst.msk [vmem:[%s1398 + $0x60] sm:$0xff] %vm632, %v1387
      %1412 = vst.msk [vmem:[%s1398 + $0x68] sm:$0xff] %vm632, %v1390
      %1413 = vst.msk [vmem:[%s1398 + $0x70] sm:$0xff] %vm632, %v1393
      %1414 = vst.msk [vmem:[%s1398 + $0x78] sm:$0xff] %vm632, %v1396
      %v1415 = vsel %vm632, %v1351, 0.0
      %v1416 = vsel %vm632, %v1354, 0.0
      %v1417 = vadd.f32 %v1415, %v1416
      %v1418 = vsel %vm632, %v1357, 0.0
      %v1419 = vadd.f32 %v1417, %v1418
      %v1420 = vsel %vm632, %v1360, 0.0
      %v1421 = vadd.f32 %v1419, %v1420
      %v1422 = vsel %vm632, %v1363, 0.0
      %v1423 = vadd.f32 %v1421, %v1422
      %v1424 = vsel %vm632, %v1366, 0.0
      %v1425 = vadd.f32 %v1423, %v1424
      %v1426 = vsel %vm632, %v1369, 0.0
      %v1427 = vadd.f32 %v1425, %v1426
      %v1428 = vsel %vm632, %v1372, 0.0
      %v1429 = vadd.f32 %v1427, %v1428
      %v1430 = vsel %vm632, %v1375, 0.0
      %v1431 = vadd.f32 %v1429, %v1430
      %v1432 = vsel %vm632, %v1378, 0.0
      %v1433 = vadd.f32 %v1431, %v1432
      %v1434 = vsel %vm632, %v1381, 0.0
      %v1435 = vadd.f32 %v1433, %v1434
      %v1436 = vsel %vm632, %v1384, 0.0
      %v1437 = vadd.f32 %v1435, %v1436
      %v1438 = vsel %vm632, %v1387, 0.0
      %v1439 = vadd.f32 %v1437, %v1438
      %v1440 = vsel %vm632, %v1390, 0.0
      %v1441 = vadd.f32 %v1439, %v1440
      %v1442 = vsel %vm632, %v1393, 0.0
      %v1443 = vadd.f32 %v1441, %v1442
      %v1444 = vsel %vm632, %v1396, 0.0
      %v1445 = vadd.f32 %v1443, %v1444
      %v1446 = vrot.slane %v1445, 4
      %v1447 = vadd.f32 %v1445, %v1446
      %v1448 = vrot.slane %v1447, 2
      %v1449 = vadd.f32 %v1447, %v1448
      %v1450 = vrot.slane %v1449, 1
      %v1451 = vadd.f32 %v1449, %v1450
      %v1452 = vadd.f32 %v1212, %v1451
      %v1453 = vmul.f32 %v1351, %v1351
      %v1454 = vmul.f32 %v1354, %v1354
      %v1455 = vmul.f32 %v1357, %v1357
      %v1456 = vmul.f32 %v1360, %v1360
      %v1457 = vmul.f32 %v1363, %v1363
      %v1458 = vmul.f32 %v1366, %v1366
      %v1459 = vmul.f32 %v1369, %v1369
      %v1460 = vmul.f32 %v1372, %v1372
      %v1461 = vmul.f32 %v1375, %v1375
      %v1462 = vmul.f32 %v1378, %v1378
      %v1463 = vmul.f32 %v1381, %v1381
      %v1464 = vmul.f32 %v1384, %v1384
      %v1465 = vmul.f32 %v1387, %v1387
      %v1466 = vmul.f32 %v1390, %v1390
      %v1467 = vmul.f32 %v1393, %v1393
      %v1468 = vmul.f32 %v1396, %v1396
      %v1469 = vsel %vm632, %v1453, 0.0
      %v1470 = vsel %vm632, %v1454, 0.0
      %v1471 = vadd.f32 %v1469, %v1470
      %v1472 = vsel %vm632, %v1455, 0.0
      %v1473 = vadd.f32 %v1471, %v1472
      %v1474 = vsel %vm632, %v1456, 0.0
      %v1475 = vadd.f32 %v1473, %v1474
      %v1476 = vsel %vm632, %v1457, 0.0
      %v1477 = vadd.f32 %v1475, %v1476
      %v1478 = vsel %vm632, %v1458, 0.0
      %v1479 = vadd.f32 %v1477, %v1478
      %v1480 = vsel %vm632, %v1459, 0.0
      %v1481 = vadd.f32 %v1479, %v1480
      %v1482 = vsel %vm632, %v1460, 0.0
      %v1483 = vadd.f32 %v1481, %v1482
      %v1484 = vsel %vm632, %v1461, 0.0
      %v1485 = vadd.f32 %v1483, %v1484
      %v1486 = vsel %vm632, %v1462, 0.0
      %v1487 = vadd.f32 %v1485, %v1486
      %v1488 = vsel %vm632, %v1463, 0.0
      %v1489 = vadd.f32 %v1487, %v1488
      %v1490 = vsel %vm632, %v1464, 0.0
      %v1491 = vadd.f32 %v1489, %v1490
      %v1492 = vsel %vm632, %v1465, 0.0
      %v1493 = vadd.f32 %v1491, %v1492
      %v1494 = vsel %vm632, %v1466, 0.0
      %v1495 = vadd.f32 %v1493, %v1494
      %v1496 = vsel %vm632, %v1467, 0.0
      %v1497 = vadd.f32 %v1495, %v1496
      %v1498 = vsel %vm632, %v1468, 0.0
      %v1499 = vadd.f32 %v1497, %v1498
      %v1500 = vrot.slane %v1499, 4
      %v1501 = vadd.f32 %v1499, %v1500
      %v1502 = vrot.slane %v1501, 2
      %v1503 = vadd.f32 %v1501, %v1502
      %v1504 = vrot.slane %v1503, 1
      %v1505 = vadd.f32 %v1503, %v1504
      %v1506 = vadd.f32 %v1266, %v1505
      %v1507 = vsel %vm246, %v1452, %v1506
      %vm1508 = vcmask 25600
      %1509 = vst.msk [vmem:[%s181] sm:$0x3] %vm1508, %v1507
      %p1510 = scmp.lt.s32.totalorder %s15, 1
      %s1511 = scalar_select %p1510, %s15, 1
      %s1512 = smul.addr %s1511, 32
      %s1513 = smul.addr %s1512, 8
      %s1514 = scalar_lea.vmem %s2, %s1513
      %p1515 = scmp.lt.s32.totalorder %s15, 1
      %s1516 = scalar_select %p1515, %s15, 1
      %s1517 = smul.addr %s1516, 2
      %s1518 = scalar_lea.vmem %s3, %s1517
      // Predicated region
      $region29: #{residual_forward.3} parent=27 // pred_check
        %p1519 = pneg %p80
      $region30: #{residual_forward.3} parent=27 // pred_check_branch
        %1521 = sbr.rel (%p1519) target = $region32
      $region31: #{residual_forward.3} parent=27 // pred_region
        _
      $region32: #{residual_forward.3} parent=27 // pred_fallthru
        _
      // Predicated region
      $region33: #{residual_forward.3} parent=27 // pred_check
        %p1522 = pneg %p106
      $region34: #{residual_forward.3} parent=27 // pred_check_branch
        %1524 = sbr.rel (%p1522) target = $region36
      $region35: #{residual_forward.3} parent=27 // pred_region
        _
      $region36: #{residual_forward.3} parent=27 // pred_fallthru
        _
    $region28: #{residual_forward.3} parent=5 // pred_fallthru
      _
    %p1525 = scmp.le.s32.totalorder 2, %s10
    // Predicated region
    $region37: #{residual_forward.3} parent=5 // pred_check
      %p1526 = pneg %p1525
    $region38: #{residual_forward.3} parent=5 // pred_check_branch
      %1528 = sbr.rel (%p1526) target = $region40
    $region39: #{residual_forward.3} parent=5 // pred_region
      %s1529 = ssub.s32 %s10, 2
      // Predicated region
      $region41: #{residual_forward.3} parent=39 // pred_check
        %p1530 = pneg %p86
      $region42: #{residual_forward.3} parent=39 // pred_check_branch
        %1532 = sbr.rel (%p1530) target = $region44
      $region43: #{residual_forward.3} parent=39 // pred_region
        %p1533 = scmp.lt.s32.totalorder %s16, 1
        %s1534 = scalar_select %p1533, %s16, 1
        %s1535 = smul.addr %s1534, 32
        %s1536 = smul.addr %s1535, 8
        %s1537 = scalar_lea.vmem %s2, %s1536
      $region44: #{residual_forward.3} parent=39 // pred_fallthru
        _
      // Predicated region
      $region45: #{residual_forward.3} parent=39 // pred_check
        %p1538 = pneg %p112
      $region46: #{residual_forward.3} parent=39 // pred_check_branch
        %1540 = sbr.rel (%p1538) target = $region48
      $region47: #{residual_forward.3} parent=39 // pred_region
        %p1541 = scmp.lt.s32.totalorder %s16, 1
        %s1542 = scalar_select %p1541, %s16, 1
        %s1543 = smul.addr %s1542, 2
        %s1544 = scalar_lea.vmem %s3, %s1543
      $region48: #{residual_forward.3} parent=39 // pred_fallthru
        _
    $region40: #{residual_forward.3} parent=5 // pred_fallthru
      _
  $region6: #{residual_forward.3} parent=0 // loop_footer
    %s14 = sadd.s32 1, %s10
  $region7: #{residual_forward.3} parent=0 // loop_footer_branch
    %9 = sbr.rel target = $region3
  $region8: #{residual_forward.3} parent=0 // loop_exit
    _

// kernel: residual_forward.4
$region0: #{residual_forward.4}
  #allocation0 [shape = 'u32[]', space=smem, size = 0x4, offset = 0x4, fixed_abs, tag = 'smem constant byte address 0x4 - core index']
  #allocation1 [shape = 'u32[72,128]{1,0:T(1,128)}', space=vmem, size = 0x9000, scoped, tag = 'internal scratch']
  #allocation2 [shape = 'f32[16,16,4]{2,1,0:T(8,128)}', space=vmem, size = 0x20000, scoped, tag = 'scratch operand']
  #allocation3 [shape = 'f32[16,16,36]{2,1,0:T(8,128)}', space=vmem, size = 0x20000, scoped, tag = 'scratch operand']
  %s0 = inlined_call_operand.vmem [shape: f32[2,256,4], index: 0, kind: input, shape index: {}]
  %s1 = inlined_call_operand.vmem [shape: f32[1,4], index: 1, kind: input, shape index: {}]
  %s2 = inlined_call_operand.vmem [shape: f32[1,4], index: 2, kind: input, shape index: {}]
  %s3 = inlined_call_operand.vmem [shape: f32[36,4], index: 3, kind: input, shape index: {}]
  %s4 = inlined_call_operand.vmem [shape: f32[2,256,4], index: 4, kind: output, shape index: {0}]
  %s5 = inlined_call_operand.vmem [shape: f32[2,2,4], index: 5, kind: output, shape index: {1}]
  %6 = xla_tuple %s4, %s5
  %s7 = sld [smem:[#allocation0]]
  $region57: #{residual_forward.4} parent=0
    _
  %s9 = ssub.s32 1, %s7
  %s10 = scalar_select 0, %s9, %s7
  loop: start=0, step=1, limit=4
  $region2: #{residual_forward.4} parent=0 // loop_pre_header
    _
  $region3: #{residual_forward.4} parent=0 // loop_header
    %s12 = sphi 0, %s16
    %p13 = scmp.ge.s32.totalorder %s12, 4
    %s22 = sphi 0, %s24
    %s25 = sphi 0, %s22
    %s26 = sphi 0, %s25
    %s42 = sphi 0, %s26
    %s46 = sphi 0, %s46
    %s48 = sphi 0, %s46
    %s49 = sphi 0, %s48
    %s63 = sphi 0, %s49
    %s67 = sphi 0, %s67
    %s69 = sphi 0, %s67
    %s70 = sphi 0, %s69
    %s84 = sphi 0, %s70
    %s88 = sphi 0, %s88
    %s90 = sphi 0, %s88
    %s91 = sphi 0, %s90
    %s105 = sphi 0, %s91
    %s111 = sphi 0, %s113
    %s114 = sphi 0, %s111
    %s115 = sphi 0, %s114
    %s131 = sphi 0, %s115
    %s137 = sphi 0, %s139
    %s140 = sphi 0, %s137
    %s141 = sphi 0, %s140
    %s157 = sphi 0, %s141
  $region4: #{residual_forward.4} parent=0 // loop_header_branch
    %15 = sbr.rel (%p13) target = $region8
  $region5: #{residual_forward.4} parent=0 // loop_body
    %s17 = ssub.s32 %s12, 1
    %s18 = ssub.s32 %s12, 2
    %s19 = sadd.s32 %s12, 1
    %s20 = ssub.s32 %s12, %s19
    %p21 = scmp.eq.s32.totalorder %s20, 0
    %s23 = sadd.s32 %s22, 1
    %s24 = scalar_select %p21, %s22, %s23
    %p27 = pneg %p21
    %p28 = scmp.eq.s32.totalorder %s12, 1
    %p29 = por %p27, %p28
    %p30 = scmp.ne.s32.totalorder %s22, %s25
    %p31 = scmp.eq.s32.totalorder %s12, 0
    %p32 = por %p30, %p31
    %p33 = scmp.ne.s32.totalorder %s22, %s25
    %p34 = scmp.eq.s32.totalorder %s17, 1
    %p35 = por %p33, %p34
    %p36 = scmp.ne.s32.totalorder %s25, %s26
    %p37 = scmp.eq.s32.totalorder %s17, 0
    %p38 = por %p36, %p37
    %p39 = scmp.ne.s32.totalorder %s25, %s26
    %p40 = scmp.eq.s32.totalorder %s18, 1
    %p41 = por %p39, %p40
    %p43 = scmp.ne.s32.totalorder %s26, %s42
    %p44 = scmp.eq.s32.totalorder %s18, 0
    %p45 = por %p43, %p44
    %s47 = sadd.s32 %s46, 1
    %p50 = scmp.eq.s32.totalorder %s12, 1
    %p51 = scmp.ne.s32.totalorder %s46, %s48
    %p52 = scmp.eq.s32.totalorder %s12, 0
    %p53 = por %p51, %p52
    %p54 = scmp.ne.s32.totalorder %s46, %s48
    %p55 = scmp.eq.s32.totalorder %s17, 1
    %p56 = por %p54, %p55
    %p57 = scmp.ne.s32.totalorder %s48, %s49
    %p58 = scmp.eq.s32.totalorder %s17, 0
    %p59 = por %p57, %p58
    %p60 = scmp.ne.s32.totalorder %s48, %s49
    %p61 = scmp.eq.s32.totalorder %s18, 1
    %p62 = por %p60, %p61
    %p64 = scmp.ne.s32.totalorder %s49, %s63
    %p65 = scmp.eq.s32.totalorder %s18, 0
    %p66 = por %p64, %p65
    %s68 = sadd.s32 %s67, 1
    %p71 = scmp.eq.s32.totalorder %s12, 1
    %p72 = scmp.ne.s32.totalorder %s67, %s69
    %p73 = scmp.eq.s32.totalorder %s12, 0
    %p74 = por %p72, %p73
    %p75 = scmp.ne.s32.totalorder %s67, %s69
    %p76 = scmp.eq.s32.totalorder %s17, 1
    %p77 = por %p75, %p76
    %p78 = scmp.ne.s32.totalorder %s69, %s70
    %p79 = scmp.eq.s32.totalorder %s17, 0
    %p80 = por %p78, %p79
    %p81 = scmp.ne.s32.totalorder %s69, %s70
    %p82 = scmp.eq.s32.totalorder %s18, 1
    %p83 = por %p81, %p82
    %p85 = scmp.ne.s32.totalorder %s70, %s84
    %p86 = scmp.eq.s32.totalorder %s18, 0
    %p87 = por %p85, %p86
    %s89 = sadd.s32 %s88, 1
    %p92 = scmp.eq.s32.totalorder %s12, 1
    %p93 = scmp.ne.s32.totalorder %s88, %s90
    %p94 = scmp.eq.s32.totalorder %s12, 0
    %p95 = por %p93, %p94
    %p96 = scmp.ne.s32.totalorder %s88, %s90
    %p97 = scmp.eq.s32.totalorder %s17, 1
    %p98 = por %p96, %p97
    %p99 = scmp.ne.s32.totalorder %s90, %s91
    %p100 = scmp.eq.s32.totalorder %s17, 0
    %p101 = por %p99, %p100
    %p102 = scmp.ne.s32.totalorder %s90, %s91
    %p103 = scmp.eq.s32.totalorder %s18, 1
    %p104 = por %p102, %p103
    %p106 = scmp.ne.s32.totalorder %s91, %s105
    %p107 = scmp.eq.s32.totalorder %s18, 0
    %p108 = por %p106, %p107
    %s109 = ssub.s32 %s12, %s19
    %p110 = scmp.eq.s32.totalorder %s109, 0
    %s112 = sadd.s32 %s111, 1
    %s113 = scalar_select %p110, %s111, %s112
    %p116 = pneg %p110
    %p117 = scmp.eq.s32.totalorder %s12, 1
    %p118 = por %p116, %p117
    %p119 = scmp.ne.s32.totalorder %s111, %s114
    %p120 = scmp.eq.s32.totalorder %s12, 0
    %p121 = por %p119, %p120
    %p122 = scmp.ne.s32.totalorder %s111, %s114
    %p123 = scmp.eq.s32.totalorder %s17, 1
    %p124 = por %p122, %p123
    %p125 = scmp.ne.s32.totalorder %s114, %s115
    %p126 = scmp.eq.s32.totalorder %s17, 0
    %p127 = por %p125, %p126
    %p128 = scmp.ne.s32.totalorder %s114, %s115
    %p129 = scmp.eq.s32.totalorder %s18, 1
    %p130 = por %p128, %p129
    %p132 = scmp.ne.s32.totalorder %s115, %s131
    %p133 = scmp.eq.s32.totalorder %s18, 0
    %p134 = por %p132, %p133
    %s135 = ssub.s32 %s12, %s19
    %p136 = scmp.eq.s32.totalorder %s135, 0
    %s138 = sadd.s32 %s137, 1
    %s139 = scalar_select %p136, %s137, %s138
    %p142 = pneg %p136
    %p143 = scmp.eq.s32.totalorder %s12, 1
    %p144 = por %p142, %p143
    %p145 = scmp.ne.s32.totalorder %s137, %s140
    %p146 = scmp.eq.s32.totalorder %s12, 0
    %p147 = por %p145, %p146
    %p148 = scmp.ne.s32.totalorder %s137, %s140
    %p149 = scmp.eq.s32.totalorder %s17, 1
    %p150 = por %p148, %p149
    %p151 = scmp.ne.s32.totalorder %s140, %s141
    %p152 = scmp.eq.s32.totalorder %s17, 0
    %p153 = por %p151, %p152
    %p154 = scmp.ne.s32.totalorder %s140, %s141
    %p155 = scmp.eq.s32.totalorder %s18, 1
    %p156 = por %p154, %p155
    %p158 = scmp.ne.s32.totalorder %s141, %s157
    %p159 = scmp.eq.s32.totalorder %s18, 0
    %p160 = por %p158, %p159
    %p161 = scmp.le.s32.totalorder 1, %s12
    %p162 = scmp.lt.s32.totalorder %s12, 3
    %p163 = pnand %p161, %p162
    %p164 = pneg %p163
    // Predicated region
    $region9: #{residual_forward.4} parent=5 // pred_check
      _
    $region10: #{residual_forward.4} parent=5 // pred_check_branch
      %166 = sbr.rel (%p163) target = $region12
    $region11: #{residual_forward.4} parent=5 // pred_region
      %s167 = ssub.s32 %s12, 1
      // Predicated region
      $region13: #{residual_forward.4} parent=11 // pred_check
        %p168 = pneg %p59
      $region14: #{residual_forward.4} parent=11 // pred_check_branch
        %170 = sbr.rel (%p168) target = $region16
      $region15: #{residual_forward.4} parent=11 // pred_region
        _
      $region16: #{residual_forward.4} parent=11 // pred_fallthru
        _
      // Predicated region
      $region17: #{residual_forward.4} parent=11 // pred_check
        %p171 = pneg %p80
      $region18: #{residual_forward.4} parent=11 // pred_check_branch
        %173 = sbr.rel (%p171) target = $region20
      $region19: #{residual_forward.4} parent=11 // pred_region
        _
      $region20: #{residual_forward.4} parent=11 // pred_fallthru
        _
      // Predicated region
      $region21: #{residual_forward.4} parent=11 // pred_check
        %p174 = pneg %p101
      $region22: #{residual_forward.4} parent=11 // pred_check_branch
        %176 = sbr.rel (%p174) target = $region24
      $region23: #{residual_forward.4} parent=11 // pred_region
        _
      $region24: #{residual_forward.4} parent=11 // pred_fallthru
        _
    $region12: #{residual_forward.4} parent=5 // pred_fallthru
      _
    %p177 = scmp.lt.s32.totalorder %s12, 2
    // Predicated region
    $region25: #{residual_forward.4} parent=5 // pred_check
      %p178 = pneg %p177
    $region26: #{residual_forward.4} parent=5 // pred_check_branch
      %180 = sbr.rel (%p178) target = $region28
    $region27: #{residual_forward.4} parent=5 // pred_region
      // Predicated region
      $region29: #{residual_forward.4} parent=27 // pred_check
        %p181 = pneg %p32
      $region30: #{residual_forward.4} parent=27 // pred_check_branch
        %183 = sbr.rel (%p181) target = $region32
      $region31: #{residual_forward.4} parent=27 // pred_region
        %p184 = scmp.lt.s32.totalorder %s12, 1
        %s185 = scalar_select %p184, %s12, 1
        %s186 = smul.addr %s185, 32
        %s187 = smul.addr %s186, 8
        %s188 = scalar_lea.vmem %s0, %s187
      $region32: #{residual_forward.4} parent=27 // pred_fallthru
        _
    $region28: #{residual_forward.4} parent=5 // pred_fallthru
      _
    %p189 = scmp.le.s32.totalorder 1, %s12
    %p190 = scmp.lt.s32.totalorder %s12, 3
    %p191 = pnand %p189, %p190
    %p192 = pneg %p191
    // Predicated region
    $region33: #{residual_forward.4} parent=5 // pred_check
      _
    $region34: #{residual_forward.4} parent=5 // pred_check_branch
      %194 = sbr.rel (%p191) target = $region36
    $region35: #{residual_forward.4} parent=5 // pred_region
      %s195 = ssub.s32 %s12, 1
      %p196 = scmp.lt.s32.totalorder %s17, 1
      %s197 = scalar_select %p196, %s17, 1
      %s198 = smul.addr %s197, 32
      %s199 = smul.addr %s198, 8
      %s200 = scalar_lea.vmem %s0, %s199
      %p201 = pneg %p38
      %p202 = pneg %p35
      %p203 = pneg %p59
      %p204 = pneg %p56
      %p205 = pneg %p80
      %p206 = pneg %p77
      %p207 = pneg %p101
      %p208 = pneg %p98
      %p209 = pneg %p127
      %p210 = pneg %p124
      %p211 = scmp.lt.s32.totalorder %s17, 1
      %s212 = scalar_select %p211, %s17, 1
      %s213 = smul.addr %s212, 32
      %s214 = smul.addr %s213, 8
      %s215 = scalar_lea.vmem %s4, %s214
      %p216 = pneg %p153
      %p217 = pneg %p150
      %p218 = scmp.lt.s32.totalorder %s17, 1
      %s219 = scalar_select %p218, %s17, 1
      %s220 = smul.addr %s219, 2
      %s221 = scalar_lea.vmem %s5, %s220
      %p222 = scmp.lt.s32.totalorder %s17, 1
      %s223 = scalar_select %p222, %s17, 1
      %s224 = smul.addr %s223, 32
      %s225 = smul.addr %s224, 8
      %s226 = scalar_lea.vmem %s0, %s225
      %p227 = scmp.lt.s32.totalorder %s17, 1
      %s228 = scalar_select %p227, %s17, 1
      %s229 = smul.addr %s228, 32
      %s230 = smul.addr %s229, 8
      %s231 = scalar_lea.vmem %s4, %s230
      %p232 = scmp.lt.s32.totalorder %s17, 1
      %s233 = scalar_select %p232, %s17, 1
      %s234 = smul.addr %s233, 2
      %s235 = scalar_lea.vmem %s5, %s234
      %v236 = vld [vmem:[%s1] sm:$0x1]
      %v237 = vld [vmem:[%s2] sm:$0x1]
      %v238 = vld [vmem:[%s226] sm:$0xff]
      %v239 = vld [vmem:[%s226 + $0x8] sm:$0xff]
      %v240 = vld [vmem:[%s226 + $0x10] sm:$0xff]
      %v241 = vld [vmem:[%s226 + $0x18] sm:$0xff]
      %v242 = vld [vmem:[%s226 + $0x20] sm:$0xff]
      %v243 = vld [vmem:[%s226 + $0x28] sm:$0xff]
      %v244 = vld [vmem:[%s226 + $0x30] sm:$0xff]
      %v245 = vld [vmem:[%s226 + $0x38] sm:$0xff]
      %v246 = vld [vmem:[%s226 + $0x40] sm:$0xff]
      %v247 = vld [vmem:[%s226 + $0x48] sm:$0xff]
      %v248 = vld [vmem:[%s226 + $0x50] sm:$0xff]
      %v249 = vld [vmem:[%s226 + $0x58] sm:$0xff]
      %v250 = vld [vmem:[%s226 + $0x60] sm:$0xff]
      %v251 = vld [vmem:[%s226 + $0x68] sm:$0xff]
      %v252 = vld [vmem:[%s226 + $0x70] sm:$0xff]
      %v253 = vld [vmem:[%s226 + $0x78] sm:$0xff]
      %v255 = vperm.slane %v236, 0
      %v257 = vmul.f32 %v238, %v255
      %v258 = vmul.f32 %v239, %v255
      %v259 = vmul.f32 %v240, %v255
      %v260 = vmul.f32 %v241, %v255
      %v261 = vmul.f32 %v242, %v255
      %v262 = vmul.f32 %v243, %v255
      %v263 = vmul.f32 %v244, %v255
      %v264 = vmul.f32 %v245, %v255
      %v265 = vmul.f32 %v246, %v255
      %v266 = vmul.f32 %v247, %v255
      %v267 = vmul.f32 %v248, %v255
      %v268 = vmul.f32 %v249, %v255
      %v269 = vmul.f32 %v250, %v255
      %v270 = vmul.f32 %v251, %v255
      %v271 = vmul.f32 %v252, %v255
      %v272 = vmul.f32 %v253, %v255
      %v274 = vperm.slane %v237, 0
      %v276 = vadd.f32 %v257, %v274
      %v277 = vadd.f32 %v258, %v274
      %v278 = vadd.f32 %v259, %v274
      %v279 = vadd.f32 %v260, %v274
      %v280 = vadd.f32 %v261, %v274
      %v281 = vadd.f32 %v262, %v274
      %v282 = vadd.f32 %v263, %v274
      %v283 = vadd.f32 %v264, %v274
      %v284 = vadd.f32 %v265, %v274
      %v285 = vadd.f32 %v266, %v274
      %v286 = vadd.f32 %v267, %v274
      %v287 = vadd.f32 %v268, %v274
      %v288 = vadd.f32 %v269, %v274
      %v289 = vadd.f32 %v270, %v274
      %v290 = vadd.f32 %v271, %v274
      %v291 = vadd.f32 %v272, %v274
      %v292 = vmax.f32 %v276, 0.0
      %v293 = vmax.f32 %v277, 0.0
      %v294 = vmax.f32 %v278, 0.0
      %v295 = vmax.f32 %v279, 0.0
      %v296 = vmax.f32 %v280, 0.0
      %v297 = vmax.f32 %v281, 0.0
      %v298 = vmax.f32 %v282, 0.0
      %v299 = vmax.f32 %v283, 0.0
      %v300 = vmax.f32 %v284, 0.0
      %v301 = vmax.f32 %v285, 0.0
      %v302 = vmax.f32 %v286, 0.0
      %v303 = vmax.f32 %v287, 0.0
      %v304 = vmax.f32 %v288, 0.0
      %v305 = vmax.f32 %v289, 0.0
      %v306 = vmax.f32 %v290, 0.0
      %v307 = vmax.f32 %v291, 0.0
      %s308 = smul.u32 0, 16
      %s309 = scalar_lea.vmem [#allocation2], %s308
      %vm310 = vcmask 31744
      %311 = vst.msk [vmem:[%s309] sm:$0xff] %vm310, %v292
      %312 = vst.msk [vmem:[%s309 + $0x8] sm:$0xff] %vm310, %v293
      %313 = vst.msk [vmem:[%s309 + $0x10] sm:$0xff] %vm310, %v294
      %314 = vst.msk [vmem:[%s309 + $0x18] sm:$0xff] %vm310, %v295
      %315 = vst.msk [vmem:[%s309 + $0x20] sm:$0xff] %vm310, %v296
      %316 = vst.msk [vmem:[%s309 + $0x28] sm:$0xff] %vm310, %v297
      %317 = vst.msk [vmem:[%s309 + $0x30] sm:$0xff] %vm310, %v298
      %318 = vst.msk [vmem:[%s309 + $0x38] sm:$0xff] %vm310, %v299
      %319 = vst.msk [vmem:[%s309 + $0x40] sm:$0xff] %vm310, %v300
      %320 = vst.msk [vmem:[%s309 + $0x48] sm:$0xff] %vm310, %v301
      %321 = vst.msk [vmem:[%s309 + $0x50] sm:$0xff] %vm310, %v302
      %322 = vst.msk [vmem:[%s309 + $0x58] sm:$0xff] %vm310, %v303
      %323 = vst.msk [vmem:[%s309 + $0x60] sm:$0xff] %vm310, %v304
      %324 = vst.msk [vmem:[%s309 + $0x68] sm:$0xff] %vm310, %v305
      %325 = vst.msk [vmem:[%s309 + $0x70] sm:$0xff] %vm310, %v306
      %326 = vst.msk [vmem:[%s309 + $0x78] sm:$0xff] %vm310, %v307
      %s327 = scalar_lea.vmem %s226, 128
      %v328 = vld [vmem:[%s327] sm:$0xff]
      %v329 = vld [vmem:[%s327 + $0x8] sm:$0xff]
      %v330 = vld [vmem:[%s327 + $0x10] sm:$0xff]
      %v331 = vld [vmem:[%s327 + $0x18] sm:$0xff]
      %v332 = vld [vmem:[%s327 + $0x20] sm:$0xff]
      %v333 = vld [vmem:[%s327 + $0x28] sm:$0xff]
      %v334 = vld [vmem:[%s327 + $0x30] sm:$0xff]
      %v335 = vld [vmem:[%s327 + $0x38] sm:$0xff]
      %v336 = vld [vmem:[%s327 + $0x40] sm:$0xff]
      %v337 = vld [vmem:[%s327 + $0x48] sm:$0xff]
      %v338 = vld [vmem:[%s327 + $0x50] sm:$0xff]
      %v339 = vld [vmem:[%s327 + $0x58] sm:$0xff]
      %v340 = vld [vmem:[%s327 + $0x60] sm:$0xff]
      %v341 = vld [vmem:[%s327 + $0x68] sm:$0xff]
      %v342 = vld [vmem:[%s327 + $0x70] sm:$0xff]
      %v343 = vld [vmem:[%s327 + $0x78] sm:$0xff]
      %v344 = vmul.f32 %v328, %v255
      %v345 = vmul.f32 %v329, %v255
      %v346 = vmul.f32 %v330, %v255
      %v347 = vmul.f32 %v331, %v255
      %v348 = vmul.f32 %v332, %v255
      %v349 = vmul.f32 %v333, %v255
      %v350 = vmul.f32 %v334, %v255
      %v351 = vmul.f32 %v335, %v255
      %v352 = vmul.f32 %v336, %v255
      %v353 = vmul.f32 %v337, %v255
      %v354 = vmul.f32 %v338, %v255
      %v355 = vmul.f32 %v339, %v255
      %v356 = vmul.f32 %v340, %v255
      %v357 = vmul.f32 %v341, %v255
      %v358 = vmul.f32 %v342, %v255
      %v359 = vmul.f32 %v343, %v255
      %v360 = vadd.f32 %v344, %v274
      %v361 = vadd.f32 %v345, %v274
      %v362 = vadd.f32 %v346, %v274
      %v363 = vadd.f32 %v347, %v274
      %v364 = vadd.f32 %v348, %v274
      %v365 = vadd.f32 %v349, %v274
      %v366 = vadd.f32 %v350, %v274
      %v367 = vadd.f32 %v351, %v274
      %v368 = vadd.f32 %v352, %v274
      %v369 = vadd.f32 %v353, %v274
      %v370 = vadd.f32 %v354, %v274
      %v371 = vadd.f32 %v355, %v274
      %v372 = vadd.f32 %v356, %v274
      %v373 = vadd.f32 %v357, %v274
      %v374 = vadd.f32 %v358, %v274
      %v375 = vadd.f32 %v359, %v274
      %v376 = vmax.f32 %v360, 0.0
      %v377 = vmax.f32 %v361, 0.0
      %v378 = vmax.f32 %v362, 0.0
      %v379 = vmax.f32 %v363, 0.0
      %v380 = vmax.f32 %v364, 0.0
      %v381 = vmax.f32 %v365, 0.0
      %v382 = vmax.f32 %v366, 0.0
      %v383 = vmax.f32 %v367, 0.0
      %v384 = vmax.f32 %v368, 0.0
      %v385 = vmax.f32 %v369, 0.0
      %v386 = vmax.f32 %v370, 0.0
      %v387 = vmax.f32 %v371, 0.0
      %v388 = vmax.f32 %v372, 0.0
      %v389 = vmax.f32 %v373, 0.0
      %v390 = vmax.f32 %v374, 0.0
      %v391 = vmax.f32 %v375, 0.0
      %s392 = smul.u32 8, 16
      %s393 = scalar_lea.vmem [#allocation2], %s392
      %394 = vst.msk [vmem:[%s393] sm:$0xff] %vm310, %v376
      %395 = vst.msk [vmem:[%s393 + $0x8] sm:$0xff] %vm310, %v377
      %396 = vst.msk [vmem:[%s393 + $0x10] sm:$0xff] %vm310, %v378
      %397 = vst.msk [vmem:[%s393 + $0x18] sm:$0xff] %vm310, %v379
      %398 = vst.msk [vmem:[%s393 + $0x20] sm:$0xff] %vm310, %v380
      %399 = vst.msk [vmem:[%s393 + $0x28] sm:$0xff] %vm310, %v381
      %400 = vst.msk [vmem:[%s393 + $0x30] sm:$0xff] %vm310, %v382
      %401 = vst.msk [vmem:[%s393 + $0x38] sm:$0xff] %vm310, %v383
      %402 = vst.msk [vmem:[%s393 + $0x40] sm:$0xff] %vm310, %v384
      %403 = vst.msk [vmem:[%s393 + $0x48] sm:$0xff] %vm310, %v385
      %404 = vst.msk [vmem:[%s393 + $0x50] sm:$0xff] %vm310, %v386
      %405 = vst.msk [vmem:[%s393 + $0x58] sm:$0xff] %vm310, %v387
      %406 = vst.msk [vmem:[%s393 + $0x60] sm:$0xff] %vm310, %v388
      %407 = vst.msk [vmem:[%s393 + $0x68] sm:$0xff] %vm310, %v389
      %408 = vst.msk [vmem:[%s393 + $0x70] sm:$0xff] %vm310, %v390
      %409 = vst.msk [vmem:[%s393 + $0x78] sm:$0xff] %vm310, %v391
      %v410 = vld [vmem:[#allocation2] sm:$0xff]
      %v411 = vld [vmem:[#allocation2 + $0x8] sm:$0xff]
      %v412 = vld [vmem:[#allocation2 + $0x10] sm:$0xff]
      %v413 = vld [vmem:[#allocation2 + $0x18] sm:$0xff]
      %v414 = vld [vmem:[#allocation2 + $0x20] sm:$0xff]
      %v415 = vld [vmem:[#allocation2 + $0x28] sm:$0xff]
      %v416 = vld [vmem:[#allocation2 + $0x30] sm:$0xff]
      %v417 = vld [vmem:[#allocation2 + $0x38] sm:$0xff]
      %v418 = vld [vmem:[#allocation2 + $0x40] sm:$0xff]
      %v419 = vld [vmem:[#allocation2 + $0x48] sm:$0xff]
      %v420 = vld [vmem:[#allocation2 + $0x50] sm:$0xff]
      %v421 = vld [vmem:[#allocation2 + $0x58] sm:$0xff]
      %v422 = vld [vmem:[#allocation2 + $0x60] sm:$0xff]
      %v423 = vld [vmem:[#allocation2 + $0x68] sm:$0xff]
      %v424 = vld [vmem:[#allocation2 + $0x70] sm:$0xff]
      %v425 = vld [vmem:[#allocation2 + $0x78] sm:$0xff]
      %v426 = vld [vmem:[#allocation2 + $0x80] sm:$0xff]
      %v427 = vld [vmem:[#allocation2 + $0x88] sm:$0xff]
      %v428 = vld [vmem:[#allocation2 + $0x90] sm:$0xff]
      %v429 = vld [vmem:[#allocation2 + $0x98] sm:$0xff]
      %v430 = vld [vmem:[#allocation2 + $0xa0] sm:$0xff]
      %v431 = vld [vmem:[#allocation2 + $0xa8] sm:$0xff]
      %v432 = vld [vmem:[#allocation2 + $0xb0] sm:$0xff]
      %v433 = vld [vmem:[#allocation2 + $0xb8] sm:$0xff]
      %v434 = vld [vmem:[#allocation2 + $0xc0] sm:$0xff]
      %v435 = vld [vmem:[#allocation2 + $0xc8] sm:$0xff]
      %v436 = vld [vmem:[#allocation2 + $0xd0] sm:$0xff]
      %v437 = vld [vmem:[#allocation2 + $0xd8] sm:$0xff]
      %v438 = vld [vmem:[#allocation2 + $0xe0] sm:$0xff]
      %v439 = vld [vmem:[#allocation2 + $0xe8] sm:$0xff]
      %v440 = vld [vmem:[#allocation2 + $0xf0] sm:$0xff]
      %v441 = vld [vmem:[#allocation2 + $0xf8] sm:$0xff]
      %vm474 = vcmask 1040384
      %v475 = vrot.slane %v410, 7
      %v476 = vrot.slane %v411, 7
      %v477 = vsel %vm474, %v475, %v476
      %v478 = vrot.slane %v412, 7
      %v479 = vrot.slane %v413, 7
      %v480 = vsel %vm474, %v478, %v479
      %v481 = vrot.slane %v414, 7
      %v482 = vrot.slane %v415, 7
      %v483 = vsel %vm474, %v481, %v482
      %v484 = vrot.slane %v416, 7
      %v485 = vrot.slane %v417, 7
      %v486 = vsel %vm474, %v484, %v485
      %v487 = vrot.slane %v418, 7
      %v488 = vrot.slane %v419, 7
      %v489 = vsel %vm474, %v487, %v488
      %v490 = vrot.slane %v420, 7
      %v491 = vrot.slane %v421, 7
      %v492 = vsel %vm474, %v490, %v491
      %v493 = vrot.slane %v422, 7
      %v494 = vrot.slane %v423, 7
      %v495 = vsel %vm474, %v493, %v494
      %v496 = vrot.slane %v424, 7
      %v497 = vrot.slane %v425, 7
      %v498 = vsel %vm474, %v496, %v497
      %v499 = vrot.slane %v426, 7
      %v500 = vrot.slane %v427, 7
      %v501 = vsel %vm474, %v499, %v500
      %v502 = vrot.slane %v428, 7
      %v503 = vrot.slane %v429, 7
      %v504 = vsel %vm474, %v502, %v503
      %v505 = vrot.slane %v430, 7
      %v506 = vrot.slane %v431, 7
      %v507 = vsel %vm474, %v505, %v506
      %v508 = vrot.slane %v432, 7
      %v509 = vrot.slane %v433, 7
      %v510 = vsel %vm474, %v508, %v509
      %v511 = vrot.slane %v434, 7
      %v512 = vrot.slane %v435, 7
      %v513 = vsel %vm474, %v511, %v512
      %v514 = vrot.slane %v436, 7
      %v515 = vrot.slane %v437, 7
      %v516 = vsel %vm474, %v514, %v515
      %v517 = vrot.slane %v438, 7
      %v518 = vrot.slane %v439, 7
      %v519 = vsel %vm474, %v517, %v518
      %v520 = vrot.slane %v440, 7
      %v521 = vrot.slane %v441, 7
      %v522 = vsel %vm474, %v520, %v521
      %v555 = vsel %vm474, 0.0, %v475
      %v556 = vsel %vm474, 0.0, %v478
      %v557 = vsel %vm474, 0.0, %v481
      %v558 = vsel %vm474, 0.0, %v484
      %v559 = vsel %vm474, 0.0, %v487
      %v560 = vsel %vm474, 0.0, %v490
      %v561 = vsel %vm474, 0.0, %v493
      %v562 = vsel %vm474, 0.0, %v496
      %v563 = vsel %vm474, 0.0, %v499
      %v564 = vsel %vm474, 0.0, %v502
      %v565 = vsel %vm474, 0.0, %v505
      %v566 = vsel %vm474, 0.0, %v508
      %v567 = vsel %vm474, 0.0, %v511
      %v568 = vsel %vm474, 0.0, %v514
      %v569 = vsel %vm474, 0.0, %v517
      %v570 = vsel %vm474, 0.0, %v520
      %vm571 = vcmask 1046528
      %v572 = vrot.slane %v410, 1
      %v573 = vrot.slane %v411, 1
      %v574 = vsel %vm571, %v572, %v573
      %v575 = vrot.slane %v412, 1
      %v576 = vrot.slane %v413, 1
      %v577 = vsel %vm571, %v575, %v576
      %v578 = vrot.slane %v414, 1
      %v579 = vrot.slane %v415, 1
      %v580 = vsel %vm571, %v578, %v579
      %v581 = vrot.slane %v416, 1
      %v582 = vrot.slane %v417, 1
      %v583 = vsel %vm571, %v581, %v582
      %v584 = vrot.slane %v418, 1
      %v585 = vrot.slane %v419, 1
      %v586 = vsel %vm571, %v584, %v585
      %v587 = vrot.slane %v420, 1
      %v588 = vrot.slane %v421, 1
      %v589 = vsel %vm571, %v587, %v588
      %v590 = vrot.slane %v422, 1
      %v591 = vrot.slane %v423, 1
      %v592 = vsel %vm571, %v590, %v591
      %v593 = vrot.slane %v424, 1
      %v594 = vrot.slane %v425, 1
      %v595 = vsel %vm571, %v593, %v594
      %v596 = vrot.slane %v426, 1
      %v597 = vrot.slane %v427, 1
      %v598 = vsel %vm571, %v596, %v597
      %v599 = vrot.slane %v428, 1
      %v600 = vrot.slane %v429, 1
      %v601 = vsel %vm571, %v599, %v600
      %v602 = vrot.slane %v430, 1
      %v603 = vrot.slane %v431, 1
      %v604 = vsel %vm571, %v602, %v603
      %v605 = vrot.slane %v432, 1
      %v606 = vrot.slane %v433, 1
      %v607 = vsel %vm571, %v605, %v606
      %v608 = vrot.slane %v434, 1
      %v609 = vrot.slane %v435, 1
      %v610 = vsel %vm571, %v608, %v609
      %v611 = vrot.slane %v436, 1
      %v612 = vrot.slane %v437, 1
      %v613 = vsel %vm571, %v611, %v612
      %v614 = vrot.slane %v438, 1
      %v615 = vrot.slane %v439, 1
      %v616 = vsel %vm571, %v614, %v615
      %v617 = vrot.slane %v440, 1
      %v618 = vrot.slane %v441, 1
      %v619 = vsel %vm571, %v617, %v618
      %v636 = vsel %vm571, %v573, 0.0
      %v637 = vsel %vm571, %v576, 0.0
      %v638 = vsel %vm571, %v579, 0.0
      %v639 = vsel %vm571, %v582, 0.0
      %v640 = vsel %vm571, %v585, 0.0
      %v641 = vsel %vm571, %v588, 0.0
      %v642 = vsel %vm571, %v591, 0.0
      %v643 = vsel %vm571, %v594, 0.0
      %v644 = vsel %vm571, %v597, 0.0
      %v645 = vsel %vm571, %v600, 0.0
      %v646 = vsel %vm571, %v603, 0.0
      %v647 = vsel %vm571, %v606, 0.0
      %v648 = vsel %vm571, %v609, 0.0
      %v649 = vsel %vm571, %v612, 0.0
      %v650 = vsel %vm571, %v615, 0.0
      %v651 = vsel %vm571, %v618, 0.0
      %652 = vrot.lane.b32.xlu0 %v410, 4
      %v653 = vpop.permute.xlu0 %652
      %654 = vrot.lane.b32.xlu0 %v411, 4
      %v655 = vpop.permute.xlu0 %654
      %656 = vrot.lane.b32.xlu0 %v412, 4
      %v657 = vpop.permute.xlu0 %656
      %658 = vrot.lane.b32.xlu0 %v413, 4
      %v659 = vpop.permute.xlu0 %658
      %660 = vrot.lane.b32.xlu0 %v414, 4
      %v661 = vpop.permute.xlu0 %660
      %662 = vrot.lane.b32.xlu0 %v415, 4
      %v663 = vpop.permute.xlu0 %662
      %664 = vrot.lane.b32.xlu0 %v416, 4
      %v665 = vpop.permute.xlu0 %664
      %666 = vrot.lane.b32.xlu0 %v417, 4
      %v667 = vpop.permute.xlu0 %666
      %668 = vrot.lane.b32.xlu0 %v418, 4
      %v669 = vpop.permute.xlu0 %668
      %670 = vrot.lane.b32.xlu0 %v419, 4
      %v671 = vpop.permute.xlu0 %670
      %672 = vrot.lane.b32.xlu0 %v420, 4
      %v673 = vpop.permute.xlu0 %672
      %674 = vrot.lane.b32.xlu0 %v421, 4
      %v675 = vpop.permute.xlu0 %674
      %676 = vrot.lane.b32.xlu0 %v422, 4
      %v677 = vpop.permute.xlu0 %676
      %678 = vrot.lane.b32.xlu0 %v423, 4
      %v679 = vpop.permute.xlu0 %678
      %680 = vrot.lane.b32.xlu0 %v424, 4
      %v681 = vpop.permute.xlu0 %680
      %682 = vrot.lane.b32.xlu0 %v425, 4
      %v683 = vpop.permute.xlu0 %682
      %684 = vrot.lane.b32.xlu0 %v426, 4
      %v685 = vpop.permute.xlu0 %684
      %686 = vrot.lane.b32.xlu0 %v427, 4
      %v687 = vpop.permute.xlu0 %686
      %688 = vrot.lane.b32.xlu0 %v428, 4
      %v689 = vpop.permute.xlu0 %688
      %690 = vrot.lane.b32.xlu0 %v429, 4
      %v691 = vpop.permute.xlu0 %690
      %692 = vrot.lane.b32.xlu0 %v430, 4
      %v693 = vpop.permute.xlu0 %692
      %694 = vrot.lane.b32.xlu0 %v431, 4
      %v695 = vpop.permute.xlu0 %694
      %696 = vrot.lane.b32.xlu0 %v432, 4
      %v697 = vpop.permute.xlu0 %696
      %698 = vrot.lane.b32.xlu0 %v433, 4
      %v699 = vpop.permute.xlu0 %698
      %700 = vrot.lane.b32.xlu0 %v434, 4
      %v701 = vpop.permute.xlu0 %700
      %702 = vrot.lane.b32.xlu0 %v435, 4
      %v703 = vpop.permute.xlu0 %702
      %704 = vrot.lane.b32.xlu0 %v436, 4
      %v705 = vpop.permute.xlu0 %704
      %706 = vrot.lane.b32.xlu0 %v437, 4
      %v707 = vpop.permute.xlu0 %706
      %708 = vrot.lane.b32.xlu0 %v438, 4
      %v709 = vpop.permute.xlu0 %708
      %710 = vrot.lane.b32.xlu0 %v439, 4
      %v711 = vpop.permute.xlu0 %710
      %712 = vrot.lane.b32.xlu0 %v440, 4
      %v713 = vpop.permute.xlu0 %712
      %714 = vrot.lane.b32.xlu0 %v441, 4
      %v715 = vpop.permute.xlu0 %714
      %764 = vrot.lane.b32.xlu0 %v574, 8
      %v765 = vpop.permute.xlu0 %764
      %766 = vrot.lane.b32.xlu0 %v636, 8
      %v767 = vpop.permute.xlu0 %766
      %768 = vrot.lane.b32.xlu0 %v577, 8
      %v769 = vpop.permute.xlu0 %768
      %770 = vrot.lane.b32.xlu0 %v637, 8
      %v771 = vpop.permute.xlu0 %770
      %772 = vrot.lane.b32.xlu0 %v580, 8
      %v773 = vpop.permute.xlu0 %772
      %774 = vrot.lane.b32.xlu0 %v638, 8
      %v775 = vpop.permute.xlu0 %774
      %776 = vrot.lane.b32.xlu0 %v583, 8
      %v777 = vpop.permute.xlu0 %776
      %778 = vrot.lane.b32.xlu0 %v639, 8
      %v779 = vpop.permute.xlu0 %778
      %780 = vrot.lane.b32.xlu0 %v586, 8
      %v781 = vpop.permute.xlu0 %780
      %782 = vrot.lane.b32.xlu0 %v640, 8
      %v783 = vpop.permute.xlu0 %782
      %784 = vrot.lane.b32.xlu0 %v589, 8
      %v785 = vpop.permute.xlu0 %784
      %786 = vrot.lane.b32.xlu0 %v641, 8
      %v787 = vpop.permute.xlu0 %786
      %788 = vrot.lane.b32.xlu0 %v592, 8
      %v789 = vpop.permute.xlu0 %788
      %790 = vrot.lane.b32.xlu0 %v642, 8
      %v791 = vpop.permute.xlu0 %790
      %792 = vrot.lane.b32.xlu0 %v595, 8
      %v793 = vpop.permute.xlu0 %792
      %794 = vrot.lane.b32.xlu0 %v643, 8
      %v795 = vpop.permute.xlu0 %794
      %796 = vrot.lane.b32.xlu0 %v598, 8
      %v797 = vpop.permute.xlu0 %796
      %798 = vrot.lane.b32.xlu0 %v644, 8
      %v799 = vpop.permute.xlu0 %798
      %800 = vrot.lane.b32.xlu0 %v601, 8
      %v801 = vpop.permute.xlu0 %800
      %802 = vrot.lane.b32.xlu0 %v645, 8
      %v803 = vpop.permute.xlu0 %802
      %804 = vrot.lane.b32.xlu0 %v604, 8
      %v805 = vpop.permute.xlu0 %804
      %806 = vrot.lane.b32.xlu0 %v646, 8
      %v807 = vpop.permute.xlu0 %806
      %808 = vrot.lane.b32.xlu0 %v607, 8
      %v809 = vpop.permute.xlu0 %808
      %810 = vrot.lane.b32.xlu0 %v647, 8
      %v811 = vpop.permute.xlu0 %810
      %812 = vrot.lane.b32.xlu0 %v610, 8
      %v813 = vpop.permute.xlu0 %812
      %814 = vrot.lane.b32.xlu0 %v648, 8
      %v815 = vpop.permute.xlu0 %814
      %816 = vrot.lane.b32.xlu0 %v613, 8
      %v817 = vpop.permute.xlu0 %816
      %818 = vrot.lane.b32.xlu0 %v649, 8
      %v819 = vpop.permute.xlu0 %818
      %820 = vrot.lane.b32.xlu0 %v616, 8
      %v821 = vpop.permute.xlu0 %820
      %822 = vrot.lane.b32.xlu0 %v650, 8
      %v823 = vpop.permute.xlu0 %822
      %824 = vrot.lane.b32.xlu0 %v619, 8
      %v825 = vpop.permute.xlu0 %824
      %826 = vrot.lane.b32.xlu0 %v651, 8
      %v827 = vpop.permute.xlu0 %826
      %v860 = vsel %vm310, %v555, %v653
      %v861 = vsel %vm310, %v477, %v655
      %v862 = vsel %vm310, %v556, %v657
      %v863 = vsel %vm310, %v480, %v659
      %v864 = vsel %vm310, %v557, %v661
      %v865 = vsel %vm310, %v483, %v663
      %v866 = vsel %vm310, %v558, %v665
      %v867 = vsel %vm310, %v486, %v667
      %v868 = vsel %vm310, %v559, %v669
      %v869 = vsel %vm310, %v489, %v671
      %v870 = vsel %vm310, %v560, %v673
      %v871 = vsel %vm310, %v492, %v675
      %v872 = vsel %vm310, %v561, %v677
      %v873 = vsel %vm310, %v495, %v679
      %v874 = vsel %vm310, %v562, %v681
      %v875 = vsel %vm310, %v498, %v683
      %v876 = vsel %vm310, %v563, %v685
      %v877 = vsel %vm310, %v501, %v687
      %v878 = vsel %vm310, %v564, %v689
      %v879 = vsel %vm310, %v504, %v691
      %v880 = vsel %vm310, %v565, %v693
      %v881 = vsel %vm310, %v507, %v695
      %v882 = vsel %vm310, %v566, %v697
      %v883 = vsel %vm310, %v510, %v699
      %v884 = vsel %vm310, %v567, %v701
      %v885 = vsel %vm310, %v513, %v703
      %v886 = vsel %vm310, %v568, %v705
      %v887 = vsel %vm310, %v516, %v707
      %v888 = vsel %vm310, %v569, %v709
      %v889 = vsel %vm310, %v519, %v711
      %v890 = vsel %vm310, %v570, %v713
      %v891 = vsel %vm310, %v522, %v715
      %vm892 = vcmask 64512
      %v893 = vsel %vm892, %v860, %v765
      %v894 = vsel %vm892, %v861, %v767
      %v895 = vsel %vm892, %v862, %v769
      %v896 = vsel %vm892, %v863, %v771
      %v897 = vsel %vm892, %v864, %v773
      %v898 = vsel %vm892, %v865, %v775
      %v899 = vsel %vm892, %v866, %v777
      %v900 = vsel %vm892, %v867, %v779
      %v901 = vsel %vm892, %v868, %v781
      %v902 = vsel %vm892, %v869, %v783
      %v903 = vsel %vm892, %v870, %v785
      %v904 = vsel %vm892, %v871, %v787
      %v905 = vsel %vm892, %v872, %v789
      %v906 = vsel %vm892, %v873, %v791
      %v907 = vsel %vm892, %v874, %v793
      %v908 = vsel %vm892, %v875, %v795
      %v909 = vsel %vm892, %v876, %v797
      %v910 = vsel %vm892, %v877, %v799
      %v911 = vsel %vm892, %v878, %v801
      %v912 = vsel %vm892, %v879, %v803
      %v913 = vsel %vm892, %v880, %v805
      %v914 = vsel %vm892, %v881, %v807
      %v915 = vsel %vm892, %v882, %v809
      %v916 = vsel %vm892, %v883, %v811
      %v917 = vsel %vm892, %v884, %v813
      %v918 = vsel %vm892, %v885, %v815
      %v919 = vsel %vm892, %v886, %v817
      %v920 = vsel %vm892, %v887, %v819
      %v921 = vsel %vm892, %v888, %v821
      %v922 = vsel %vm892, %v889, %v823
      %v923 = vsel %vm892, %v890, %v825
      %v924 = vsel %vm892, %v891, %v827
      %957 = vrot.lane.b32.xlu0 %v893, 12
      %v958 = vpop.permute.xlu0 %957
      %959 = vrot.lane.b32.xlu0 %v894, 12
      %v960 = vpop.permute.xlu0 %959
      %961 = vrot.lane.b32.xlu0 %v895, 12
      %v962 = vpop.permute.xlu0 %961
      %963 = vrot.lane.b32.xlu0 %v896, 12
      %v964 = vpop.permute.xlu0 %963
      %965 = vrot.lane.b32.xlu0 %v897, 12
      %v966 = vpop.permute.xlu0 %965
      %967 = vrot.lane.b32.xlu0 %v898, 12
      %v968 = vpop.permute.xlu0 %967
      %969 = vrot.lane.b32.xlu0 %v899, 12
      %v970 = vpop.permute.xlu0 %969
      %971 = vrot.lane.b32.xlu0 %v900, 12
      %v972 = vpop.permute.xlu0 %971
      %973 = vrot.lane.b32.xlu0 %v901, 12
      %v974 = vpop.permute.xlu0 %973
      %975 = vrot.lane.b32.xlu0 %v902, 12
      %v976 = vpop.permute.xlu0 %975
      %977 = vrot.lane.b32.xlu0 %v903, 12
      %v978 = vpop.permute.xlu0 %977
      %979 = vrot.lane.b32.xlu0 %v904, 12
      %v980 = vpop.permute.xlu0 %979
      %981 = vrot.lane.b32.xlu0 %v905, 12
      %v982 = vpop.permute.xlu0 %981
      %983 = vrot.lane.b32.xlu0 %v906, 12
      %v984 = vpop.permute.xlu0 %983
      %985 = vrot.lane.b32.xlu0 %v907, 12
      %v986 = vpop.permute.xlu0 %985
      %987 = vrot.lane.b32.xlu0 %v908, 12
      %v988 = vpop.permute.xlu0 %987
      %989 = vrot.lane.b32.xlu0 %v909, 12
      %v990 = vpop.permute.xlu0 %989
      %991 = vrot.lane.b32.xlu0 %v910, 12
      %v992 = vpop.permute.xlu0 %991
      %993 = vrot.lane.b32.xlu0 %v911, 12
      %v994 = vpop.permute.xlu0 %993
      %995 = vrot.lane.b32.xlu0 %v912, 12
      %v996 = vpop.permute.xlu0 %995
      %997 = vrot.lane.b32.xlu0 %v913, 12
      %v998 = vpop.permute.xlu0 %997
      %999 = vrot.lane.b32.xlu0 %v914, 12
      %v1000 = vpop.permute.xlu0 %999
      %1001 = vrot.lane.b32.xlu0 %v915, 12
      %v1002 = vpop.permute.xlu0 %1001
      %1003 = vrot.lane.b32.xlu0 %v916, 12
      %v1004 = vpop.permute.xlu0 %1003
      %1005 = vrot.lane.b32.xlu0 %v917, 12
      %v1006 = vpop.permute.xlu0 %1005
      %1007 = vrot.lane.b32.xlu0 %v918, 12
      %v1008 = vpop.permute.xlu0 %1007
      %1009 = vrot.lane.b32.xlu0 %v919, 12
      %v1010 = vpop.permute.xlu0 %1009
      %1011 = vrot.lane.b32.xlu0 %v920, 12
      %v1012 = vpop.permute.xlu0 %1011
      %1013 = vrot.lane.b32.xlu0 %v921, 12
      %v1014 = vpop.permute.xlu0 %1013
      %1015 = vrot.lane.b32.xlu0 %v922, 12
      %v1016 = vpop.permute.xlu0 %1015
      %1017 = vrot.lane.b32.xlu0 %v923, 12
      %v1018 = vpop.permute.xlu0 %1017
      %1019 = vrot.lane.b32.xlu0 %v924, 12
      %v1020 = vpop.permute.xlu0 %1019
      %1054 = vrot.lane.b32.xlu0 %v895, 24
      %v1055 = vpop.permute.xlu0 %1054
      %1056 = vrot.lane.b32.xlu0 %v896, 24
      %v1057 = vpop.permute.xlu0 %1056
      %1058 = vrot.lane.b32.xlu0 %v897, 24
      %v1059 = vpop.permute.xlu0 %1058
      %1060 = vrot.lane.b32.xlu0 %v898, 24
      %v1061 = vpop.permute.xlu0 %1060
      %1062 = vrot.lane.b32.xlu0 %v899, 24
      %v1063 = vpop.permute.xlu0 %1062
      %1064 = vrot.lane.b32.xlu0 %v900, 24
      %v1065 = vpop.permute.xlu0 %1064
      %1066 = vrot.lane.b32.xlu0 %v901, 24
      %v1067 = vpop.permute.xlu0 %1066
      %1068 = vrot.lane.b32.xlu0 %v902, 24
      %v1069 = vpop.permute.xlu0 %1068
      %1070 = vrot.lane.b32.xlu0 %v903, 24
      %v1071 = vpop.permute.xlu0 %1070
      %1072 = vrot.lane.b32.xlu0 %v904, 24
      %v1073 = vpop.permute.xlu0 %1072
      %1074 = vrot.lane.b32.xlu0 %v905, 24
      %v1075 = vpop.permute.xlu0 %1074
      %1076 = vrot.lane.b32.xlu0 %v906, 24
      %v1077 = vpop.permute.xlu0 %1076
      %1078 = vrot.lane.b32.xlu0 %v907, 24
      %v1079 = vpop.permute.xlu0 %1078
      %1080 = vrot.lane.b32.xlu0 %v908, 24
      %v1081 = vpop.permute.xlu0 %1080
      %1082 = vrot.lane.b32.xlu0 %v909, 24
      %v1083 = vpop.permute.xlu0 %1082
      %1084 = vrot.lane.b32.xlu0 %v910, 24
      %v1085 = vpop.permute.xlu0 %1084
      %1086 = vrot.lane.b32.xlu0 %v911, 24
      %v1087 = vpop.permute.xlu0 %1086
      %1088 = vrot.lane.b32.xlu0 %v912, 24
      %v1089 = vpop.permute.xlu0 %1088
      %1090 = vrot.lane.b32.xlu0 %v913, 24
      %v1091 = vpop.permute.xlu0 %1090
      %1092 = vrot.lane.b32.xlu0 %v914, 24
      %v1093 = vpop.permute.xlu0 %1092
      %1094 = vrot.lane.b32.xlu0 %v915, 24
      %v1095 = vpop.permute.xlu0 %1094
      %1096 = vrot.lane.b32.xlu0 %v916, 24
      %v1097 = vpop.permute.xlu0 %1096
      %1098 = vrot.lane.b32.xlu0 %v917, 24
      %v1099 = vpop.permute.xlu0 %1098
      %1100 = vrot.lane.b32.xlu0 %v918, 24
      %v1101 = vpop.permute.xlu0 %1100
      %1102 = vrot.lane.b32.xlu0 %v919, 24
      %v1103 = vpop.permute.xlu0 %1102
      %1104 = vrot.lane.b32.xlu0 %v920, 24
      %v1105 = vpop.permute.xlu0 %1104
      %1106 = vrot.lane.b32.xlu0 %v921, 24
      %v1107 = vpop.permute.xlu0 %1106
      %1108 = vrot.lane.b32.xlu0 %v922, 24
      %v1109 = vpop.permute.xlu0 %1108
      %1110 = vrot.lane.b32.xlu0 %v923, 24
      %v1111 = vpop.permute.xlu0 %1110
      %1112 = vrot.lane.b32.xlu0 %v924, 24
      %v1113 = vpop.permute.xlu0 %1112
      %1114 = vrot.lane.b32.xlu0 0.0, 24
      %v1115 = vpop.permute.xlu0 %1114
      %vm1147 = vcmask 97280
      %v1148 = vsel %vm1147, 0.0, %v958
      %v1149 = vsel %vm1147, 0.0, %v960
      %v1150 = vsel %vm1147, %v893, %v962
      %v1151 = vsel %vm1147, %v894, %v964
      %v1152 = vsel %vm1147, %v895, %v966
      %v1153 = vsel %vm1147, %v896, %v968
      %v1154 = vsel %vm1147, %v897, %v970
      %v1155 = vsel %vm1147, %v898, %v972
      %v1156 = vsel %vm1147, %v899, %v974
      %v1157 = vsel %vm1147, %v900, %v976
      %v1158 = vsel %vm1147, %v901, %v978
      %v1159 = vsel %vm1147, %v902, %v980
      %v1160 = vsel %vm1147, %v903, %v982
      %v1161 = vsel %vm1147, %v904, %v984
      %v1162 = vsel %vm1147, %v905, %v986
      %v1163 = vsel %vm1147, %v906, %v988
      %v1164 = vsel %vm1147, %v907, %v990
      %v1165 = vsel %vm1147, %v908, %v992
      %v1166 = vsel %vm1147, %v909, %v994
      %v1167 = vsel %vm1147, %v910, %v996
      %v1168 = vsel %vm1147, %v911, %v998
      %v1169 = vsel %vm1147, %v912, %v1000
      %v1170 = vsel %vm1147, %v913, %v1002
      %v1171 = vsel %vm1147, %v914, %v1004
      %v1172 = vsel %vm1147, %v915, %v1006
      %v1173 = vsel %vm1147, %v916, %v1008
      %v1174 = vsel %vm1147, %v917, %v1010
      %v1175 = vsel %vm1147, %v918, %v1012
      %v1176 = vsel %vm1147, %v919, %v1014
      %v1177 = vsel %vm1147, %v920, %v1016
      %v1178 = vsel %vm1147, %v921, %v1018
      %v1179 = vsel %vm1147, %v922, %v1020
      %vm1180 = vcmask 195584
      %v1181 = vsel %vm1180, %v1148, %v1055
      %v1182 = vsel %vm1180, %v1149, %v1057
      %v1183 = vsel %vm1180, %v1150, %v1059
      %v1184 = vsel %vm1180, %v1151, %v1061
      %v1185 = vsel %vm1180, %v1152, %v1063
      %v1186 = vsel %vm1180, %v1153, %v1065
      %v1187 = vsel %vm1180, %v1154, %v1067
      %v1188 = vsel %vm1180, %v1155, %v1069
      %v1189 = vsel %vm1180, %v1156, %v1071
      %v1190 = vsel %vm1180, %v1157, %v1073
      %v1191 = vsel %vm1180, %v1158, %v1075
      %v1192 = vsel %vm1180, %v1159, %v1077
      %v1193 = vsel %vm1180, %v1160, %v1079
      %v1194 = vsel %vm1180, %v1161, %v1081
      %v1195 = vsel %vm1180, %v1162, %v1083
      %v1196 = vsel %vm1180, %v1163, %v1085
      %v1197 = vsel %vm1180, %v1164, %v1087
      %v1198 = vsel %vm1180, %v1165, %v1089
      %v1199 = vsel %vm1180, %v1166, %v1091
      %v1200 = vsel %vm1180, %v1167, %v1093
      %v1201 = vsel %vm1180, %v1168, %v1095
      %v1202 = vsel %vm1180, %v1169, %v1097
      %v1203 = vsel %vm1180, %v1170, %v1099
      %v1204 = vsel %vm1180, %v1171, %v1101
      %v1205 = vsel %vm1180, %v1172, %v1103
      %v1206 = vsel %vm1180, %v1173, %v1105
      %v1207 = vsel %vm1180, %v1174, %v1107
      %v1208 = vsel %vm1180, %v1175, %v1109
      %v1209 = vsel %vm1180, %v1176, %v1111
      %v1210 = vsel %vm1180, %v1177, %v1113
      %v1211 = vsel %vm1180, %v1178, %v1115
      %v1212 = vsel %vm1180, %v1179, %v1115
      %vm1213 = vcmask 293888
      %1214 = vst.msk [vmem:[#allocation3] sm:$0xff] %vm1213, %v1181
      %1215 = vst.msk [vmem:[#allocation3 + $0x8] sm:$0xff] %vm1213, %v1182
      %1216 = vst.msk [vmem:[#allocation3 + $0x10] sm:$0xff] %vm1213, %v1183
      %1217 = vst.msk [vmem:[#allocation3 + $0x18] sm:$0xff] %vm1213, %v1184
      %1218 = vst.msk [vmem:[#allocation3 + $0x20] sm:$0xff] %vm1213, %v1185
      %1219 = vst.msk [vmem:[#allocation3 + $0x28] sm:$0xff] %vm1213, %v1186
      %1220 = vst.msk [vmem:[#allocation3 + $0x30] sm:$0xff] %vm1213, %v1187
      %1221 = vst.msk [vmem:[#allocation3 + $0x38] sm:$0xff] %vm1213, %v1188
      %1222 = vst.msk [vmem:[#allocation3 + $0x40] sm:$0xff] %vm1213, %v1189
      %1223 = vst.msk [vmem:[#allocation3 + $0x48] sm:$0xff] %vm1213, %v1190
      %1224 = vst.msk [vmem:[#allocation3 + $0x50] sm:$0xff] %vm1213, %v1191
      %1225 = vst.msk [vmem:[#allocation3 + $0x58] sm:$0xff] %vm1213, %v1192
      %1226 = vst.msk [vmem:[#allocation3 + $0x60] sm:$0xff] %vm1213, %v1193
      %1227 = vst.msk [vmem:[#allocation3 + $0x68] sm:$0xff] %vm1213, %v1194
      %1228 = vst.msk [vmem:[#allocation3 + $0x70] sm:$0xff] %vm1213, %v1195
      %1229 = vst.msk [vmem:[#allocation3 + $0x78] sm:$0xff] %vm1213, %v1196
      %1230 = vst.msk [vmem:[#allocation3 + $0x80] sm:$0xff] %vm1213, %v1197
      %1231 = vst.msk [vmem:[#allocation3 + $0x88] sm:$0xff] %vm1213, %v1198
      %1232 = vst.msk [vmem:[#allocation3 + $0x90] sm:$0xff] %vm1213, %v1199
      %1233 = vst.msk [vmem:[#allocation3 + $0x98] sm:$0xff] %vm1213, %v1200
      %1234 = vst.msk [vmem:[#allocation3 + $0xa0] sm:$0xff] %vm1213, %v1201
      %1235 = vst.msk [vmem:[#allocation3 + $0xa8] sm:$0xff] %vm1213, %v1202
      %1236 = vst.msk [vmem:[#allocation3 + $0xb0] sm:$0xff] %vm1213, %v1203
      %1237 = vst.msk [vmem:[#allocation3 + $0xb8] sm:$0xff] %vm1213, %v1204
      %1238 = vst.msk [vmem:[#allocation3 + $0xc0] sm:$0xff] %vm1213, %v1205
      %1239 = vst.msk [vmem:[#allocation3 + $0xc8] sm:$0xff] %vm1213, %v1206
      %1240 = vst.msk [vmem:[#allocation3 + $0xd0] sm:$0xff] %vm1213, %v1207
      %1241 = vst.msk [vmem:[#allocation3 + $0xd8] sm:$0xff] %vm1213, %v1208
      %1242 = vst.msk [vmem:[#allocation3 + $0xe0] sm:$0xff] %vm1213, %v1209
      %1243 = vst.msk [vmem:[#allocation3 + $0xe8] sm:$0xff] %vm1213, %v1210
      %1244 = vst.msk [vmem:[#allocation3 + $0xf0] sm:$0xff] %vm1213, %v1211
      %1245 = vst.msk [vmem:[#allocation3 + $0xf8] sm:$0xff] %vm1213, %v1212
      %v1246 = vld [vmem:[%s3] sm:$0xff]
      %v1247 = vld [vmem:[%s3 + $0x8] sm:$0xff]
      %v1248 = vld [vmem:[%s3 + $0x10] sm:$0xff]
      %v1249 = vld [vmem:[%s3 + $0x18] sm:$0xff]
      %v1250 = vld [vmem:[%s3 + $0x20] sm:$0xf]
      %s1251 = scalar_lea.vmem [#allocation3], %s308
      %v1252 = vld [vmem:[%s1251] sm:$0xff]
      %v1253 = vld [vmem:[%s1251 + $0x8] sm:$0xff]
      %v1254 = vld [vmem:[%s1251 + $0x10] sm:$0xff]
      %v1255 = vld [vmem:[%s1251 + $0x18] sm:$0xff]
      %v1256 = vld [vmem:[%s1251 + $0x20] sm:$0xff]
      %v1257 = vld [vmem:[%s1251 + $0x28] sm:$0xff]
      %v1258 = vld [vmem:[%s1251 + $0x30] sm:$0xff]
      %v1259 = vld [vmem:[%s1251 + $0x38] sm:$0xff]
      %v1260 = vld [vmem:[%s1251 + $0x40] sm:$0xff]
      %v1261 = vld [vmem:[%s1251 + $0x48] sm:$0xff]
      %v1262 = vld [vmem:[%s1251 + $0x50] sm:$0xff]
      %v1263 = vld [vmem:[%s1251 + $0x58] sm:$0xff]
      %v1264 = vld [vmem:[%s1251 + $0x60] sm:$0xff]
      %v1265 = vld [vmem:[%s1251 + $0x68] sm:$0xff]
      %v1266 = vld [vmem:[%s1251 + $0x70] sm:$0xff]
      %v1267 = vld [vmem:[%s1251 + $0x78] sm:$0xff]
      %v1269 = vsel %vm1213, %v1252, 0
      %v1272 = vsel %vm1213, %v1253, 0
      %v1275 = vsel %vm1213, %v1254, 0
      %v1278 = vsel %vm1213, %v1255, 0
      %v1281 = vsel %vm1213, %v1256, 0
      %v1284 = vsel %vm1213, %v1257, 0
      %v1287 = vsel %vm1213, %v1258, 0
      %v1290 = vsel %vm1213, %v1259, 0
      %v1293 = vsel %vm1213, %v1260, 0
      %v1296 = vsel %vm1213, %v1261, 0
      %v1299 = vsel %vm1213, %v1262, 0
      %v1302 = vsel %vm1213, %v1263, 0
      %v1305 = vsel %vm1213, %v1264, 0
      %v1308 = vsel %vm1213, %v1265, 0
      %v1311 = vsel %vm1213, %v1266, 0
      %v1314 = vsel %vm1213, %v1267, 0
      %vm1316 = vcmask 1043456
      %v1318 = vsel %vm1316, %v1250, 0
      %1320 = vmatpush.msra.mxu0 0.0
      %1321 = vmatpush.msra.mxu0 0.0
      %1322 = vmatpush.msra.mxu0 0.0
      %1323 = vmatpush.msra.mxu0 0.0
      %1324 = vmatpush.msra.mxu0 0.0
      %1325 = vmatpush.msra.mxu0 0.0
      %1326 = vmatpush.msra.mxu0 0.0
      %1327 = vmatpush.msra.mxu0 0.0
      %1328 = vmatpush.msra.mxu0 0.0
      %1329 = vmatpush.msra.mxu0 0.0
      %1330 = vmatpush.msra.mxu0 0.0
      %1331 = vmatpush.msra.mxu0 %v1318
      %1332 = vmatpush.msra.mxu0 %v1249
      %1333 = vmatpush.msra.mxu0 %v1248
      %1334 = vmatpush.msra.mxu0 %v1247
      %1335 = vmatpush.msra.mxu0 %v1246
      %1336 = vmatmul.f32.gmra.mxu0 %v1269
      %v1337 = vpop.f32.mrf.mxu0
      %v1338 = vadd.f32 0.0, %v1337
      %1339 = vmatmul.f32.gmra.mxu0 %v1272
      %v1340 = vpop.f32.mrf.mxu0
      %v1341 = vadd.f32 0.0, %v1340
      %1342 = vmatmul.f32.gmra.mxu0 %v1275
      %v1343 = vpop.f32.mrf.mxu0
      %v1344 = vadd.f32 0.0, %v1343
      %1345 = vmatmul.f32.gmra.mxu0 %v1278
      %v1346 = vpop.f32.mrf.mxu0
      %v1347 = vadd.f32 0.0, %v1346
      %1348 = vmatmul.f32.gmra.mxu0 %v1281
      %v1349 = vpop.f32.mrf.mxu0
      %v1350 = vadd.f32 0.0, %v1349
      %1351 = vmatmul.f32.gmra.mxu0 %v1284
      %v1352 = vpop.f32.mrf.mxu0
      %v1353 = vadd.f32 0.0, %v1352
      %1354 = vmatmul.f32.gmra.mxu0 %v1287
      %v1355 = vpop.f32.mrf.mxu0
      %v1356 = vadd.f32 0.0, %v1355
      %1357 = vmatmul.f32.gmra.mxu0 %v1290
      %v1358 = vpop.f32.mrf.mxu0
      %v1359 = vadd.f32 0.0, %v1358
      %1360 = vmatmul.f32.gmra.mxu0 %v1293
      %v1361 = vpop.f32.mrf.mxu0
      %v1362 = vadd.f32 0.0, %v1361
      %1363 = vmatmul.f32.gmra.mxu0 %v1296
      %v1364 = vpop.f32.mrf.mxu0
      %v1365 = vadd.f32 0.0, %v1364
      %1366 = vmatmul.f32.gmra.mxu0 %v1299
      %v1367 = vpop.f32.mrf.mxu0
      %v1368 = vadd.f32 0.0, %v1367
      %1369 = vmatmul.f32.gmra.mxu0 %v1302
      %v1370 = vpop.f32.mrf.mxu0
      %v1371 = vadd.f32 0.0, %v1370
      %1372 = vmatmul.f32.gmra.mxu0 %v1305
      %v1373 = vpop.f32.mrf.mxu0
      %v1374 = vadd.f32 0.0, %v1373
      %1375 = vmatmul.f32.gmra.mxu0 %v1308
      %v1376 = vpop.f32.mrf.mxu0
      %v1377 = vadd.f32 0.0, %v1376
      %1378 = vmatmul.f32.gmra.mxu0 %v1311
      %v1379 = vpop.f32.mrf.mxu0
      %v1380 = vadd.f32 0.0, %v1379
      %1381 = vmatmul.f32.gmra.mxu0 %v1314
      %v1382 = vpop.f32.mrf.mxu0
      %v1383 = vadd.f32 0.0, %v1382
      %1384 = vdwg.mxu0
      %1385 = vst.msk [vmem:[%s231] sm:$0xff] %vm310, %v1338
      %1386 = vst.msk [vmem:[%s231 + $0x8] sm:$0xff] %vm310, %v1341
      %1387 = vst.msk [vmem:[%s231 + $0x10] sm:$0xff] %vm310, %v1344
      %1388 = vst.msk [vmem:[%s231 + $0x18] sm:$0xff] %vm310, %v1347
      %1389 = vst.msk [vmem:[%s231 + $0x20] sm:$0xff] %vm310, %v1350
      %1390 = vst.msk [vmem:[%s231 + $0x28] sm:$0xff] %vm310, %v1353
      %1391 = vst.msk [vmem:[%s231 + $0x30] sm:$0xff] %vm310, %v1356
      %1392 = vst.msk [vmem:[%s231 + $0x38] sm:$0xff] %vm310, %v1359
      %1393 = vst.msk [vmem:[%s231 + $0x40] sm:$0xff] %vm310, %v1362
      %1394 = vst.msk [vmem:[%s231 + $0x48] sm:$0xff] %vm310, %v1365
      %1395 = vst.msk [vmem:[%s231 + $0x50] sm:$0xff] %vm310, %v1368
      %1396 = vst.msk [vmem:[%s231 + $0x58] sm:$0xff] %vm310, %v1371
      %1397 = vst.msk [vmem:[%s231 + $0x60] sm:$0xff] %vm310, %v1374
      %1398 = vst.msk [vmem:[%s231 + $0x68] sm:$0xff] %vm310, %v1377
      %1399 = vst.msk [vmem:[%s231 + $0x70] sm:$0xff] %vm310, %v1380
      %1400 = vst.msk [vmem:[%s231 + $0x78] sm:$0xff] %vm310, %v1383
      %v1401 = vsel %vm310, %v1338, 0.0
      %v1402 = vsel %vm310, %v1341, 0.0
      %v1403 = vadd.f32 %v1401, %v1402
      %v1404 = vsel %vm310, %v1344, 0.0
      %v1405 = vadd.f32 %v1403, %v1404
      %v1406 = vsel %vm310, %v1347, 0.0
      %v1407 = vadd.f32 %v1405, %v1406
      %v1408 = vsel %vm310, %v1350, 0.0
      %v1409 = vadd.f32 %v1407, %v1408
      %v1410 = vsel %vm310, %v1353, 0.0
      %v1411 = vadd.f32 %v1409, %v1410
      %v1412 = vsel %vm310, %v1356, 0.0
      %v1413 = vadd.f32 %v1411, %v1412
      %v1414 = vsel %vm310, %v1359, 0.0
      %v1415 = vadd.f32 %v1413, %v1414
      %v1416 = vsel %vm310, %v1362, 0.0
      %v1417 = vadd.f32 %v1415, %v1416
      %v1418 = vsel %vm310, %v1365, 0.0
      %v1419 = vadd.f32 %v1417, %v1418
      %v1420 = vsel %vm310, %v1368, 0.0
      %v1421 = vadd.f32 %v1419, %v1420
      %v1422 = vsel %vm310, %v1371, 0.0
      %v1423 = vadd.f32 %v1421, %v1422
      %v1424 = vsel %vm310, %v1374, 0.0
      %v1425 = vadd.f32 %v1423, %v1424
      %v1426 = vsel %vm310, %v1377, 0.0
      %v1427 = vadd.f32 %v1425, %v1426
      %v1428 = vsel %vm310, %v1380, 0.0
      %v1429 = vadd.f32 %v1427, %v1428
      %v1430 = vsel %vm310, %v1383, 0.0
      %v1431 = vadd.f32 %v1429, %v1430
      %v1432 = vrot.slane %v1431, 4
      %v1433 = vadd.f32 %v1431, %v1432
      %v1434 = vrot.slane %v1433, 2
      %v1435 = vadd.f32 %v1433, %v1434
      %v1436 = vrot.slane %v1435, 1
      %v1437 = vadd.f32 %v1435, %v1436
      %v1438 = vadd.f32 %v1437, 0.0
      %v1439 = vmul.f32 %v1338, %v1338
      %v1440 = vmul.f32 %v1341, %v1341
      %v1441 = vmul.f32 %v1344, %v1344
      %v1442 = vmul.f32 %v1347, %v1347
      %v1443 = vmul.f32 %v1350, %v1350
      %v1444 = vmul.f32 %v1353, %v1353
      %v1445 = vmul.f32 %v1356, %v1356
      %v1446 = vmul.f32 %v1359, %v1359
      %v1447 = vmul.f32 %v1362, %v1362
      %v1448 = vmul.f32 %v1365, %v1365
      %v1449 = vmul.f32 %v1368, %v1368
      %v1450 = vmul.f32 %v1371, %v1371
      %v1451 = vmul.f32 %v1374, %v1374
      %v1452 = vmul.f32 %v1377, %v1377
      %v1453 = vmul.f32 %v1380, %v1380
      %v1454 = vmul.f32 %v1383, %v1383
      %v1455 = vsel %vm310, %v1439, 0.0
      %v1456 = vsel %vm310, %v1440, 0.0
      %v1457 = vadd.f32 %v1455, %v1456
      %v1458 = vsel %vm310, %v1441, 0.0
      %v1459 = vadd.f32 %v1457, %v1458
      %v1460 = vsel %vm310, %v1442, 0.0
      %v1461 = vadd.f32 %v1459, %v1460
      %v1462 = vsel %vm310, %v1443, 0.0
      %v1463 = vadd.f32 %v1461, %v1462
      %v1464 = vsel %vm310, %v1444, 0.0
      %v1465 = vadd.f32 %v1463, %v1464
      %v1466 = vsel %vm310, %v1445, 0.0
      %v1467 = vadd.f32 %v1465, %v1466
      %v1468 = vsel %vm310, %v1446, 0.0
      %v1469 = vadd.f32 %v1467, %v1468
      %v1470 = vsel %vm310, %v1447, 0.0
      %v1471 = vadd.f32 %v1469, %v1470
      %v1472 = vsel %vm310, %v1448, 0.0
      %v1473 = vadd.f32 %v1471, %v1472
      %v1474 = vsel %vm310, %v1449, 0.0
      %v1475 = vadd.f32 %v1473, %v1474
      %v1476 = vsel %vm310, %v1450, 0.0
      %v1477 = vadd.f32 %v1475, %v1476
      %v1478 = vsel %vm310, %v1451, 0.0
      %v1479 = vadd.f32 %v1477, %v1478
      %v1480 = vsel %vm310, %v1452, 0.0
      %v1481 = vadd.f32 %v1479, %v1480
      %v1482 = vsel %vm310, %v1453, 0.0
      %v1483 = vadd.f32 %v1481, %v1482
      %v1484 = vsel %vm310, %v1454, 0.0
      %v1485 = vadd.f32 %v1483, %v1484
      %v1486 = vrot.slane %v1485, 4
      %v1487 = vadd.f32 %v1485, %v1486
      %v1488 = vrot.slane %v1487, 2
      %v1489 = vadd.f32 %v1487, %v1488
      %v1490 = vrot.slane %v1489, 1
      %v1491 = vadd.f32 %v1489, %v1490
      %v1492 = vadd.f32 %v1491, 0.0
      %s1493 = scalar_lea.vmem [#allocation3], %s392
      %v1494 = vld [vmem:[%s1493] sm:$0xff]
      %v1495 = vld [vmem:[%s1493 + $0x8] sm:$0xff]
      %v1496 = vld [vmem:[%s1493 + $0x10] sm:$0xff]
      %v1497 = vld [vmem:[%s1493 + $0x18] sm:$0xff]
      %v1498 = vld [vmem:[%s1493 + $0x20] sm:$0xff]
      %v1499 = vld [vmem:[%s1493 + $0x28] sm:$0xff]
      %v1500 = vld [vmem:[%s1493 + $0x30] sm:$0xff]
      %v1501 = vld [vmem:[%s1493 + $0x38] sm:$0xff]
      %v1502 = vld [vmem:[%s1493 + $0x40] sm:$0xff]
      %v1503 = vld [vmem:[%s1493 + $0x48] sm:$0xff]
      %v1504 = vld [vmem:[%s1493 + $0x50] sm:$0xff]
      %v1505 = vld [vmem:[%s1493 + $0x58] sm:$0xff]
      %v1506 = vld [vmem:[%s1493 + $0x60] sm:$0xff]
      %v1507 = vld [vmem:[%s1493 + $0x68] sm:$0xff]
      %v1508 = vld [vmem:[%s1493 + $0x70] sm:$0xff]
      %v1509 = vld [vmem:[%s1493 + $0x78] sm:$0xff]
      %v1511 = vsel %vm1213, %v1494, 0
      %v1514 = vsel %vm1213, %v1495, 0
      %v1517 = vsel %vm1213, %v1496, 0
      %v1520 = vsel %vm1213, %v1497, 0
      %v1523 = vsel %vm1213, %v1498, 0
      %v1526 = vsel %vm1213, %v1499, 0
      %v1529 = vsel %vm1213, %v1500, 0
      %v1532 = vsel %vm1213, %v1501, 0
      %v1535 = vsel %vm1213, %v1502, 0
      %v1538 = vsel %vm1213, %v1503, 0
      %v1541 = vsel %vm1213, %v1504, 0
      %v1544 = vsel %vm1213, %v1505, 0
      %v1547 = vsel %vm1213, %v1506, 0
      %v1550 = vsel %vm1213, %v1507, 0
      %v1553 = vsel %vm1213, %v1508, 0
      %v1556 = vsel %vm1213, %v1509, 0
      %1558 = vmatpush.msra.mxu0 0.0
      %1559 = vmatpush.msra.mxu0 0.0
      %1560 = vmatpush.msra.mxu0 0.0
      %1561 = vmatpush.msra.mxu0 0.0
      %1562 = vmatpush.msra.mxu0 0.0
      %1563 = vmatpush.msra.mxu0 0.0
      %1564 = vmatpush.msra.mxu0 0.0
      %1565 = vmatpush.msra.mxu0 0.0
      %1566 = vmatpush.msra.mxu0 0.0
      %1567 = vmatpush.msra.mxu0 0.0
      %1568 = vmatpush.msra.mxu0 0.0
      %1569 = vmatpush.msra.mxu0 %v1318
      %1570 = vmatpush.msra.mxu0 %v1249
      %1571 = vmatpush.msra.mxu0 %v1248
      %1572 = vmatpush.msra.mxu0 %v1247
      %1573 = vmatpush.msra.mxu0 %v1246
      %1574 = vmatmul.f32.gmra.mxu0 %v1511
      %v1575 = vpop.f32.mrf.mxu0
      %v1576 = vadd.f32 0.0, %v1575
      %1577 = vmatmul.f32.gmra.mxu0 %v1514
      %v1578 = vpop.f32.mrf.mxu0
      %v1579 = vadd.f32 0.0, %v1578
      %1580 = vmatmul.f32.gmra.mxu0 %v1517
      %v1581 = vpop.f32.mrf.mxu0
      %v1582 = vadd.f32 0.0, %v1581
      %1583 = vmatmul.f32.gmra.mxu0 %v1520
      %v1584 = vpop.f32.mrf.mxu0
      %v1585 = vadd.f32 0.0, %v1584
      %1586 = vmatmul.f32.gmra.mxu0 %v1523
      %v1587 = vpop.f32.mrf.mxu0
      %v1588 = vadd.f32 0.0, %v1587
      %1589 = vmatmul.f32.gmra.mxu0 %v1526
      %v1590 = vpop.f32.mrf.mxu0
      %v1591 = vadd.f32 0.0, %v1590
      %1592 = vmatmul.f32.gmra.mxu0 %v1529
      %v1593 = vpop.f32.mrf.mxu0
      %v1594 = vadd.f32 0.0, %v1593
      %1595 = vmatmul.f32.gmra.mxu0 %v1532
      %v1596 = vpop.f32.mrf.mxu0
      %v1597 = vadd.f32 0.0, %v1596
      %1598 = vmatmul.f32.gmra.mxu0 %v1535
      %v1599 = vpop.f32.mrf.mxu0
      %v1600 = vadd.f32 0.0, %v1599
      %1601 = vmatmul.f32.gmra.mxu0 %v1538
      %v1602 = vpop.f32.mrf.mxu0
      %v1603 = vadd.f32 0.0, %v1602
      %1604 = vmatmul.f32.gmra.mxu0 %v1541
      %v1605 = vpop.f32.mrf.mxu0
      %v1606 = vadd.f32 0.0, %v1605
      %1607 = vmatmul.f32.gmra.mxu0 %v1544
      %v1608 = vpop.f32.mrf.mxu0
      %v1609 = vadd.f32 0.0, %v1608
      %1610 = vmatmul.f32.gmra.mxu0 %v1547
      %v1611 = vpop.f32.mrf.mxu0
      %v1612 = vadd.f32 0.0, %v1611
      %1613 = vmatmul.f32.gmra.mxu0 %v1550
      %v1614 = vpop.f32.mrf.mxu0
      %v1615 = vadd.f32 0.0, %v1614
      %1616 = vmatmul.f32.gmra.mxu0 %v1553
      %v1617 = vpop.f32.mrf.mxu0
      %v1618 = vadd.f32 0.0, %v1617
      %1619 = vmatmul.f32.gmra.mxu0 %v1556
      %v1620 = vpop.f32.mrf.mxu0
      %v1621 = vadd.f32 0.0, %v1620
      %1622 = vdwg.mxu0
      %s1623 = scalar_lea.vmem %s231, 128
      %1624 = vst.msk [vmem:[%s1623] sm:$0xff] %vm310, %v1576
      %1625 = vst.msk [vmem:[%s1623 + $0x8] sm:$0xff] %vm310, %v1579
      %1626 = vst.msk [vmem:[%s1623 + $0x10] sm:$0xff] %vm310, %v1582
      %1627 = vst.msk [vmem:[%s1623 + $0x18] sm:$0xff] %vm310, %v1585
      %1628 = vst.msk [vmem:[%s1623 + $0x20] sm:$0xff] %vm310, %v1588
      %1629 = vst.msk [vmem:[%s1623 + $0x28] sm:$0xff] %vm310, %v1591
      %1630 = vst.msk [vmem:[%s1623 + $0x30] sm:$0xff] %vm310, %v1594
      %1631 = vst.msk [vmem:[%s1623 + $0x38] sm:$0xff] %vm310, %v1597
      %1632 = vst.msk [vmem:[%s1623 + $0x40] sm:$0xff] %vm310, %v1600
      %1633 = vst.msk [vmem:[%s1623 + $0x48] sm:$0xff] %vm310, %v1603
      %1634 = vst.msk [vmem:[%s1623 + $0x50] sm:$0xff] %vm310, %v1606
      %1635 = vst.msk [vmem:[%s1623 + $0x58] sm:$0xff] %vm310, %v1609
      %1636 = vst.msk [vmem:[%s1623 + $0x60] sm:$0xff] %vm310, %v1612
      %1637 = vst.msk [vmem:[%s1623 + $0x68] sm:$0xff] %vm310, %v1615
      %1638 = vst.msk [vmem:[%s1623 + $0x70] sm:$0xff] %vm310, %v1618
      %1639 = vst.msk [vmem:[%s1623 + $0x78] sm:$0xff] %vm310, %v1621
      %v1640 = vsel %vm310, %v1576, 0.0
      %v1641 = vsel %vm310, %v1579, 0.0
      %v1642 = vadd.f32 %v1640, %v1641
      %v1643 = vsel %vm310, %v1582, 0.0
      %v1644 = vadd.f32 %v1642, %v1643
      %v1645 = vsel %vm310, %v1585, 0.0
      %v1646 = vadd.f32 %v1644, %v1645
      %v1647 = vsel %vm310, %v1588, 0.0
      %v1648 = vadd.f32 %v1646, %v1647
      %v1649 = vsel %vm310, %v1591, 0.0
      %v1650 = vadd.f32 %v1648, %v1649
      %v1651 = vsel %vm310, %v1594, 0.0
      %v1652 = vadd.f32 %v1650, %v1651
      %v1653 = vsel %vm310, %v1597, 0.0
      %v1654 = vadd.f32 %v1652, %v1653
      %v1655 = vsel %vm310, %v1600, 0.0
      %v1656 = vadd.f32 %v1654, %v1655
      %v1657 = vsel %vm310, %v1603, 0.0
      %v1658 = vadd.f32 %v1656, %v1657
      %v1659 = vsel %vm310, %v1606, 0.0
      %v1660 = vadd.f32 %v1658, %v1659
      %v1661 = vsel %vm310, %v1609, 0.0
      %v1662 = vadd.f32 %v1660, %v1661
      %v1663 = vsel %vm310, %v1612, 0.0
      %v1664 = vadd.f32 %v1662, %v1663
      %v1665 = vsel %vm310, %v1615, 0.0
      %v1666 = vadd.f32 %v1664, %v1665
      %v1667 = vsel %vm310, %v1618, 0.0
      %v1668 = vadd.f32 %v1666, %v1667
      %v1669 = vsel %vm310, %v1621, 0.0
      %v1670 = vadd.f32 %v1668, %v1669
      %v1671 = vrot.slane %v1670, 4
      %v1672 = vadd.f32 %v1670, %v1671
      %v1673 = vrot.slane %v1672, 2
      %v1674 = vadd.f32 %v1672, %v1673
      %v1675 = vrot.slane %v1674, 1
      %v1676 = vadd.f32 %v1674, %v1675
      %v1677 = vadd.f32 %v1438, %v1676
      %v1678 = vmul.f32 %v1576, %v1576
      %v1679 = vmul.f32 %v1579, %v1579
      %v1680 = vmul.f32 %v1582, %v1582
      %v1681 = vmul.f32 %v1585, %v1585
      %v1682 = vmul.f32 %v1588, %v1588
      %v1683 = vmul.f32 %v1591, %v1591
      %v1684 = vmul.f32 %v1594, %v1594
      %v1685 = vmul.f32 %v1597, %v1597
      %v1686 = vmul.f32 %v1600, %v1600
      %v1687 = vmul.f32 %v1603, %v1603
      %v1688 = vmul.f32 %v1606, %v1606
      %v1689 = vmul.f32 %v1609, %v1609
      %v1690 = vmul.f32 %v1612, %v1612
      %v1691 = vmul.f32 %v1615, %v1615
      %v1692 = vmul.f32 %v1618, %v1618
      %v1693 = vmul.f32 %v1621, %v1621
      %v1694 = vsel %vm310, %v1678, 0.0
      %v1695 = vsel %vm310, %v1679, 0.0
      %v1696 = vadd.f32 %v1694, %v1695
      %v1697 = vsel %vm310, %v1680, 0.0
      %v1698 = vadd.f32 %v1696, %v1697
      %v1699 = vsel %vm310, %v1681, 0.0
      %v1700 = vadd.f32 %v1698, %v1699
      %v1701 = vsel %vm310, %v1682, 0.0
      %v1702 = vadd.f32 %v1700, %v1701
      %v1703 = vsel %vm310, %v1683, 0.0
      %v1704 = vadd.f32 %v1702, %v1703
      %v1705 = vsel %vm310, %v1684, 0.0
      %v1706 = vadd.f32 %v1704, %v1705
      %v1707 = vsel %vm310, %v1685, 0.0
      %v1708 = vadd.f32 %v1706, %v1707
      %v1709 = vsel %vm310, %v1686, 0.0
      %v1710 = vadd.f32 %v1708, %v1709
      %v1711 = vsel %vm310, %v1687, 0.0
      %v1712 = vadd.f32 %v1710, %v1711
      %v1713 = vsel %vm310, %v1688, 0.0
      %v1714 = vadd.f32 %v1712, %v1713
      %v1715 = vsel %vm310, %v1689, 0.0
      %v1716 = vadd.f32 %v1714, %v1715
      %v1717 = vsel %vm310, %v1690, 0.0
      %v1718 = vadd.f32 %v1716, %v1717
      %v1719 = vsel %vm310, %v1691, 0.0
      %v1720 = vadd.f32 %v1718, %v1719
      %v1721 = vsel %vm310, %v1692, 0.0
      %v1722 = vadd.f32 %v1720, %v1721
      %v1723 = vsel %vm310, %v1693, 0.0
      %v1724 = vadd.f32 %v1722, %v1723
      %v1725 = vrot.slane %v1724, 4
      %v1726 = vadd.f32 %v1724, %v1725
      %v1727 = vrot.slane %v1726, 2
      %v1728 = vadd.f32 %v1726, %v1727
      %v1729 = vrot.slane %v1728, 1
      %v1730 = vadd.f32 %v1728, %v1729
      %v1731 = vadd.f32 %v1492, %v1730
      %v1732 = vsel %vm474, %v1677, %v1731
      %vm1733 = vcmask 25600
      %1734 = vst.msk [vmem:[%s235] sm:$0x3] %vm1733, %v1732
      %p1735 = scmp.lt.s32.totalorder %s17, 1
      %s1736 = scalar_select %p1735, %s17, 1
      %s1737 = smul.addr %s1736, 32
      %s1738 = smul.addr %s1737, 8
      %s1739 = scalar_lea.vmem %s4, %s1738
      %p1740 = scmp.lt.s32.totalorder %s17, 1
      %s1741 = scalar_select %p1740, %s17, 1
      %s1742 = smul.addr %s1741, 2
      %s1743 = scalar_lea.vmem %s5, %s1742
      // Predicated region
      $region37: #{residual_forward.4} parent=35 // pred_check
        %p1744 = pneg %p124
      $region38: #{residual_forward.4} parent=35 // pred_check_branch
        %1746 = sbr.rel (%p1744) target = $region40
      $region39: #{residual_forward.4} parent=35 // pred_region
        _
      $region40: #{residual_forward.4} parent=35 // pred_fallthru
        _
      // Predicated region
      $region41: #{residual_forward.4} parent=35 // pred_check
        %p1747 = pneg %p150
      $region42: #{residual_forward.4} parent=35 // pred_check_branch
        %1749 = sbr.rel (%p1747) target = $region44
      $region43: #{residual_forward.4} parent=35 // pred_region
        _
      $region44: #{residual_forward.4} parent=35 // pred_fallthru
        _
    $region36: #{residual_forward.4} parent=5 // pred_fallthru
      _
    %p1750 = scmp.le.s32.totalorder 2, %s12
    // Predicated region
    $region45: #{residual_forward.4} parent=5 // pred_check
      %p1751 = pneg %p1750
    $region46: #{residual_forward.4} parent=5 // pred_check_branch
      %1753 = sbr.rel (%p1751) target = $region48
    $region47: #{residual_forward.4} parent=5 // pred_region
      %s1754 = ssub.s32 %s12, 2
      // Predicated region
      $region49: #{residual_forward.4} parent=47 // pred_check
        %p1755 = pneg %p130
      $region50: #{residual_forward.4} parent=47 // pred_check_branch
        %1757 = sbr.rel (%p1755) target = $region52
      $region51: #{residual_forward.4} parent=47 // pred_region
        %p1758 = scmp.lt.s32.totalorder %s18, 1
        %s1759 = scalar_select %p1758, %s18, 1
        %s1760 = smul.addr %s1759, 32
        %s1761 = smul.addr %s1760, 8
        %s1762 = scalar_lea.vmem %s4, %s1761
      $region52: #{residual_forward.4} parent=47 // pred_fallthru
        _
      // Predicated region
      $region53: #{residual_forward.4} parent=47 // pred_check
        %p1763 = pneg %p156
      $region54: #{residual_forward.4} parent=47 // pred_check_branch
        %1765 = sbr.rel (%p1763) target = $region56
      $region55: #{residual_forward.4} parent=47 // pred_region
        %p1766 = scmp.lt.s32.totalorder %s18, 1
        %s1767 = scalar_select %p1766, %s18, 1
        %s1768 = smul.addr %s1767, 2
        %s1769 = scalar_lea.vmem %s5, %s1768
      $region56: #{residual_forward.4} parent=47 // pred_fallthru
        _
    $region48: #{residual_forward.4} parent=5 // pred_fallthru
      _
  $region6: #{residual_forward.4} parent=0 // loop_footer
    %s16 = sadd.s32 1, %s12
  $region7: #{residual_forward.4} parent=0 // loop_footer_branch
    %11 = sbr.rel target = $region3
  $region8: #{residual_forward.4} parent=0 // loop_exit
    _

</llo_original>
